<compile_context>
chip_gen: v6e
topology: v6e:2x2x1
jax: 0.10.0
libtpu: 0.0.40
codegen_flags: <defaults>
</compile_context>

<pallas_src>
import math
import functools

import jax
import jax.numpy as jnp
from jax.experimental import pallas as pl
from jax.experimental.pallas import tpu as pltpu

# ---------------- config (small, consistent with the module) ----------------
BATCH = 2
SEQ = 8
HIDDEN = 32
N_HEADS = 4
D_HEAD = HIDDEN // N_HEADS
D_FF = 64
NUM_LAYERS = 2
VOCAB = 128
MAX_LEN = 16
N_SEG = 2
N_MASKED = 4
LN_EPS = 1e-5

BS = BATCH * SEQ                        # batch folded into the sublane axis
N_GATHER = BATCH * N_MASKED + BATCH     # masked-token rows + [CLS] rows
LVEC_W = 3 * HIDDEN                     # lane width of the per-layer vec pack


# ---------------- shared math helpers (kernel & reference) ------------------
def _gelu(x):
    return 0.5 * x * (1.0 + jnp.tanh(
        math.sqrt(2.0 / math.pi) * (x + 0.044715 * (x ** 3))))


def _layer_norm(x, g, b):
    mu = jnp.mean(x, axis=-1, keepdims=True)
    var = jnp.mean((x - mu) ** 2, axis=-1, keepdims=True)
    return (x - mu) * jax.lax.rsqrt(var + LN_EPS) * g + b


def _zero_map(nd, *_grid_idx):
    return (0,) * nd


# ---------------- the single fused Pallas kernel -----------------------------
def _bert_fused_kernel(x_ref, mask_ref, sel_ref,
                       wqkv_ref, wo_ref, w1_ref, w2_ref, lvec_ref,
                       hmat_ref, mvec_ref, out_ref):
    H = HIDDEN
    mvec = mvec_ref[...]                                   # (8, VOCAB)

    # --- embedding LayerNorm (x stays VMEM-resident from here on) -----------
    x = _layer_norm(x_ref[...], mvec[0:1, :H], mvec[1:2, :H])   # (BS, H)
    mask = mask_ref[...]                                   # (BS, BS) additive
    scale = 1.0 / math.sqrt(D_HEAD)

    # --- encoder layers (weights stacked on leading axis; static unroll) ----
    for l in range(NUM_LAYERS):
        wqkv = wqkv_ref[l]                                 # (H, 3H)
        wo = wo_ref[l]                                     # (H, H)
        w1 = w1_ref[l]                                     # (H, D_FF)
        w2 = w2_ref[l]                                     # (D_FF, H)
        lv = lvec_ref[l]                                   # (8, 3H)
        bqkv = lv[0:1, :3 * H]
        bo, g1, b1 = lv[1:2, :H], lv[2:3, :H], lv[3:4, :H]
        bf1 = lv[4:5, :D_FF]
        bf2, g2, b2 = lv[5:6, :H], lv[6:7, :H], lv[7:8, :H]

        # fused QKV projection: one (BS,H) x (H,3H) MXU pass
        qkv = jnp.dot(x, wqkv, preferred_element_type=jnp.float32) + bqkv
        # pre-scale q once (cheaper than scaling every per-head score matrix)
        q = qkv[:, :H] * scale
        k = qkv[:, H:2 * H]
        v = qkv[:, 2 * H:3 * H]

        # per-head attention on batch-folded rows; cross-batch / pad-key pairs
        # are killed by the block-diagonal additive mask, so one (BS,BS)
        # score matrix per head is exactly the per-batch softmax.
        ctx_heads = []
        for h in range(N_HEADS):
            lo = h * D_HEAD
            qh = q[:, lo:lo + D_HEAD]
            kh = k[:, lo:lo + D_HEAD]
            vh = v[:, lo:lo + D_HEAD]
            s = jax.lax.dot_general(
                qh, kh, (((1,), (1,)), ((), ())),
                preferred_element_type=jnp.float32) + mask
            s = s - jnp.max(s, axis=-1, keepdims=True)
            e = jnp.exp(s)
            p = e * pl.reciprocal(jnp.sum(e, axis=-1, keepdims=True), approx=True)
            ctx_heads.append(jnp.dot(p, vh, preferred_element_type=jnp.float32))
        ctx = jnp.concatenate(ctx_heads, axis=-1)          # (BS, H)
        attn_out = jnp.dot(ctx, wo, preferred_element_type=jnp.float32) + bo

        x1 = _layer_norm(x + attn_out, g1, b1)
        hdn = _gelu(jnp.dot(x1, w1, preferred_element_type=jnp.float32) + bf1)
        ffn = jnp.dot(hdn, w2, preferred_element_type=jnp.float32) + bf2
        x = _layer_norm(x1 + ffn, g2, b2)

    # --- gather masked tokens + [CLS] rows via one-hot selection matmul -----
    gathered = jnp.dot(sel_ref[...], x, preferred_element_type=jnp.float32)
    mt = gathered[:BATCH * N_MASKED]                       # (B*M, H)
    x0 = gathered[BATCH * N_MASKED:]                       # (B, H)

    # head matrices: [wcls (zero-padded to 128) | tok_emb.T | wfc | wlin]
    hmat = hmat_ref[...]                                   # (H, 2V + 2H)
    wcls = hmat[:, :VOCAB]
    emb_t = hmat[:, VOCAB:2 * VOCAB]
    wfc = hmat[:, 2 * VOCAB:2 * VOCAB + H]
    wlin = hmat[:, 2 * VOCAB + H:2 * VOCAB + 2 * H]
    bfc, bcls = mvec[2:3, :H], mvec[3:4, :]
    blin, gn, bn, lm_bias = mvec[4:5, :H], mvec[5:6, :H], mvec[6:7, :H], mvec[7:8, :]

    # NSP head (output padded to 128 lanes -> lane-dense store)
    cls_h = jnp.tanh(jnp.dot(x0, wfc, preferred_element_type=jnp.float32) + bfc)
    cls_pad = jnp.dot(cls_h, wcls, preferred_element_type=jnp.float32) + bcls  # (B, V)

    # masked-LM head (weight-tied with tok_emb)
    lin = jnp.dot(mt, wlin, preferred_element_type=jnp.float32) + blin
    normed = _layer_norm(_gelu(lin), gn, bn)
    lm = jnp.dot(normed, emb_t, preferred_element_type=jnp.float32) + lm_bias  # (B*M, V)

    out_ref[...] = jnp.concatenate([lm, cls_pad], axis=0)  # (N_GATHER, 128) lane-dense


# ---------------- wrapper: glue + single pallas_call --------------------------
def bert_pallas(packed, input_ids, segment_ids, masked_pos):
    # embedding table gathers (glue)
    pos = jnp.arange(SEQ)
    emb = (packed["tok_emb"][input_ids]
           + packed["pos_emb"][pos][None, :, :]
           + packed["seg_emb"][segment_ids])
    x_emb = emb.reshape(BS, HIDDEN)

    # block-diagonal additive attention mask over the folded (B*S) rows:
    # -1e9 where key is padding (id == 0) or where query/key batches differ.
    ids_flat = input_ids.reshape(-1)
    batch_idx = jnp.repeat(jnp.arange(BATCH), SEQ)
    keep = (batch_idx[:, None] == batch_idx[None, :]) & (ids_flat[None, :] != 0)
    mask = jnp.where(keep, jnp.float32(0.0), jnp.float32(-1e9))

    # one-hot selection matrix: rows 0..B*M-1 pick masked positions,
    # rows B*M.. pick the [CLS] token of each batch element.
    rows = jnp.concatenate(
        [(jnp.arange(BATCH)[:, None] * SEQ + masked_pos).reshape(-1),
         jnp.arange(BATCH) * SEQ])
    sel = jax.nn.one_hot(rows, BS, dtype=jnp.float32)      # (N_GATHER, BS)

    args = [x_emb, mask, sel, packed["wqkv"], packed["wo"], packed["w1"],
            packed["w2"], packed["lvecs"], packed["head_mats"], packed["misc"]]
    in_specs = [pl.BlockSpec(a.shape, functools.partial(_zero_map, a.ndim))
                for a in args]

    out = pl.pallas_call(
        _bert_fused_kernel,
        out_shape=jax.ShapeDtypeStruct((N_GATHER, VOCAB), jnp.float32),
        grid=(1,),
        in_specs=in_specs,
        out_specs=pl.BlockSpec((N_GATHER, VOCAB), functools.partial(_zero_map, 2)),
        compiler_params=pltpu.CompilerParams(dimension_semantics=("arbitrary",)),
    )(*args)

    lm_logits = out[:BATCH * N_MASKED].reshape(BATCH, N_MASKED, VOCAB)
    cls_logits = out[BATCH * N_MASKED:, :2]
    return lm_logits, cls_logits


# ---------------- one-time parameter packing (hoisted out of the forward) -----
def pack_params(p):
    def row(v, width):
        v = jnp.asarray(v, jnp.float32).reshape(-1)
        return jnp.pad(v, (0, width - v.shape[0]))

    wqkv_all = jnp.stack([jnp.concatenate([lp["wq"], lp["wk"], lp["wv"]], axis=1)
                          for lp in p["layers"]])                    # (L, H, 3H)
    wo_all = jnp.stack([lp["wo"] for lp in p["layers"]])             # (L, H, H)
    w1_all = jnp.stack([lp["w1"] for lp in p["layers"]])             # (L, H, D_FF)
    w2_all = jnp.stack([lp["w2"] for lp in p["layers"]])             # (L, D_FF, H)

    lvecs = []
    for lp in p["layers"]:
        bqkv = jnp.concatenate([lp["bq"], lp["bk"], lp["bv"]])
        lvecs.append(jnp.stack([row(bqkv, LVEC_W), row(lp["bo"], LVEC_W),
                                row(lp["g1"], LVEC_W), row(lp["b1"], LVEC_W),
                                row(lp["bf1"], LVEC_W), row(lp["bf2"], LVEC_W),
                                row(lp["g2"], LVEC_W), row(lp["b2"], LVEC_W)]))
    lvecs_all = jnp.stack(lvecs)                                     # (L, 8, 3H)

    wcls_pad = jnp.zeros((HIDDEN, VOCAB), jnp.float32).at[:, :2].set(p["wcls"])
    head_mats = jnp.concatenate(
        [wcls_pad, p["tok_emb"].T, p["wfc"], p["wlin"]], axis=1)     # (H, 2V+2H)

    misc = jnp.stack([row(p["emb_g"], VOCAB), row(p["emb_b"], VOCAB),
                      row(p["bfc"], VOCAB), row(p["bcls"], VOCAB),
                      row(p["blin"], VOCAB), row(p["gn"], VOCAB),
                      row(p["bn"], VOCAB), row(p["lm_bias"], VOCAB)])  # (8, V)

    return dict(tok_emb=p["tok_emb"], pos_emb=p["pos_emb"], seg_emb=p["seg_emb"],
                wqkv=wqkv_all, wo=wo_all, w1=w1_all, w2=w2_all,
                lvecs=lvecs_all, head_mats=head_mats, misc=misc)


# ---------------- pure-JAX reference (same math) ------------------------------
def bert_reference(params, input_ids, segment_ids, masked_pos):
    pos = jnp.arange(SEQ)
    emb = (params["tok_emb"][input_ids] + params["pos_emb"][pos][None, :, :]
           + params["seg_emb"][segment_ids])
    x = _layer_norm(emb, params["emb_g"], params["emb_b"])
    mask = jnp.where(input_ids == 0, jnp.float32(-1e9),
                     jnp.float32(0.0))[:, None, None, :]
    scale = 1.0 / math.sqrt(D_HEAD)

    def split(y):
        return y.reshape(BATCH, SEQ, N_HEADS, D_HEAD).transpose(0, 2, 1, 3)

    for lp in params["layers"]:
        q = split(x @ lp["wq"] + lp["bq"])
        k = split(x @ lp["wk"] + lp["bk"])
        v = split(x @ lp["wv"] + lp["bv"])
        s = jnp.einsum("bnqd,bnkd->bnqk", q, k) * scale + mask
        pr = jax.nn.softmax(s, axis=-1)
        ctx = jnp.einsum("bnqk,bnkd->bnqd", pr, v).transpose(0, 2, 1, 3)
        ctx = ctx.reshape(BATCH, SEQ, HIDDEN)
        ao = ctx @ lp["wo"] + lp["bo"]
        x1 = _layer_norm(x + ao, lp["g1"], lp["b1"])
        ffn = _gelu(x1 @ lp["w1"] + lp["bf1"]) @ lp["w2"] + lp["bf2"]
        x = _layer_norm(x1 + ffn, lp["g2"], lp["b2"])

    x0 = x[:, 0]
    cls_logits = jnp.tanh(x0 @ params["wfc"] + params["bfc"]) @ params["wcls"] + params["bcls"]
    idx = jnp.broadcast_to(masked_pos[:, :, None], (BATCH, N_MASKED, HIDDEN))
    mt = jnp.take_along_axis(x, idx, axis=1)
    mt = _layer_norm(_gelu(mt @ params["wlin"] + params["blin"]),
                     params["gn"], params["bn"])
    lm_logits = mt @ params["tok_emb"].T + params["lm_bias"]
    return lm_logits, cls_logits


# ---------------- deterministic parameter init --------------------------------
def _dense(key, fan_in, fan_out):
    kw, kb = jax.random.split(key)
    bound = 1.0 / math.sqrt(fan_in)
    w = jax.random.uniform(kw, (fan_in, fan_out), jnp.float32, -bound, bound)
    b = jax.random.uniform(kb, (fan_out,), jnp.float32, -bound, bound)
    return w, b


def init_params(key):
    keys = iter(jax.random.split(key, 8 + NUM_LAYERS * 8))
    nxt = lambda: next(keys)
    p = {}
    p["tok_emb"] = 0.02 * jax.random.normal(nxt(), (VOCAB, HIDDEN), jnp.float32)
    p["pos_emb"] = 0.02 * jax.random.normal(nxt(), (MAX_LEN, HIDDEN), jnp.float32)
    p["seg_emb"] = 0.02 * jax.random.normal(nxt(), (N_SEG, HIDDEN), jnp.float32)
    p["emb_g"] = jnp.ones((HIDDEN,), jnp.float32)
    p["emb_b"] = jnp.zeros((HIDDEN,), jnp.float32)

    layers = []
    for _ in range(NUM_LAYERS):
        lp = {}
        lp["wq"], lp["bq"] = _dense(nxt(), HIDDEN, HIDDEN)
        lp["wk"], lp["bk"] = _dense(nxt(), HIDDEN, HIDDEN)
        lp["wv"], lp["bv"] = _dense(nxt(), HIDDEN, HIDDEN)
        lp["wo"], lp["bo"] = _dense(nxt(), HIDDEN, HIDDEN)
        lp["g1"] = jnp.ones((HIDDEN,), jnp.float32)
        lp["b1"] = jnp.zeros((HIDDEN,), jnp.float32)
        lp["w1"], lp["bf1"] = _dense(nxt(), HIDDEN, D_FF)
        lp["w2"], lp["bf2"] = _dense(nxt(), D_FF, HIDDEN)
        lp["g2"] = jnp.ones((HIDDEN,), jnp.float32)
        lp["b2"] = jnp.zeros((HIDDEN,), jnp.float32)
        layers.append(lp)
    p["layers"] = layers

    p["wfc"], p["bfc"] = _dense(nxt(), HIDDEN, HIDDEN)       # self.fc
    p["wcls"], p["bcls"] = _dense(nxt(), HIDDEN, 2)          # self.classifier
    p["wlin"], p["blin"] = _dense(nxt(), HIDDEN, HIDDEN)     # self.linear
    p["gn"] = jnp.ones((HIDDEN,), jnp.float32)               # self.norm
    p["bn"] = jnp.zeros((HIDDEN,), jnp.float32)
    p["lm_bias"] = jax.random.uniform(nxt(), (VOCAB,), jnp.float32)  # torch.rand
    return p


# ---------------- main ---------------------------------------------------------
if __name__ == "__main__":
    key = jax.random.PRNGKey(0)
    k_ids, k_pos, k_par = jax.random.split(key, 3)

    input_ids = jax.random.randint(k_ids, (BATCH, SEQ), 1, VOCAB, dtype=jnp.int32)
    input_ids = input_ids.at[:, -1].set(0)   # pad token so the attn mask is exercised
    segment_ids = jnp.concatenate(
        [jnp.zeros((BATCH, SEQ // 2), jnp.int32),
         jnp.ones((BATCH, SEQ // 2), jnp.int32)], axis=1)
    masked_pos = jax.random.randint(k_pos, (BATCH, N_MASKED), 0, SEQ, dtype=jnp.int32)

    params = init_params(k_par)
    packed = pack_params(params)             # one-time weight packing / tok_emb.T

    fwd = jax.jit(bert_pallas)
    lm_logits, cls_logits = fwd(packed, input_ids, segment_ids, masked_pos)
    jax.block_until_ready((lm_logits, cls_logits))

    lm_ref, cls_ref = bert_reference(params, input_ids, segment_ids, masked_pos)
    assert lm_logits.shape == (BATCH, N_MASKED, VOCAB)
    assert cls_logits.shape == (BATCH, 2)
    assert bool(jnp.allclose(lm_logits, lm_ref, atol=1e-2, rtol=1e-2))
    assert bool(jnp.allclose(cls_logits, cls_ref, atol=1e-2, rtol=1e-2))

    print("KERNEL_OK")
</pallas_src>

<mosaic_0001>
module attributes {stable_mosaic.version = 11 : i64} {
  func.func @_bert_fused_kernel(%arg0: i32, %arg1: memref<16x32xf32, #tpu.memory_space<vmem>>, %arg2: memref<16x16xf32, #tpu.memory_space<vmem>>, %arg3: memref<10x16xf32, #tpu.memory_space<vmem>>, %arg4: memref<2x32x96xf32, #tpu.memory_space<vmem>>, %arg5: memref<2x32x32xf32, #tpu.memory_space<vmem>>, %arg6: memref<2x32x64xf32, #tpu.memory_space<vmem>>, %arg7: memref<2x64x32xf32, #tpu.memory_space<vmem>>, %arg8: memref<2x8x96xf32, #tpu.memory_space<vmem>>, %arg9: memref<32x320xf32, #tpu.memory_space<vmem>>, %arg10: memref<8x128xf32, #tpu.memory_space<vmem>>, %arg11: memref<10x128xf32, #tpu.memory_space<vmem>>) attributes {dimension_semantics = [#tpu.dimension_semantics<arbitrary>], iteration_bounds = array<i64: 1>, scalar_prefetch = 0 : i64, scratch_operands = 0 : i64, tpu.core_type = #tpu.core_type<tc>, window_params = [{pipeline_mode = #tpu.pipeline_mode<synchronous>, transform_indices = @transform_0, window_bounds = array<i64: 16, 32>}, {pipeline_mode = #tpu.pipeline_mode<synchronous>, transform_indices = @transform_1, window_bounds = array<i64: 16, 16>}, {pipeline_mode = #tpu.pipeline_mode<synchronous>, transform_indices = @transform_2, window_bounds = array<i64: 10, 16>}, {pipeline_mode = #tpu.pipeline_mode<synchronous>, transform_indices = @transform_3, window_bounds = array<i64: 2, 32, 96>}, {pipeline_mode = #tpu.pipeline_mode<synchronous>, transform_indices = @transform_4, window_bounds = array<i64: 2, 32, 32>}, {pipeline_mode = #tpu.pipeline_mode<synchronous>, transform_indices = @transform_5, window_bounds = array<i64: 2, 32, 64>}, {pipeline_mode = #tpu.pipeline_mode<synchronous>, transform_indices = @transform_6, window_bounds = array<i64: 2, 64, 32>}, {pipeline_mode = #tpu.pipeline_mode<synchronous>, transform_indices = @transform_7, window_bounds = array<i64: 2, 8, 96>}, {pipeline_mode = #tpu.pipeline_mode<synchronous>, transform_indices = @transform_8, window_bounds = array<i64: 32, 320>}, {pipeline_mode = #tpu.pipeline_mode<synchronous>, transform_indices = @transform_9, window_bounds = array<i64: 8, 128>}, {pipeline_mode = #tpu.pipeline_mode<synchronous>, transform_indices = @transform_10, window_bounds = array<i64: 10, 128>}]} {
    %c0 = arith.constant 0 : index
    %c0_0 = arith.constant 0 : index
    %0 = vector.load %arg10[%c0, %c0_0] : memref<8x128xf32, #tpu.memory_space<vmem>>, vector<8x128xf32>
    %c0_1 = arith.constant 0 : index
    %c0_2 = arith.constant 0 : index
    %1 = vector.load %arg1[%c0_1, %c0_2] : memref<16x32xf32, #tpu.memory_space<vmem>>, vector<16x32xf32>
    %2 = vector.extract_strided_slice %0 {offsets = [0, 0], sizes = [1, 32], strides = [1, 1]} : vector<8x128xf32> to vector<1x32xf32>
    %3 = vector.extract_strided_slice %0 {offsets = [1, 0], sizes = [1, 32], strides = [1, 1]} : vector<8x128xf32> to vector<1x32xf32>
    %cst = arith.constant dense<0.000000e+00> : vector<16xf32>
    %4 = vector.multi_reduction <add>, %1, %cst [1] : vector<16x32xf32> to vector<16xf32>
    %5 = vector.shape_cast %4 : vector<16xf32> to vector<16x1xf32>
    %cst_3 = arith.constant 3.200000e+01 : f32
    %6 = vector.broadcast %cst_3 : f32 to vector<16x1xf32>
    %7 = arith.divf %5, %6 : vector<16x1xf32>
    %8 = vector.broadcast %7 : vector<16x1xf32> to vector<16x32xf32>
    %9 = arith.subf %1, %8 : vector<16x32xf32>
    %10 = arith.mulf %9, %9 : vector<16x32xf32>
    %cst_4 = arith.constant dense<0.000000e+00> : vector<16xf32>
    %11 = vector.multi_reduction <add>, %10, %cst_4 [1] : vector<16x32xf32> to vector<16xf32>
    %12 = vector.shape_cast %11 : vector<16xf32> to vector<16x1xf32>
    %cst_5 = arith.constant 3.200000e+01 : f32
    %13 = vector.broadcast %cst_5 : f32 to vector<16x1xf32>
    %14 = arith.divf %12, %13 : vector<16x1xf32>
    %15 = vector.broadcast %7 : vector<16x1xf32> to vector<16x32xf32>
    %16 = arith.subf %1, %15 : vector<16x32xf32>
    %cst_6 = arith.constant 9.99999974E-6 : f32
    %17 = vector.broadcast %cst_6 : f32 to vector<16x1xf32>
    %18 = arith.addf %14, %17 : vector<16x1xf32>
    %19 = math.rsqrt %18 : vector<16x1xf32>
    %20 = vector.broadcast %19 : vector<16x1xf32> to vector<16x32xf32>
    %21 = arith.mulf %16, %20 : vector<16x32xf32>
    %22 = vector.broadcast %2 : vector<1x32xf32> to vector<16x32xf32>
    %23 = arith.mulf %21, %22 : vector<16x32xf32>
    %24 = vector.broadcast %3 : vector<1x32xf32> to vector<16x32xf32>
    %25 = arith.addf %23, %24 : vector<16x32xf32>
    %c0_7 = arith.constant 0 : index
    %c0_8 = arith.constant 0 : index
    %26 = vector.load %arg2[%c0_7, %c0_8] : memref<16x16xf32, #tpu.memory_space<vmem>>, vector<16x16xf32>
    %c0_9 = arith.constant 0 : index
    %c0_10 = arith.constant 0 : index
    %c0_11 = arith.constant 0 : index
    %27 = vector.load %arg4[%c0_9, %c0_10, %c0_11] : memref<2x32x96xf32, #tpu.memory_space<vmem>>, vector<1x32x96xf32>
    %28 = vector.shape_cast %27 : vector<1x32x96xf32> to vector<32x96xf32>
    %c0_12 = arith.constant 0 : index
    %c0_13 = arith.constant 0 : index
    %c0_14 = arith.constant 0 : index
    %29 = vector.load %arg5[%c0_12, %c0_13, %c0_14] : memref<2x32x32xf32, #tpu.memory_space<vmem>>, vector<1x32x32xf32>
    %30 = vector.shape_cast %29 : vector<1x32x32xf32> to vector<32x32xf32>
    %c0_15 = arith.constant 0 : index
    %c0_16 = arith.constant 0 : index
    %c0_17 = arith.constant 0 : index
    %31 = vector.load %arg6[%c0_15, %c0_16, %c0_17] : memref<2x32x64xf32, #tpu.memory_space<vmem>>, vector<1x32x64xf32>
    %32 = vector.shape_cast %31 : vector<1x32x64xf32> to vector<32x64xf32>
    %c0_18 = arith.constant 0 : index
    %c0_19 = arith.constant 0 : index
    %c0_20 = arith.constant 0 : index
    %33 = vector.load %arg7[%c0_18, %c0_19, %c0_20] : memref<2x64x32xf32, #tpu.memory_space<vmem>>, vector<1x64x32xf32>
    %34 = vector.shape_cast %33 : vector<1x64x32xf32> to vector<64x32xf32>
    %c0_21 = arith.constant 0 : index
    %c0_22 = arith.constant 0 : index
    %c0_23 = arith.constant 0 : index
    %35 = vector.load %arg8[%c0_21, %c0_22, %c0_23] : memref<2x8x96xf32, #tpu.memory_space<vmem>>, vector<1x8x96xf32>
    %36 = vector.shape_cast %35 : vector<1x8x96xf32> to vector<8x96xf32>
    %37 = vector.extract_strided_slice %36 {offsets = [0, 0], sizes = [1, 96], strides = [1, 1]} : vector<8x96xf32> to vector<1x96xf32>
    %38 = vector.extract_strided_slice %36 {offsets = [1, 0], sizes = [1, 32], strides = [1, 1]} : vector<8x96xf32> to vector<1x32xf32>
    %39 = vector.extract_strided_slice %36 {offsets = [2, 0], sizes = [1, 32], strides = [1, 1]} : vector<8x96xf32> to vector<1x32xf32>
    %40 = vector.extract_strided_slice %36 {offsets = [3, 0], sizes = [1, 32], strides = [1, 1]} : vector<8x96xf32> to vector<1x32xf32>
    %41 = vector.extract_strided_slice %36 {offsets = [4, 0], sizes = [1, 64], strides = [1, 1]} : vector<8x96xf32> to vector<1x64xf32>
    %42 = vector.extract_strided_slice %36 {offsets = [5, 0], sizes = [1, 32], strides = [1, 1]} : vector<8x96xf32> to vector<1x32xf32>
    %43 = vector.extract_strided_slice %36 {offsets = [6, 0], sizes = [1, 32], strides = [1, 1]} : vector<8x96xf32> to vector<1x32xf32>
    %44 = vector.extract_strided_slice %36 {offsets = [7, 0], sizes = [1, 32], strides = [1, 1]} : vector<8x96xf32> to vector<1x32xf32>
    %cst_24 = arith.constant dense<0.000000e+00> : vector<16x96xf32>
    %45 = tpu.matmul %25, %28, %cst_24 {dimension_numbers = #tpu.dot_dimension_numbers<[1], [0], [0], [1], [0, 0, 1, 1], [], []>} : vector<16x32xf32>, vector<32x96xf32>, vector<16x96xf32> -> vector<16x96xf32>
    %46 = vector.broadcast %37 : vector<1x96xf32> to vector<16x96xf32>
    %47 = arith.addf %45, %46 : vector<16x96xf32>
    %48 = vector.extract_strided_slice %47 {offsets = [0, 0], sizes = [16, 32], strides = [1, 1]} : vector<16x96xf32> to vector<16x32xf32>
    %cst_25 = arith.constant 0.353553385 : f32
    %49 = vector.broadcast %cst_25 : f32 to vector<16x32xf32>
    %50 = arith.mulf %48, %49 : vector<16x32xf32>
    %51 = vector.extract_strided_slice %47 {offsets = [0, 32], sizes = [16, 32], strides = [1, 1]} : vector<16x96xf32> to vector<16x32xf32>
    %52 = vector.extract_strided_slice %47 {offsets = [0, 64], sizes = [16, 32], strides = [1, 1]} : vector<16x96xf32> to vector<16x32xf32>
    %53 = vector.extract_strided_slice %50 {offsets = [0, 0], sizes = [16, 8], strides = [1, 1]} : vector<16x32xf32> to vector<16x8xf32>
    %54 = vector.extract_strided_slice %51 {offsets = [0, 0], sizes = [16, 8], strides = [1, 1]} : vector<16x32xf32> to vector<16x8xf32>
    %55 = vector.extract_strided_slice %52 {offsets = [0, 0], sizes = [16, 8], strides = [1, 1]} : vector<16x32xf32> to vector<16x8xf32>
    %cst_26 = arith.constant dense<0.000000e+00> : vector<16x16xf32>
    %56 = tpu.matmul %53, %54, %cst_26 {dimension_numbers = #tpu.dot_dimension_numbers<[1], [1], [0], [0], [0, 0, 1, 0], [], []>} : vector<16x8xf32>, vector<16x8xf32>, vector<16x16xf32> -> vector<16x16xf32>
    %57 = arith.addf %56, %26 : vector<16x16xf32>
    %cst_27 = arith.constant dense<0xFF800000> : vector<16xf32>
    %58 = vector.multi_reduction <maximumf>, %57, %cst_27 [1] : vector<16x16xf32> to vector<16xf32>
    %59 = vector.shape_cast %58 : vector<16xf32> to vector<16x1xf32>
    %60 = vector.broadcast %59 : vector<16x1xf32> to vector<16x16xf32>
    %61 = arith.subf %57, %60 : vector<16x16xf32>
    %62 = math.exp %61 : vector<16x16xf32>
    %cst_28 = arith.constant dense<0.000000e+00> : vector<16xf32>
    %63 = vector.multi_reduction <add>, %62, %cst_28 [1] : vector<16x16xf32> to vector<16xf32>
    %64 = vector.shape_cast %63 : vector<16xf32> to vector<16x1xf32>
    %65 = tpu.reciprocal %64 {approx = true} : vector<16x1xf32> -> vector<16x1xf32>
    %66 = vector.broadcast %65 : vector<16x1xf32> to vector<16x16xf32>
    %67 = arith.mulf %62, %66 : vector<16x16xf32>
    %cst_29 = arith.constant dense<0.000000e+00> : vector<16x8xf32>
    %68 = tpu.matmul %67, %55, %cst_29 {dimension_numbers = #tpu.dot_dimension_numbers<[1], [0], [0], [1], [0, 0, 1, 1], [], []>} : vector<16x16xf32>, vector<16x8xf32>, vector<16x8xf32> -> vector<16x8xf32>
    %69 = vector.extract_strided_slice %50 {offsets = [0, 8], sizes = [16, 8], strides = [1, 1]} : vector<16x32xf32> to vector<16x8xf32>
    %70 = vector.extract_strided_slice %51 {offsets = [0, 8], sizes = [16, 8], strides = [1, 1]} : vector<16x32xf32> to vector<16x8xf32>
    %71 = vector.extract_strided_slice %52 {offsets = [0, 8], sizes = [16, 8], strides = [1, 1]} : vector<16x32xf32> to vector<16x8xf32>
    %cst_30 = arith.constant dense<0.000000e+00> : vector<16x16xf32>
    %72 = tpu.matmul %69, %70, %cst_30 {dimension_numbers = #tpu.dot_dimension_numbers<[1], [1], [0], [0], [0, 0, 1, 0], [], []>} : vector<16x8xf32>, vector<16x8xf32>, vector<16x16xf32> -> vector<16x16xf32>
    %73 = arith.addf %72, %26 : vector<16x16xf32>
    %cst_31 = arith.constant dense<0xFF800000> : vector<16xf32>
    %74 = vector.multi_reduction <maximumf>, %73, %cst_31 [1] : vector<16x16xf32> to vector<16xf32>
    %75 = vector.shape_cast %74 : vector<16xf32> to vector<16x1xf32>
    %76 = vector.broadcast %75 : vector<16x1xf32> to vector<16x16xf32>
    %77 = arith.subf %73, %76 : vector<16x16xf32>
    %78 = math.exp %77 : vector<16x16xf32>
    %cst_32 = arith.constant dense<0.000000e+00> : vector<16xf32>
    %79 = vector.multi_reduction <add>, %78, %cst_32 [1] : vector<16x16xf32> to vector<16xf32>
    %80 = vector.shape_cast %79 : vector<16xf32> to vector<16x1xf32>
    %81 = tpu.reciprocal %80 {approx = true} : vector<16x1xf32> -> vector<16x1xf32>
    %82 = vector.broadcast %81 : vector<16x1xf32> to vector<16x16xf32>
    %83 = arith.mulf %78, %82 : vector<16x16xf32>
    %cst_33 = arith.constant dense<0.000000e+00> : vector<16x8xf32>
    %84 = tpu.matmul %83, %71, %cst_33 {dimension_numbers = #tpu.dot_dimension_numbers<[1], [0], [0], [1], [0, 0, 1, 1], [], []>} : vector<16x16xf32>, vector<16x8xf32>, vector<16x8xf32> -> vector<16x8xf32>
    %85 = vector.extract_strided_slice %50 {offsets = [0, 16], sizes = [16, 8], strides = [1, 1]} : vector<16x32xf32> to vector<16x8xf32>
    %86 = vector.extract_strided_slice %51 {offsets = [0, 16], sizes = [16, 8], strides = [1, 1]} : vector<16x32xf32> to vector<16x8xf32>
    %87 = vector.extract_strided_slice %52 {offsets = [0, 16], sizes = [16, 8], strides = [1, 1]} : vector<16x32xf32> to vector<16x8xf32>
    %cst_34 = arith.constant dense<0.000000e+00> : vector<16x16xf32>
    %88 = tpu.matmul %85, %86, %cst_34 {dimension_numbers = #tpu.dot_dimension_numbers<[1], [1], [0], [0], [0, 0, 1, 0], [], []>} : vector<16x8xf32>, vector<16x8xf32>, vector<16x16xf32> -> vector<16x16xf32>
    %89 = arith.addf %88, %26 : vector<16x16xf32>
    %cst_35 = arith.constant dense<0xFF800000> : vector<16xf32>
    %90 = vector.multi_reduction <maximumf>, %89, %cst_35 [1] : vector<16x16xf32> to vector<16xf32>
    %91 = vector.shape_cast %90 : vector<16xf32> to vector<16x1xf32>
    %92 = vector.broadcast %91 : vector<16x1xf32> to vector<16x16xf32>
    %93 = arith.subf %89, %92 : vector<16x16xf32>
    %94 = math.exp %93 : vector<16x16xf32>
    %cst_36 = arith.constant dense<0.000000e+00> : vector<16xf32>
    %95 = vector.multi_reduction <add>, %94, %cst_36 [1] : vector<16x16xf32> to vector<16xf32>
    %96 = vector.shape_cast %95 : vector<16xf32> to vector<16x1xf32>
    %97 = tpu.reciprocal %96 {approx = true} : vector<16x1xf32> -> vector<16x1xf32>
    %98 = vector.broadcast %97 : vector<16x1xf32> to vector<16x16xf32>
    %99 = arith.mulf %94, %98 : vector<16x16xf32>
    %cst_37 = arith.constant dense<0.000000e+00> : vector<16x8xf32>
    %100 = tpu.matmul %99, %87, %cst_37 {dimension_numbers = #tpu.dot_dimension_numbers<[1], [0], [0], [1], [0, 0, 1, 1], [], []>} : vector<16x16xf32>, vector<16x8xf32>, vector<16x8xf32> -> vector<16x8xf32>
    %101 = vector.extract_strided_slice %50 {offsets = [0, 24], sizes = [16, 8], strides = [1, 1]} : vector<16x32xf32> to vector<16x8xf32>
    %102 = vector.extract_strided_slice %51 {offsets = [0, 24], sizes = [16, 8], strides = [1, 1]} : vector<16x32xf32> to vector<16x8xf32>
    %103 = vector.extract_strided_slice %52 {offsets = [0, 24], sizes = [16, 8], strides = [1, 1]} : vector<16x32xf32> to vector<16x8xf32>
    %cst_38 = arith.constant dense<0.000000e+00> : vector<16x16xf32>
    %104 = tpu.matmul %101, %102, %cst_38 {dimension_numbers = #tpu.dot_dimension_numbers<[1], [1], [0], [0], [0, 0, 1, 0], [], []>} : vector<16x8xf32>, vector<16x8xf32>, vector<16x16xf32> -> vector<16x16xf32>
    %105 = arith.addf %104, %26 : vector<16x16xf32>
    %cst_39 = arith.constant dense<0xFF800000> : vector<16xf32>
    %106 = vector.multi_reduction <maximumf>, %105, %cst_39 [1] : vector<16x16xf32> to vector<16xf32>
    %107 = vector.shape_cast %106 : vector<16xf32> to vector<16x1xf32>
    %108 = vector.broadcast %107 : vector<16x1xf32> to vector<16x16xf32>
    %109 = arith.subf %105, %108 : vector<16x16xf32>
    %110 = math.exp %109 : vector<16x16xf32>
    %cst_40 = arith.constant dense<0.000000e+00> : vector<16xf32>
    %111 = vector.multi_reduction <add>, %110, %cst_40 [1] : vector<16x16xf32> to vector<16xf32>
    %112 = vector.shape_cast %111 : vector<16xf32> to vector<16x1xf32>
    %113 = tpu.reciprocal %112 {approx = true} : vector<16x1xf32> -> vector<16x1xf32>
    %114 = vector.broadcast %113 : vector<16x1xf32> to vector<16x16xf32>
    %115 = arith.mulf %110, %114 : vector<16x16xf32>
    %cst_41 = arith.constant dense<0.000000e+00> : vector<16x8xf32>
    %116 = tpu.matmul %115, %103, %cst_41 {dimension_numbers = #tpu.dot_dimension_numbers<[1], [0], [0], [1], [0, 0, 1, 1], [], []>} : vector<16x16xf32>, vector<16x8xf32>, vector<16x8xf32> -> vector<16x8xf32>
    %117 = tpu.concatenate %68, %84, %100, %116 in 1 : vector<16x8xf32>, vector<16x8xf32>, vector<16x8xf32>, vector<16x8xf32> -> vector<16x32xf32>
    %cst_42 = arith.constant dense<0.000000e+00> : vector<16x32xf32>
    %118 = tpu.matmul %117, %30, %cst_42 {dimension_numbers = #tpu.dot_dimension_numbers<[1], [0], [0], [1], [0, 0, 1, 1], [], []>} : vector<16x32xf32>, vector<32x32xf32>, vector<16x32xf32> -> vector<16x32xf32>
    %119 = vector.broadcast %38 : vector<1x32xf32> to vector<16x32xf32>
    %120 = arith.addf %118, %119 : vector<16x32xf32>
    %121 = arith.addf %25, %120 : vector<16x32xf32>
    %cst_43 = arith.constant dense<0.000000e+00> : vector<16xf32>
    %122 = vector.multi_reduction <add>, %121, %cst_43 [1] : vector<16x32xf32> to vector<16xf32>
    %123 = vector.shape_cast %122 : vector<16xf32> to vector<16x1xf32>
    %cst_44 = arith.constant 3.200000e+01 : f32
    %124 = vector.broadcast %cst_44 : f32 to vector<16x1xf32>
    %125 = arith.divf %123, %124 : vector<16x1xf32>
    %126 = vector.broadcast %125 : vector<16x1xf32> to vector<16x32xf32>
    %127 = arith.subf %121, %126 : vector<16x32xf32>
    %128 = arith.mulf %127, %127 : vector<16x32xf32>
    %cst_45 = arith.constant dense<0.000000e+00> : vector<16xf32>
    %129 = vector.multi_reduction <add>, %128, %cst_45 [1] : vector<16x32xf32> to vector<16xf32>
    %130 = vector.shape_cast %129 : vector<16xf32> to vector<16x1xf32>
    %cst_46 = arith.constant 3.200000e+01 : f32
    %131 = vector.broadcast %cst_46 : f32 to vector<16x1xf32>
    %132 = arith.divf %130, %131 : vector<16x1xf32>
    %133 = vector.broadcast %125 : vector<16x1xf32> to vector<16x32xf32>
    %134 = arith.subf %121, %133 : vector<16x32xf32>
    %cst_47 = arith.constant 9.99999974E-6 : f32
    %135 = vector.broadcast %cst_47 : f32 to vector<16x1xf32>
    %136 = arith.addf %132, %135 : vector<16x1xf32>
    %137 = math.rsqrt %136 : vector<16x1xf32>
    %138 = vector.broadcast %137 : vector<16x1xf32> to vector<16x32xf32>
    %139 = arith.mulf %134, %138 : vector<16x32xf32>
    %140 = vector.broadcast %39 : vector<1x32xf32> to vector<16x32xf32>
    %141 = arith.mulf %139, %140 : vector<16x32xf32>
    %142 = vector.broadcast %40 : vector<1x32xf32> to vector<16x32xf32>
    %143 = arith.addf %141, %142 : vector<16x32xf32>
    %cst_48 = arith.constant dense<0.000000e+00> : vector<16x64xf32>
    %144 = tpu.matmul %143, %32, %cst_48 {dimension_numbers = #tpu.dot_dimension_numbers<[1], [0], [0], [1], [0, 0, 1, 1], [], []>} : vector<16x32xf32>, vector<32x64xf32>, vector<16x64xf32> -> vector<16x64xf32>
    %145 = vector.broadcast %41 : vector<1x64xf32> to vector<16x64xf32>
    %146 = arith.addf %144, %145 : vector<16x64xf32>
    %cst_49 = arith.constant 5.000000e-01 : f32
    %147 = vector.broadcast %cst_49 : f32 to vector<16x64xf32>
    %148 = arith.mulf %147, %146 : vector<16x64xf32>
    %149 = arith.mulf %146, %146 : vector<16x64xf32>
    %150 = arith.mulf %146, %149 : vector<16x64xf32>
    %cst_50 = arith.constant 4.471500e-02 : f32
    %151 = vector.broadcast %cst_50 : f32 to vector<16x64xf32>
    %152 = arith.mulf %151, %150 : vector<16x64xf32>
    %153 = arith.addf %146, %152 : vector<16x64xf32>
    %cst_51 = arith.constant 0.797884583 : f32
    %154 = vector.broadcast %cst_51 : f32 to vector<16x64xf32>
    %155 = arith.mulf %154, %153 : vector<16x64xf32>
    %156 = math.tanh %155 : vector<16x64xf32>
    %cst_52 = arith.constant 1.000000e+00 : f32
    %157 = vector.broadcast %cst_52 : f32 to vector<16x64xf32>
    %158 = arith.addf %157, %156 : vector<16x64xf32>
    %159 = arith.mulf %148, %158 : vector<16x64xf32>
    %cst_53 = arith.constant dense<0.000000e+00> : vector<16x32xf32>
    %160 = tpu.matmul %159, %34, %cst_53 {dimension_numbers = #tpu.dot_dimension_numbers<[1], [0], [0], [1], [0, 0, 1, 1], [], []>} : vector<16x64xf32>, vector<64x32xf32>, vector<16x32xf32> -> vector<16x32xf32>
    %161 = vector.broadcast %42 : vector<1x32xf32> to vector<16x32xf32>
    %162 = arith.addf %160, %161 : vector<16x32xf32>
    %163 = arith.addf %143, %162 : vector<16x32xf32>
    %cst_54 = arith.constant dense<0.000000e+00> : vector<16xf32>
    %164 = vector.multi_reduction <add>, %163, %cst_54 [1] : vector<16x32xf32> to vector<16xf32>
    %165 = vector.shape_cast %164 : vector<16xf32> to vector<16x1xf32>
    %cst_55 = arith.constant 3.200000e+01 : f32
    %166 = vector.broadcast %cst_55 : f32 to vector<16x1xf32>
    %167 = arith.divf %165, %166 : vector<16x1xf32>
    %168 = vector.broadcast %167 : vector<16x1xf32> to vector<16x32xf32>
    %169 = arith.subf %163, %168 : vector<16x32xf32>
    %170 = arith.mulf %169, %169 : vector<16x32xf32>
    %cst_56 = arith.constant dense<0.000000e+00> : vector<16xf32>
    %171 = vector.multi_reduction <add>, %170, %cst_56 [1] : vector<16x32xf32> to vector<16xf32>
    %172 = vector.shape_cast %171 : vector<16xf32> to vector<16x1xf32>
    %cst_57 = arith.constant 3.200000e+01 : f32
    %173 = vector.broadcast %cst_57 : f32 to vector<16x1xf32>
    %174 = arith.divf %172, %173 : vector<16x1xf32>
    %175 = vector.broadcast %167 : vector<16x1xf32> to vector<16x32xf32>
    %176 = arith.subf %163, %175 : vector<16x32xf32>
    %cst_58 = arith.constant 9.99999974E-6 : f32
    %177 = vector.broadcast %cst_58 : f32 to vector<16x1xf32>
    %178 = arith.addf %174, %177 : vector<16x1xf32>
    %179 = math.rsqrt %178 : vector<16x1xf32>
    %180 = vector.broadcast %179 : vector<16x1xf32> to vector<16x32xf32>
    %181 = arith.mulf %176, %180 : vector<16x32xf32>
    %182 = vector.broadcast %43 : vector<1x32xf32> to vector<16x32xf32>
    %183 = arith.mulf %181, %182 : vector<16x32xf32>
    %184 = vector.broadcast %44 : vector<1x32xf32> to vector<16x32xf32>
    %185 = arith.addf %183, %184 : vector<16x32xf32>
    %c1 = arith.constant 1 : index
    %c0_59 = arith.constant 0 : index
    %c0_60 = arith.constant 0 : index
    %186 = vector.load %arg4[%c1, %c0_59, %c0_60] : memref<2x32x96xf32, #tpu.memory_space<vmem>>, vector<1x32x96xf32>
    %187 = vector.shape_cast %186 : vector<1x32x96xf32> to vector<32x96xf32>
    %c1_61 = arith.constant 1 : index
    %c0_62 = arith.constant 0 : index
    %c0_63 = arith.constant 0 : index
    %188 = vector.load %arg5[%c1_61, %c0_62, %c0_63] : memref<2x32x32xf32, #tpu.memory_space<vmem>>, vector<1x32x32xf32>
    %189 = vector.shape_cast %188 : vector<1x32x32xf32> to vector<32x32xf32>
    %c1_64 = arith.constant 1 : index
    %c0_65 = arith.constant 0 : index
    %c0_66 = arith.constant 0 : index
    %190 = vector.load %arg6[%c1_64, %c0_65, %c0_66] : memref<2x32x64xf32, #tpu.memory_space<vmem>>, vector<1x32x64xf32>
    %191 = vector.shape_cast %190 : vector<1x32x64xf32> to vector<32x64xf32>
    %c1_67 = arith.constant 1 : index
    %c0_68 = arith.constant 0 : index
    %c0_69 = arith.constant 0 : index
    %192 = vector.load %arg7[%c1_67, %c0_68, %c0_69] : memref<2x64x32xf32, #tpu.memory_space<vmem>>, vector<1x64x32xf32>
    %193 = vector.shape_cast %192 : vector<1x64x32xf32> to vector<64x32xf32>
    %c1_70 = arith.constant 1 : index
    %c0_71 = arith.constant 0 : index
    %c0_72 = arith.constant 0 : index
    %194 = vector.load %arg8[%c1_70, %c0_71, %c0_72] : memref<2x8x96xf32, #tpu.memory_space<vmem>>, vector<1x8x96xf32>
    %195 = vector.shape_cast %194 : vector<1x8x96xf32> to vector<8x96xf32>
    %196 = vector.extract_strided_slice %195 {offsets = [0, 0], sizes = [1, 96], strides = [1, 1]} : vector<8x96xf32> to vector<1x96xf32>
    %197 = vector.extract_strided_slice %195 {offsets = [1, 0], sizes = [1, 32], strides = [1, 1]} : vector<8x96xf32> to vector<1x32xf32>
    %198 = vector.extract_strided_slice %195 {offsets = [2, 0], sizes = [1, 32], strides = [1, 1]} : vector<8x96xf32> to vector<1x32xf32>
    %199 = vector.extract_strided_slice %195 {offsets = [3, 0], sizes = [1, 32], strides = [1, 1]} : vector<8x96xf32> to vector<1x32xf32>
    %200 = vector.extract_strided_slice %195 {offsets = [4, 0], sizes = [1, 64], strides = [1, 1]} : vector<8x96xf32> to vector<1x64xf32>
    %201 = vector.extract_strided_slice %195 {offsets = [5, 0], sizes = [1, 32], strides = [1, 1]} : vector<8x96xf32> to vector<1x32xf32>
    %202 = vector.extract_strided_slice %195 {offsets = [6, 0], sizes = [1, 32], strides = [1, 1]} : vector<8x96xf32> to vector<1x32xf32>
    %203 = vector.extract_strided_slice %195 {offsets = [7, 0], sizes = [1, 32], strides = [1, 1]} : vector<8x96xf32> to vector<1x32xf32>
    %cst_73 = arith.constant dense<0.000000e+00> : vector<16x96xf32>
    %204 = tpu.matmul %185, %187, %cst_73 {dimension_numbers = #tpu.dot_dimension_numbers<[1], [0], [0], [1], [0, 0, 1, 1], [], []>} : vector<16x32xf32>, vector<32x96xf32>, vector<16x96xf32> -> vector<16x96xf32>
    %205 = vector.broadcast %196 : vector<1x96xf32> to vector<16x96xf32>
    %206 = arith.addf %204, %205 : vector<16x96xf32>
    %207 = vector.extract_strided_slice %206 {offsets = [0, 0], sizes = [16, 32], strides = [1, 1]} : vector<16x96xf32> to vector<16x32xf32>
    %cst_74 = arith.constant 0.353553385 : f32
    %208 = vector.broadcast %cst_74 : f32 to vector<16x32xf32>
    %209 = arith.mulf %207, %208 : vector<16x32xf32>
    %210 = vector.extract_strided_slice %206 {offsets = [0, 32], sizes = [16, 32], strides = [1, 1]} : vector<16x96xf32> to vector<16x32xf32>
    %211 = vector.extract_strided_slice %206 {offsets = [0, 64], sizes = [16, 32], strides = [1, 1]} : vector<16x96xf32> to vector<16x32xf32>
    %212 = vector.extract_strided_slice %209 {offsets = [0, 0], sizes = [16, 8], strides = [1, 1]} : vector<16x32xf32> to vector<16x8xf32>
    %213 = vector.extract_strided_slice %210 {offsets = [0, 0], sizes = [16, 8], strides = [1, 1]} : vector<16x32xf32> to vector<16x8xf32>
    %214 = vector.extract_strided_slice %211 {offsets = [0, 0], sizes = [16, 8], strides = [1, 1]} : vector<16x32xf32> to vector<16x8xf32>
    %cst_75 = arith.constant dense<0.000000e+00> : vector<16x16xf32>
    %215 = tpu.matmul %212, %213, %cst_75 {dimension_numbers = #tpu.dot_dimension_numbers<[1], [1], [0], [0], [0, 0, 1, 0], [], []>} : vector<16x8xf32>, vector<16x8xf32>, vector<16x16xf32> -> vector<16x16xf32>
    %216 = arith.addf %215, %26 : vector<16x16xf32>
    %cst_76 = arith.constant dense<0xFF800000> : vector<16xf32>
    %217 = vector.multi_reduction <maximumf>, %216, %cst_76 [1] : vector<16x16xf32> to vector<16xf32>
    %218 = vector.shape_cast %217 : vector<16xf32> to vector<16x1xf32>
    %219 = vector.broadcast %218 : vector<16x1xf32> to vector<16x16xf32>
    %220 = arith.subf %216, %219 : vector<16x16xf32>
    %221 = math.exp %220 : vector<16x16xf32>
    %cst_77 = arith.constant dense<0.000000e+00> : vector<16xf32>
    %222 = vector.multi_reduction <add>, %221, %cst_77 [1] : vector<16x16xf32> to vector<16xf32>
    %223 = vector.shape_cast %222 : vector<16xf32> to vector<16x1xf32>
    %224 = tpu.reciprocal %223 {approx = true} : vector<16x1xf32> -> vector<16x1xf32>
    %225 = vector.broadcast %224 : vector<16x1xf32> to vector<16x16xf32>
    %226 = arith.mulf %221, %225 : vector<16x16xf32>
    %cst_78 = arith.constant dense<0.000000e+00> : vector<16x8xf32>
    %227 = tpu.matmul %226, %214, %cst_78 {dimension_numbers = #tpu.dot_dimension_numbers<[1], [0], [0], [1], [0, 0, 1, 1], [], []>} : vector<16x16xf32>, vector<16x8xf32>, vector<16x8xf32> -> vector<16x8xf32>
    %228 = vector.extract_strided_slice %209 {offsets = [0, 8], sizes = [16, 8], strides = [1, 1]} : vector<16x32xf32> to vector<16x8xf32>
    %229 = vector.extract_strided_slice %210 {offsets = [0, 8], sizes = [16, 8], strides = [1, 1]} : vector<16x32xf32> to vector<16x8xf32>
    %230 = vector.extract_strided_slice %211 {offsets = [0, 8], sizes = [16, 8], strides = [1, 1]} : vector<16x32xf32> to vector<16x8xf32>
    %cst_79 = arith.constant dense<0.000000e+00> : vector<16x16xf32>
    %231 = tpu.matmul %228, %229, %cst_79 {dimension_numbers = #tpu.dot_dimension_numbers<[1], [1], [0], [0], [0, 0, 1, 0], [], []>} : vector<16x8xf32>, vector<16x8xf32>, vector<16x16xf32> -> vector<16x16xf32>
    %232 = arith.addf %231, %26 : vector<16x16xf32>
    %cst_80 = arith.constant dense<0xFF800000> : vector<16xf32>
    %233 = vector.multi_reduction <maximumf>, %232, %cst_80 [1] : vector<16x16xf32> to vector<16xf32>
    %234 = vector.shape_cast %233 : vector<16xf32> to vector<16x1xf32>
    %235 = vector.broadcast %234 : vector<16x1xf32> to vector<16x16xf32>
    %236 = arith.subf %232, %235 : vector<16x16xf32>
    %237 = math.exp %236 : vector<16x16xf32>
    %cst_81 = arith.constant dense<0.000000e+00> : vector<16xf32>
    %238 = vector.multi_reduction <add>, %237, %cst_81 [1] : vector<16x16xf32> to vector<16xf32>
    %239 = vector.shape_cast %238 : vector<16xf32> to vector<16x1xf32>
    %240 = tpu.reciprocal %239 {approx = true} : vector<16x1xf32> -> vector<16x1xf32>
    %241 = vector.broadcast %240 : vector<16x1xf32> to vector<16x16xf32>
    %242 = arith.mulf %237, %241 : vector<16x16xf32>
    %cst_82 = arith.constant dense<0.000000e+00> : vector<16x8xf32>
    %243 = tpu.matmul %242, %230, %cst_82 {dimension_numbers = #tpu.dot_dimension_numbers<[1], [0], [0], [1], [0, 0, 1, 1], [], []>} : vector<16x16xf32>, vector<16x8xf32>, vector<16x8xf32> -> vector<16x8xf32>
    %244 = vector.extract_strided_slice %209 {offsets = [0, 16], sizes = [16, 8], strides = [1, 1]} : vector<16x32xf32> to vector<16x8xf32>
    %245 = vector.extract_strided_slice %210 {offsets = [0, 16], sizes = [16, 8], strides = [1, 1]} : vector<16x32xf32> to vector<16x8xf32>
    %246 = vector.extract_strided_slice %211 {offsets = [0, 16], sizes = [16, 8], strides = [1, 1]} : vector<16x32xf32> to vector<16x8xf32>
    %cst_83 = arith.constant dense<0.000000e+00> : vector<16x16xf32>
    %247 = tpu.matmul %244, %245, %cst_83 {dimension_numbers = #tpu.dot_dimension_numbers<[1], [1], [0], [0], [0, 0, 1, 0], [], []>} : vector<16x8xf32>, vector<16x8xf32>, vector<16x16xf32> -> vector<16x16xf32>
    %248 = arith.addf %247, %26 : vector<16x16xf32>
    %cst_84 = arith.constant dense<0xFF800000> : vector<16xf32>
    %249 = vector.multi_reduction <maximumf>, %248, %cst_84 [1] : vector<16x16xf32> to vector<16xf32>
    %250 = vector.shape_cast %249 : vector<16xf32> to vector<16x1xf32>
    %251 = vector.broadcast %250 : vector<16x1xf32> to vector<16x16xf32>
    %252 = arith.subf %248, %251 : vector<16x16xf32>
    %253 = math.exp %252 : vector<16x16xf32>
    %cst_85 = arith.constant dense<0.000000e+00> : vector<16xf32>
    %254 = vector.multi_reduction <add>, %253, %cst_85 [1] : vector<16x16xf32> to vector<16xf32>
    %255 = vector.shape_cast %254 : vector<16xf32> to vector<16x1xf32>
    %256 = tpu.reciprocal %255 {approx = true} : vector<16x1xf32> -> vector<16x1xf32>
    %257 = vector.broadcast %256 : vector<16x1xf32> to vector<16x16xf32>
    %258 = arith.mulf %253, %257 : vector<16x16xf32>
    %cst_86 = arith.constant dense<0.000000e+00> : vector<16x8xf32>
    %259 = tpu.matmul %258, %246, %cst_86 {dimension_numbers = #tpu.dot_dimension_numbers<[1], [0], [0], [1], [0, 0, 1, 1], [], []>} : vector<16x16xf32>, vector<16x8xf32>, vector<16x8xf32> -> vector<16x8xf32>
    %260 = vector.extract_strided_slice %209 {offsets = [0, 24], sizes = [16, 8], strides = [1, 1]} : vector<16x32xf32> to vector<16x8xf32>
    %261 = vector.extract_strided_slice %210 {offsets = [0, 24], sizes = [16, 8], strides = [1, 1]} : vector<16x32xf32> to vector<16x8xf32>
    %262 = vector.extract_strided_slice %211 {offsets = [0, 24], sizes = [16, 8], strides = [1, 1]} : vector<16x32xf32> to vector<16x8xf32>
    %cst_87 = arith.constant dense<0.000000e+00> : vector<16x16xf32>
    %263 = tpu.matmul %260, %261, %cst_87 {dimension_numbers = #tpu.dot_dimension_numbers<[1], [1], [0], [0], [0, 0, 1, 0], [], []>} : vector<16x8xf32>, vector<16x8xf32>, vector<16x16xf32> -> vector<16x16xf32>
    %264 = arith.addf %263, %26 : vector<16x16xf32>
    %cst_88 = arith.constant dense<0xFF800000> : vector<16xf32>
    %265 = vector.multi_reduction <maximumf>, %264, %cst_88 [1] : vector<16x16xf32> to vector<16xf32>
    %266 = vector.shape_cast %265 : vector<16xf32> to vector<16x1xf32>
    %267 = vector.broadcast %266 : vector<16x1xf32> to vector<16x16xf32>
    %268 = arith.subf %264, %267 : vector<16x16xf32>
    %269 = math.exp %268 : vector<16x16xf32>
    %cst_89 = arith.constant dense<0.000000e+00> : vector<16xf32>
    %270 = vector.multi_reduction <add>, %269, %cst_89 [1] : vector<16x16xf32> to vector<16xf32>
    %271 = vector.shape_cast %270 : vector<16xf32> to vector<16x1xf32>
    %272 = tpu.reciprocal %271 {approx = true} : vector<16x1xf32> -> vector<16x1xf32>
    %273 = vector.broadcast %272 : vector<16x1xf32> to vector<16x16xf32>
    %274 = arith.mulf %269, %273 : vector<16x16xf32>
    %cst_90 = arith.constant dense<0.000000e+00> : vector<16x8xf32>
    %275 = tpu.matmul %274, %262, %cst_90 {dimension_numbers = #tpu.dot_dimension_numbers<[1], [0], [0], [1], [0, 0, 1, 1], [], []>} : vector<16x16xf32>, vector<16x8xf32>, vector<16x8xf32> -> vector<16x8xf32>
    %276 = tpu.concatenate %227, %243, %259, %275 in 1 : vector<16x8xf32>, vector<16x8xf32>, vector<16x8xf32>, vector<16x8xf32> -> vector<16x32xf32>
    %cst_91 = arith.constant dense<0.000000e+00> : vector<16x32xf32>
    %277 = tpu.matmul %276, %189, %cst_91 {dimension_numbers = #tpu.dot_dimension_numbers<[1], [0], [0], [1], [0, 0, 1, 1], [], []>} : vector<16x32xf32>, vector<32x32xf32>, vector<16x32xf32> -> vector<16x32xf32>
    %278 = vector.broadcast %197 : vector<1x32xf32> to vector<16x32xf32>
    %279 = arith.addf %277, %278 : vector<16x32xf32>
    %280 = arith.addf %185, %279 : vector<16x32xf32>
    %cst_92 = arith.constant dense<0.000000e+00> : vector<16xf32>
    %281 = vector.multi_reduction <add>, %280, %cst_92 [1] : vector<16x32xf32> to vector<16xf32>
    %282 = vector.shape_cast %281 : vector<16xf32> to vector<16x1xf32>
    %cst_93 = arith.constant 3.200000e+01 : f32
    %283 = vector.broadcast %cst_93 : f32 to vector<16x1xf32>
    %284 = arith.divf %282, %283 : vector<16x1xf32>
    %285 = vector.broadcast %284 : vector<16x1xf32> to vector<16x32xf32>
    %286 = arith.subf %280, %285 : vector<16x32xf32>
    %287 = arith.mulf %286, %286 : vector<16x32xf32>
    %cst_94 = arith.constant dense<0.000000e+00> : vector<16xf32>
    %288 = vector.multi_reduction <add>, %287, %cst_94 [1] : vector<16x32xf32> to vector<16xf32>
    %289 = vector.shape_cast %288 : vector<16xf32> to vector<16x1xf32>
    %cst_95 = arith.constant 3.200000e+01 : f32
    %290 = vector.broadcast %cst_95 : f32 to vector<16x1xf32>
    %291 = arith.divf %289, %290 : vector<16x1xf32>
    %292 = vector.broadcast %284 : vector<16x1xf32> to vector<16x32xf32>
    %293 = arith.subf %280, %292 : vector<16x32xf32>
    %cst_96 = arith.constant 9.99999974E-6 : f32
    %294 = vector.broadcast %cst_96 : f32 to vector<16x1xf32>
    %295 = arith.addf %291, %294 : vector<16x1xf32>
    %296 = math.rsqrt %295 : vector<16x1xf32>
    %297 = vector.broadcast %296 : vector<16x1xf32> to vector<16x32xf32>
    %298 = arith.mulf %293, %297 : vector<16x32xf32>
    %299 = vector.broadcast %198 : vector<1x32xf32> to vector<16x32xf32>
    %300 = arith.mulf %298, %299 : vector<16x32xf32>
    %301 = vector.broadcast %199 : vector<1x32xf32> to vector<16x32xf32>
    %302 = arith.addf %300, %301 : vector<16x32xf32>
    %cst_97 = arith.constant dense<0.000000e+00> : vector<16x64xf32>
    %303 = tpu.matmul %302, %191, %cst_97 {dimension_numbers = #tpu.dot_dimension_numbers<[1], [0], [0], [1], [0, 0, 1, 1], [], []>} : vector<16x32xf32>, vector<32x64xf32>, vector<16x64xf32> -> vector<16x64xf32>
    %304 = vector.broadcast %200 : vector<1x64xf32> to vector<16x64xf32>
    %305 = arith.addf %303, %304 : vector<16x64xf32>
    %cst_98 = arith.constant 5.000000e-01 : f32
    %306 = vector.broadcast %cst_98 : f32 to vector<16x64xf32>
    %307 = arith.mulf %306, %305 : vector<16x64xf32>
    %308 = arith.mulf %305, %305 : vector<16x64xf32>
    %309 = arith.mulf %305, %308 : vector<16x64xf32>
    %cst_99 = arith.constant 4.471500e-02 : f32
    %310 = vector.broadcast %cst_99 : f32 to vector<16x64xf32>
    %311 = arith.mulf %310, %309 : vector<16x64xf32>
    %312 = arith.addf %305, %311 : vector<16x64xf32>
    %cst_100 = arith.constant 0.797884583 : f32
    %313 = vector.broadcast %cst_100 : f32 to vector<16x64xf32>
    %314 = arith.mulf %313, %312 : vector<16x64xf32>
    %315 = math.tanh %314 : vector<16x64xf32>
    %cst_101 = arith.constant 1.000000e+00 : f32
    %316 = vector.broadcast %cst_101 : f32 to vector<16x64xf32>
    %317 = arith.addf %316, %315 : vector<16x64xf32>
    %318 = arith.mulf %307, %317 : vector<16x64xf32>
    %cst_102 = arith.constant dense<0.000000e+00> : vector<16x32xf32>
    %319 = tpu.matmul %318, %193, %cst_102 {dimension_numbers = #tpu.dot_dimension_numbers<[1], [0], [0], [1], [0, 0, 1, 1], [], []>} : vector<16x64xf32>, vector<64x32xf32>, vector<16x32xf32> -> vector<16x32xf32>
    %320 = vector.broadcast %201 : vector<1x32xf32> to vector<16x32xf32>
    %321 = arith.addf %319, %320 : vector<16x32xf32>
    %322 = arith.addf %302, %321 : vector<16x32xf32>
    %cst_103 = arith.constant dense<0.000000e+00> : vector<16xf32>
    %323 = vector.multi_reduction <add>, %322, %cst_103 [1] : vector<16x32xf32> to vector<16xf32>
    %324 = vector.shape_cast %323 : vector<16xf32> to vector<16x1xf32>
    %cst_104 = arith.constant 3.200000e+01 : f32
    %325 = vector.broadcast %cst_104 : f32 to vector<16x1xf32>
    %326 = arith.divf %324, %325 : vector<16x1xf32>
    %327 = vector.broadcast %326 : vector<16x1xf32> to vector<16x32xf32>
    %328 = arith.subf %322, %327 : vector<16x32xf32>
    %329 = arith.mulf %328, %328 : vector<16x32xf32>
    %cst_105 = arith.constant dense<0.000000e+00> : vector<16xf32>
    %330 = vector.multi_reduction <add>, %329, %cst_105 [1] : vector<16x32xf32> to vector<16xf32>
    %331 = vector.shape_cast %330 : vector<16xf32> to vector<16x1xf32>
    %cst_106 = arith.constant 3.200000e+01 : f32
    %332 = vector.broadcast %cst_106 : f32 to vector<16x1xf32>
    %333 = arith.divf %331, %332 : vector<16x1xf32>
    %334 = vector.broadcast %326 : vector<16x1xf32> to vector<16x32xf32>
    %335 = arith.subf %322, %334 : vector<16x32xf32>
    %cst_107 = arith.constant 9.99999974E-6 : f32
    %336 = vector.broadcast %cst_107 : f32 to vector<16x1xf32>
    %337 = arith.addf %333, %336 : vector<16x1xf32>
    %338 = math.rsqrt %337 : vector<16x1xf32>
    %339 = vector.broadcast %338 : vector<16x1xf32> to vector<16x32xf32>
    %340 = arith.mulf %335, %339 : vector<16x32xf32>
    %341 = vector.broadcast %202 : vector<1x32xf32> to vector<16x32xf32>
    %342 = arith.mulf %340, %341 : vector<16x32xf32>
    %343 = vector.broadcast %203 : vector<1x32xf32> to vector<16x32xf32>
    %344 = arith.addf %342, %343 : vector<16x32xf32>
    %c0_108 = arith.constant 0 : index
    %c0_109 = arith.constant 0 : index
    %345 = vector.load %arg3[%c0_108, %c0_109] : memref<10x16xf32, #tpu.memory_space<vmem>>, vector<10x16xf32>
    %cst_110 = arith.constant dense<0.000000e+00> : vector<10x32xf32>
    %346 = tpu.matmul %345, %344, %cst_110 {dimension_numbers = #tpu.dot_dimension_numbers<[1], [0], [0], [1], [0, 0, 1, 1], [], []>} : vector<10x16xf32>, vector<16x32xf32>, vector<10x32xf32> -> vector<10x32xf32>
    %347 = vector.extract_strided_slice %346 {offsets = [0, 0], sizes = [8, 32], strides = [1, 1]} : vector<10x32xf32> to vector<8x32xf32>
    %348 = vector.extract_strided_slice %346 {offsets = [8, 0], sizes = [2, 32], strides = [1, 1]} : vector<10x32xf32> to vector<2x32xf32>
    %c0_111 = arith.constant 0 : index
    %c0_112 = arith.constant 0 : index
    %349 = vector.load %arg9[%c0_111, %c0_112] : memref<32x320xf32, #tpu.memory_space<vmem>>, vector<32x320xf32>
    %350 = vector.extract_strided_slice %349 {offsets = [0, 0], sizes = [32, 128], strides = [1, 1]} : vector<32x320xf32> to vector<32x128xf32>
    %351 = vector.extract_strided_slice %349 {offsets = [0, 128], sizes = [32, 128], strides = [1, 1]} : vector<32x320xf32> to vector<32x128xf32>
    %352 = vector.extract_strided_slice %349 {offsets = [0, 256], sizes = [32, 32], strides = [1, 1]} : vector<32x320xf32> to vector<32x32xf32>
    %353 = vector.extract_strided_slice %349 {offsets = [0, 288], sizes = [32, 32], strides = [1, 1]} : vector<32x320xf32> to vector<32x32xf32>
    %354 = vector.extract_strided_slice %0 {offsets = [2, 0], sizes = [1, 32], strides = [1, 1]} : vector<8x128xf32> to vector<1x32xf32>
    %355 = vector.extract_strided_slice %0 {offsets = [3, 0], sizes = [1, 128], strides = [1, 1]} : vector<8x128xf32> to vector<1x128xf32>
    %356 = vector.extract_strided_slice %0 {offsets = [4, 0], sizes = [1, 32], strides = [1, 1]} : vector<8x128xf32> to vector<1x32xf32>
    %357 = vector.extract_strided_slice %0 {offsets = [5, 0], sizes = [1, 32], strides = [1, 1]} : vector<8x128xf32> to vector<1x32xf32>
    %358 = vector.extract_strided_slice %0 {offsets = [6, 0], sizes = [1, 32], strides = [1, 1]} : vector<8x128xf32> to vector<1x32xf32>
    %359 = vector.extract_strided_slice %0 {offsets = [7, 0], sizes = [1, 128], strides = [1, 1]} : vector<8x128xf32> to vector<1x128xf32>
    %cst_113 = arith.constant dense<0.000000e+00> : vector<2x32xf32>
    %360 = tpu.matmul %348, %352, %cst_113 {dimension_numbers = #tpu.dot_dimension_numbers<[1], [0], [0], [1], [0, 0, 1, 1], [], []>} : vector<2x32xf32>, vector<32x32xf32>, vector<2x32xf32> -> vector<2x32xf32>
    %361 = vector.broadcast %354 : vector<1x32xf32> to vector<2x32xf32>
    %362 = arith.addf %360, %361 : vector<2x32xf32>
    %363 = math.tanh %362 : vector<2x32xf32>
    %cst_114 = arith.constant dense<0.000000e+00> : vector<2x128xf32>
    %364 = tpu.matmul %363, %350, %cst_114 {dimension_numbers = #tpu.dot_dimension_numbers<[1], [0], [0], [1], [0, 0, 1, 1], [], []>} : vector<2x32xf32>, vector<32x128xf32>, vector<2x128xf32> -> vector<2x128xf32>
    %365 = vector.broadcast %355 : vector<1x128xf32> to vector<2x128xf32>
    %366 = arith.addf %364, %365 : vector<2x128xf32>
    %cst_115 = arith.constant dense<0.000000e+00> : vector<8x32xf32>
    %367 = tpu.matmul %347, %353, %cst_115 {dimension_numbers = #tpu.dot_dimension_numbers<[1], [0], [0], [1], [0, 0, 1, 1], [], []>} : vector<8x32xf32>, vector<32x32xf32>, vector<8x32xf32> -> vector<8x32xf32>
    %368 = vector.broadcast %356 : vector<1x32xf32> to vector<8x32xf32>
    %369 = arith.addf %367, %368 : vector<8x32xf32>
    %cst_116 = arith.constant 5.000000e-01 : f32
    %370 = vector.broadcast %cst_116 : f32 to vector<8x32xf32>
    %371 = arith.mulf %370, %369 : vector<8x32xf32>
    %372 = arith.mulf %369, %369 : vector<8x32xf32>
    %373 = arith.mulf %369, %372 : vector<8x32xf32>
    %cst_117 = arith.constant 4.471500e-02 : f32
    %374 = vector.broadcast %cst_117 : f32 to vector<8x32xf32>
    %375 = arith.mulf %374, %373 : vector<8x32xf32>
    %376 = arith.addf %369, %375 : vector<8x32xf32>
    %cst_118 = arith.constant 0.797884583 : f32
    %377 = vector.broadcast %cst_118 : f32 to vector<8x32xf32>
    %378 = arith.mulf %377, %376 : vector<8x32xf32>
    %379 = math.tanh %378 : vector<8x32xf32>
    %cst_119 = arith.constant 1.000000e+00 : f32
    %380 = vector.broadcast %cst_119 : f32 to vector<8x32xf32>
    %381 = arith.addf %380, %379 : vector<8x32xf32>
    %382 = arith.mulf %371, %381 : vector<8x32xf32>
    %cst_120 = arith.constant dense<0.000000e+00> : vector<8xf32>
    %383 = vector.multi_reduction <add>, %382, %cst_120 [1] : vector<8x32xf32> to vector<8xf32>
    %384 = vector.shape_cast %383 : vector<8xf32> to vector<8x1xf32>
    %cst_121 = arith.constant 3.200000e+01 : f32
    %385 = vector.broadcast %cst_121 : f32 to vector<8x1xf32>
    %386 = arith.divf %384, %385 : vector<8x1xf32>
    %387 = vector.broadcast %386 : vector<8x1xf32> to vector<8x32xf32>
    %388 = arith.subf %382, %387 : vector<8x32xf32>
    %389 = arith.mulf %388, %388 : vector<8x32xf32>
    %cst_122 = arith.constant dense<0.000000e+00> : vector<8xf32>
    %390 = vector.multi_reduction <add>, %389, %cst_122 [1] : vector<8x32xf32> to vector<8xf32>
    %391 = vector.shape_cast %390 : vector<8xf32> to vector<8x1xf32>
    %cst_123 = arith.constant 3.200000e+01 : f32
    %392 = vector.broadcast %cst_123 : f32 to vector<8x1xf32>
    %393 = arith.divf %391, %392 : vector<8x1xf32>
    %394 = vector.broadcast %386 : vector<8x1xf32> to vector<8x32xf32>
    %395 = arith.subf %382, %394 : vector<8x32xf32>
    %cst_124 = arith.constant 9.99999974E-6 : f32
    %396 = vector.broadcast %cst_124 : f32 to vector<8x1xf32>
    %397 = arith.addf %393, %396 : vector<8x1xf32>
    %398 = math.rsqrt %397 : vector<8x1xf32>
    %399 = vector.broadcast %398 : vector<8x1xf32> to vector<8x32xf32>
    %400 = arith.mulf %395, %399 : vector<8x32xf32>
    %401 = vector.broadcast %357 : vector<1x32xf32> to vector<8x32xf32>
    %402 = arith.mulf %400, %401 : vector<8x32xf32>
    %403 = vector.broadcast %358 : vector<1x32xf32> to vector<8x32xf32>
    %404 = arith.addf %402, %403 : vector<8x32xf32>
    %cst_125 = arith.constant dense<0.000000e+00> : vector<8x128xf32>
    %405 = tpu.matmul %404, %351, %cst_125 {dimension_numbers = #tpu.dot_dimension_numbers<[1], [0], [0], [1], [0, 0, 1, 1], [], []>} : vector<8x32xf32>, vector<32x128xf32>, vector<8x128xf32> -> vector<8x128xf32>
    %406 = vector.broadcast %359 : vector<1x128xf32> to vector<8x128xf32>
    %407 = arith.addf %405, %406 : vector<8x128xf32>
    %408 = tpu.concatenate %407, %366 in 0 : vector<8x128xf32>, vector<2x128xf32> -> vector<10x128xf32>
    %c0_126 = arith.constant 0 : index
    %c0_127 = arith.constant 0 : index
    %409 = vector.load %arg11[%c0_126, %c0_127] : memref<10x128xf32, #tpu.memory_space<vmem>>, vector<10x128xf32>
    tpu.vector_store %arg11[%c0_126, %c0_127], %408 {strides = array<i32>} : memref<10x128xf32, #tpu.memory_space<vmem>>, vector<10x128xf32>,
    return
  }
  func.func @transform_0(%arg0: i32) -> (i32, i32) {
    %c0_i32 = arith.constant 0 : i32
    %c0_i32_0 = arith.constant 0 : i32
    %c0_i32_1 = arith.constant 0 : i32
    return %c0_i32, %c0_i32_0 : i32, i32
  }
  func.func @transform_1(%arg0: i32) -> (i32, i32) {
    %c0_i32 = arith.constant 0 : i32
    %c0_i32_0 = arith.constant 0 : i32
    %c0_i32_1 = arith.constant 0 : i32
    return %c0_i32, %c0_i32_0 : i32, i32
  }
  func.func @transform_2(%arg0: i32) -> (i32, i32) {
    %c0_i32 = arith.constant 0 : i32
    %c0_i32_0 = arith.constant 0 : i32
    %c0_i32_1 = arith.constant 0 : i32
    return %c0_i32, %c0_i32_0 : i32, i32
  }
  func.func @transform_3(%arg0: i32) -> (i32, i32, i32) {
    %c0_i32 = arith.constant 0 : i32
    %c0_i32_0 = arith.constant 0 : i32
    %c0_i32_1 = arith.constant 0 : i32
    %c0_i32_2 = arith.constant 0 : i32
    return %c0_i32, %c0_i32_0, %c0_i32_1 : i32, i32, i32
  }
  func.func @transform_4(%arg0: i32) -> (i32, i32, i32) {
    %c0_i32 = arith.constant 0 : i32
    %c0_i32_0 = arith.constant 0 : i32
    %c0_i32_1 = arith.constant 0 : i32
    %c0_i32_2 = arith.constant 0 : i32
    return %c0_i32, %c0_i32_0, %c0_i32_1 : i32, i32, i32
  }
  func.func @transform_5(%arg0: i32) -> (i32, i32, i32) {
    %c0_i32 = arith.constant 0 : i32
    %c0_i32_0 = arith.constant 0 : i32
    %c0_i32_1 = arith.constant 0 : i32
    %c0_i32_2 = arith.constant 0 : i32
    return %c0_i32, %c0_i32_0, %c0_i32_1 : i32, i32, i32
  }
  func.func @transform_6(%arg0: i32) -> (i32, i32, i32) {
    %c0_i32 = arith.constant 0 : i32
    %c0_i32_0 = arith.constant 0 : i32
    %c0_i32_1 = arith.constant 0 : i32
    %c0_i32_2 = arith.constant 0 : i32
    return %c0_i32, %c0_i32_0, %c0_i32_1 : i32, i32, i32
  }
  func.func @transform_7(%arg0: i32) -> (i32, i32, i32) {
    %c0_i32 = arith.constant 0 : i32
    %c0_i32_0 = arith.constant 0 : i32
    %c0_i32_1 = arith.constant 0 : i32
    %c0_i32_2 = arith.constant 0 : i32
    return %c0_i32, %c0_i32_0, %c0_i32_1 : i32, i32, i32
  }
  func.func @transform_8(%arg0: i32) -> (i32, i32) {
    %c0_i32 = arith.constant 0 : i32
    %c0_i32_0 = arith.constant 0 : i32
    %c0_i32_1 = arith.constant 0 : i32
    return %c0_i32, %c0_i32_0 : i32, i32
  }
  func.func @transform_9(%arg0: i32) -> (i32, i32) {
    %c0_i32 = arith.constant 0 : i32
    %c0_i32_0 = arith.constant 0 : i32
    %c0_i32_1 = arith.constant 0 : i32
    return %c0_i32, %c0_i32_0 : i32, i32
  }
  func.func @transform_10(%arg0: i32) -> (i32, i32) {
    %c0_i32 = arith.constant 0 : i32
    %c0_i32_0 = arith.constant 0 : i32
    %c0_i32_1 = arith.constant 0 : i32
    return %c0_i32, %c0_i32_0 : i32, i32
  }
}

</mosaic_0001>

<llo_original>
// kernel: bert_pallas.1
$region0: #{bert_pallas.1}
  #allocation0 [shape = 'u32[]', space=smem, size = 0x4, offset = 0x4, fixed_abs, tag = 'smem constant byte address 0x4 - core index']
  #allocation1 [shape = 'u32[144,128]{1,0:T(1,128)}', space=vmem, size = 0x12000, scoped, tag = 'internal scratch']
  %s0 = inlined_call_operand.vmem [shape: f32[16,32], index: 0, kind: input, shape index: {}]
  %s1 = inlined_call_operand.vmem [shape: f32[16,16], index: 1, kind: input, shape index: {}]
  %s2 = inlined_call_operand.vmem [shape: f32[10,16], index: 2, kind: input, shape index: {}]
  %s3 = inlined_call_operand.vmem [shape: f32[2,32,96], index: 3, kind: input, shape index: {}]
  %s4 = inlined_call_operand.vmem [shape: f32[2,32,32], index: 4, kind: input, shape index: {}]
  %s5 = inlined_call_operand.vmem [shape: f32[2,32,64], index: 5, kind: input, shape index: {}]
  %s6 = inlined_call_operand.vmem [shape: f32[2,64,32], index: 6, kind: input, shape index: {}]
  %s7 = inlined_call_operand.vmem [shape: f32[2,8,96], index: 7, kind: input, shape index: {}]
  %s8 = inlined_call_operand.vmem [shape: f32[32,320], index: 8, kind: input, shape index: {}]
  %s9 = inlined_call_operand.vmem [shape: f32[8,128], index: 9, kind: input, shape index: {}]
  %s10 = inlined_call_operand.vmem [shape: f32[10,128], index: 10, kind: output, shape index: {}]
  %s11 = sld [smem:[#allocation0]]
  $region50: #{bert_pallas.1} parent=0
    _
  %s13 = ssub.s32 1, %s11
  %s14 = scalar_select 0, %s13, %s11
  // Predicated region
  $region2: #{bert_pallas.1} parent=0 // pred_check
    _
  $region3: #{bert_pallas.1} parent=0 // pred_check_branch
    %16 = sbr.rel (0) target = $region5
  $region4: #{bert_pallas.1} parent=0 // pred_region
    _
  $region5: #{bert_pallas.1} parent=0 // pred_fallthru
    _
  // Predicated region
  $region6: #{bert_pallas.1} parent=0 // pred_check
    _
  $region7: #{bert_pallas.1} parent=0 // pred_check_branch
    %18 = sbr.rel (0) target = $region9
  $region8: #{bert_pallas.1} parent=0 // pred_region
    _
  $region9: #{bert_pallas.1} parent=0 // pred_fallthru
    _
  // Predicated region
  $region10: #{bert_pallas.1} parent=0 // pred_check
    _
  $region11: #{bert_pallas.1} parent=0 // pred_check_branch
    %20 = sbr.rel (0) target = $region13
  $region12: #{bert_pallas.1} parent=0 // pred_region
    _
  $region13: #{bert_pallas.1} parent=0 // pred_fallthru
    _
  // Predicated region
  $region14: #{bert_pallas.1} parent=0 // pred_check
    _
  $region15: #{bert_pallas.1} parent=0 // pred_check_branch
    %22 = sbr.rel (0) target = $region17
  $region16: #{bert_pallas.1} parent=0 // pred_region
    _
  $region17: #{bert_pallas.1} parent=0 // pred_fallthru
    _
  // Predicated region
  $region18: #{bert_pallas.1} parent=0 // pred_check
    _
  $region19: #{bert_pallas.1} parent=0 // pred_check_branch
    %24 = sbr.rel (0) target = $region21
  $region20: #{bert_pallas.1} parent=0 // pred_region
    _
  $region21: #{bert_pallas.1} parent=0 // pred_fallthru
    _
  // Predicated region
  $region22: #{bert_pallas.1} parent=0 // pred_check
    _
  $region23: #{bert_pallas.1} parent=0 // pred_check_branch
    %26 = sbr.rel (0) target = $region25
  $region24: #{bert_pallas.1} parent=0 // pred_region
    _
  $region25: #{bert_pallas.1} parent=0 // pred_fallthru
    _
  // Predicated region
  $region26: #{bert_pallas.1} parent=0 // pred_check
    _
  $region27: #{bert_pallas.1} parent=0 // pred_check_branch
    %28 = sbr.rel (0) target = $region29
  $region28: #{bert_pallas.1} parent=0 // pred_region
    _
  $region29: #{bert_pallas.1} parent=0 // pred_fallthru
    _
  // Predicated region
  $region30: #{bert_pallas.1} parent=0 // pred_check
    _
  $region31: #{bert_pallas.1} parent=0 // pred_check_branch
    %30 = sbr.rel (0) target = $region33
  $region32: #{bert_pallas.1} parent=0 // pred_region
    _
  $region33: #{bert_pallas.1} parent=0 // pred_fallthru
    _
  // Predicated region
  $region34: #{bert_pallas.1} parent=0 // pred_check
    _
  $region35: #{bert_pallas.1} parent=0 // pred_check_branch
    %32 = sbr.rel (0) target = $region37
  $region36: #{bert_pallas.1} parent=0 // pred_region
    _
  $region37: #{bert_pallas.1} parent=0 // pred_fallthru
    _
  // Predicated region
  $region38: #{bert_pallas.1} parent=0 // pred_check
    _
  $region39: #{bert_pallas.1} parent=0 // pred_check_branch
    %34 = sbr.rel (0) target = $region41
  $region40: #{bert_pallas.1} parent=0 // pred_region
    _
  $region41: #{bert_pallas.1} parent=0 // pred_fallthru
    _
  %v35 = vld [vmem:[%s9] sm:$0xff]
  %v36 = vld [vmem:[%s0] sm:$0xff]
  %v37 = vld [vmem:[%s0 + $0x8] sm:$0xff]
  %vm38 = vcmask 261120
  %v39 = vsel %vm38, %v36, 0.0
  %40 = vadd.xlane.f32.xlu0 %v39
  %v41 = vpop.xlane.xlu0 %40
  %v42 = vsel %vm38, %v37, 0.0
  %43 = vadd.xlane.f32.xlu0 %v42
  %v44 = vpop.xlane.xlu0 %43
  %v45 = vrcp.pop 32.0
  %v46 = vmul.f32 %v41, %v45
  %v47 = vmul.f32 %v44, %v45
  %v48 = vsub.f32 %v36, %v46
  %v49 = vsub.f32 %v37, %v47
  %v50 = vmul.f32 %v48, %v48
  %v51 = vmul.f32 %v49, %v49
  %v52 = vsel %vm38, %v50, 0.0
  %53 = vadd.xlane.f32.xlu0 %v52
  %v54 = vpop.xlane.xlu0 %53
  %v55 = vsel %vm38, %v51, 0.0
  %56 = vadd.xlane.f32.xlu0 %v55
  %v57 = vpop.xlane.xlu0 %56
  %v58 = vmul.f32 %v54, %v45
  %v59 = vmul.f32 %v57, %v45
  %v60 = vadd.f32 %v58, 1e-05
  %v61 = vadd.f32 %v59, 1e-05
  %v62 = vrsqrt.pop %v60
  %v63 = vrsqrt.pop %v61
  %v64 = vmul.f32 %v48, %v62
  %v65 = vmul.f32 %v49, %v63
  %v66 = vlaneseq
  %v67 = vshrl.u32 %v66, 7
  %v68 = vsub.s32 0, %v67
  %v69 = vrot.slane %v35, %v68
  %v70 = vmul.f32 %v64, %v69
  %v71 = vmul.f32 %v65, %v69
  %v72 = vlaneseq
  %v73 = vshrl.u32 %v72, 7
  %v74 = vsub.s32 1, %v73
  %v75 = vrot.slane %v35, %v74
  %v76 = vadd.f32 %v70, %v75
  %v77 = vadd.f32 %v71, %v75
  %v78 = vld [vmem:[%s1] sm:$0xff]
  %v79 = vld [vmem:[%s1 + $0x8] sm:$0xff]
  %v80 = vld [vmem:[%s3] sm:$0xff]
  %v81 = vld [vmem:[%s3 + $0x8] sm:$0xff]
  %v82 = vld [vmem:[%s3 + $0x10] sm:$0xff]
  %v83 = vld [vmem:[%s3 + $0x18] sm:$0xff]
  %v84 = vld [vmem:[%s4] sm:$0xff]
  %v85 = vld [vmem:[%s4 + $0x8] sm:$0xff]
  %v86 = vld [vmem:[%s4 + $0x10] sm:$0xff]
  %v87 = vld [vmem:[%s4 + $0x18] sm:$0xff]
  %v88 = vld [vmem:[%s5] sm:$0xff]
  %v89 = vld [vmem:[%s5 + $0x8] sm:$0xff]
  %v90 = vld [vmem:[%s5 + $0x10] sm:$0xff]
  %v91 = vld [vmem:[%s5 + $0x18] sm:$0xff]
  %v92 = vld [vmem:[%s6] sm:$0xff]
  %v93 = vld [vmem:[%s6 + $0x8] sm:$0xff]
  %v94 = vld [vmem:[%s6 + $0x10] sm:$0xff]
  %v95 = vld [vmem:[%s6 + $0x18] sm:$0xff]
  %v96 = vld [vmem:[%s6 + $0x20] sm:$0xff]
  %v97 = vld [vmem:[%s6 + $0x28] sm:$0xff]
  %v98 = vld [vmem:[%s6 + $0x30] sm:$0xff]
  %v99 = vld [vmem:[%s6 + $0x38] sm:$0xff]
  %v100 = vld [vmem:[%s7] sm:$0xff]
  %v101 = vlaneseq
  %v102 = vshrl.u32 %v101, 7
  %v103 = vsub.s32 0, %v102
  %v104 = vrot.slane %v100, %v103
  %v106 = vsel %vm38, %v76, 0
  %v109 = vsel %vm38, %v77, 0
  %111 = vmatprep.subr.mxu0 0.0
  %112 = vmatpush1.msra.mxu0 0.0
  %113 = vmatprep.subr.mxu0 0.0
  %114 = vmatpush1.msra.mxu0 0.0
  %115 = vmatprep.subr.mxu0 0.0
  %116 = vmatpush1.msra.mxu0 0.0
  %117 = vmatprep.subr.mxu0 0.0
  %118 = vmatpush1.msra.mxu0 0.0
  %119 = vmatprep.subr.mxu0 0.0
  %120 = vmatpush1.msra.mxu0 0.0
  %121 = vmatprep.subr.mxu0 0.0
  %122 = vmatpush1.msra.mxu0 0.0
  %123 = vmatprep.subr.mxu0 0.0
  %124 = vmatpush1.msra.mxu0 0.0
  %125 = vmatprep.subr.mxu0 0.0
  %126 = vmatpush1.msra.mxu0 0.0
  %127 = vmatprep.subr.mxu0 0.0
  %128 = vmatpush1.msra.mxu0 0.0
  %129 = vmatprep.subr.mxu0 0.0
  %130 = vmatpush1.msra.mxu0 0.0
  %131 = vmatprep.subr.mxu0 0.0
  %132 = vmatpush1.msra.mxu0 0.0
  %133 = vmatprep.subr.mxu0 0.0
  %134 = vmatpush1.msra.mxu0 0.0
  %135 = vmatprep.subr.mxu0 0.0
  %136 = vmatpush1.msra.mxu0 %v83
  %137 = vmatprep.subr.mxu0 0.0
  %138 = vmatpush1.msra.mxu0 %v82
  %139 = vmatprep.subr.mxu0 0.0
  %140 = vmatpush1.msra.mxu0 %v81
  %141 = vmatprep.subr.mxu0 0.0
  %142 = vmatpush1.msra.mxu0 %v80
  %143 = vmatprep.subr.mxu0 0.0
  %144 = vmatpush2.msra.mxu0 0.0
  %145 = vmatprep.subr.mxu0 0.0
  %146 = vmatpush2.msra.mxu0 0.0
  %147 = vmatprep.subr.mxu0 0.0
  %148 = vmatpush2.msra.mxu0 0.0
  %149 = vmatprep.subr.mxu0 0.0
  %150 = vmatpush2.msra.mxu0 0.0
  %151 = vmatprep.subr.mxu0 0.0
  %152 = vmatpush2.msra.mxu0 0.0
  %153 = vmatprep.subr.mxu0 0.0
  %154 = vmatpush2.msra.mxu0 0.0
  %155 = vmatprep.subr.mxu0 0.0
  %156 = vmatpush2.msra.mxu0 0.0
  %157 = vmatprep.subr.mxu0 0.0
  %158 = vmatpush2.msra.mxu0 0.0
  %159 = vmatprep.subr.mxu0 0.0
  %160 = vmatpush2.msra.mxu0 0.0
  %161 = vmatprep.subr.mxu0 0.0
  %162 = vmatpush2.msra.mxu0 0.0
  %163 = vmatprep.subr.mxu0 0.0
  %164 = vmatpush2.msra.mxu0 0.0
  %165 = vmatprep.subr.mxu0 0.0
  %166 = vmatpush2.msra.mxu0 0.0
  %167 = vmatprep.subr.mxu0 0.0
  %168 = vmatpush2.msra.mxu0 0.0
  %169 = vmatprep.subr.mxu0 0.0
  %170 = vmatpush2.msra.mxu0 0.0
  %171 = vmatprep.subr.mxu0 0.0
  %172 = vmatpush2.msra.mxu0 0.0
  %173 = vmatprep.subr.mxu0 0.0
  %174 = vmatpush2.msra.mxu0 0.0
  %175 = vmatprep.mubr.f32.mxu0 0.0
  %176 = vmatmul.mubr.f32.gmra.mxu0 %v106
  %v177 = vpop.f32.mrf.mxu0
  %v178 = vadd.f32 %v104, %v177
  %v179 = vpop.f32.mrf.mxu0
  %180 = vmatprep.mubr.f32.mxu0 0.0
  %181 = vmatmul.mubr.f32.gmra.mxu0 %v109
  %v182 = vpop.f32.mrf.mxu0
  %v183 = vadd.f32 %v104, %v182
  %v184 = vpop.f32.mrf.mxu0
  %185 = vdwg.mxu0
  %v186 = vmul.f32 %v178, 0.35355338
  %v187 = vmul.f32 %v183, 0.35355338
  %190 = vrot.lane.b32.xlu0 %v178, 96
  %v191 = vpop.permute.xlu0 %190
  %192 = vrot.lane.b32.xlu0 %v183, 96
  %v193 = vpop.permute.xlu0 %192
  %vm194 = vcmask 64512
  %v196 = vsel %vm194, %v186, 0
  %v199 = vsel %vm194, %v187, 0
  %v201 = vsel %vm194, %v191, 0
  %v203 = vsel %vm194, %v193, 0
  %205 = vmatprep.subr.mxu0 0.0
  %206 = vmatpush1.xpose.msra.mxu0 0.0
  %207 = vmatprep.subr.mxu0 0.0
  %208 = vmatpush1.xpose.msra.mxu0 0.0
  %209 = vmatprep.subr.mxu0 0.0
  %210 = vmatpush1.xpose.msra.mxu0 0.0
  %211 = vmatprep.subr.mxu0 0.0
  %212 = vmatpush1.xpose.msra.mxu0 0.0
  %213 = vmatprep.subr.mxu0 0.0
  %214 = vmatpush1.xpose.msra.mxu0 0.0
  %215 = vmatprep.subr.mxu0 0.0
  %216 = vmatpush1.xpose.msra.mxu0 0.0
  %217 = vmatprep.subr.mxu0 0.0
  %218 = vmatpush1.xpose.msra.mxu0 0.0
  %219 = vmatprep.subr.mxu0 0.0
  %220 = vmatpush1.xpose.msra.mxu0 0.0
  %221 = vmatprep.subr.mxu0 0.0
  %222 = vmatpush1.xpose.msra.mxu0 0.0
  %223 = vmatprep.subr.mxu0 0.0
  %224 = vmatpush1.xpose.msra.mxu0 0.0
  %225 = vmatprep.subr.mxu0 0.0
  %226 = vmatpush1.xpose.msra.mxu0 0.0
  %227 = vmatprep.subr.mxu0 0.0
  %228 = vmatpush1.xpose.msra.mxu0 0.0
  %229 = vmatprep.subr.mxu0 0.0
  %230 = vmatpush1.xpose.msra.mxu0 0.0
  %231 = vmatprep.subr.mxu0 0.0
  %232 = vmatpush1.xpose.msra.mxu0 0.0
  %233 = vmatprep.subr.mxu0 0.0
  %234 = vmatpush1.xpose.msra.mxu0 %v203
  %235 = vmatprep.subr.mxu0 0.0
  %236 = vmatpush1.xpose.msra.mxu0 %v201
  %237 = vmatprep.subr.mxu0 0.0
  %238 = vmatpush2.xpose.msra.mxu0 0.0
  %239 = vmatprep.subr.mxu0 0.0
  %240 = vmatpush2.xpose.msra.mxu0 0.0
  %241 = vmatprep.subr.mxu0 0.0
  %242 = vmatpush2.xpose.msra.mxu0 0.0
  %243 = vmatprep.subr.mxu0 0.0
  %244 = vmatpush2.xpose.msra.mxu0 0.0
  %245 = vmatprep.subr.mxu0 0.0
  %246 = vmatpush2.xpose.msra.mxu0 0.0
  %247 = vmatprep.subr.mxu0 0.0
  %248 = vmatpush2.xpose.msra.mxu0 0.0
  %249 = vmatprep.subr.mxu0 0.0
  %250 = vmatpush2.xpose.msra.mxu0 0.0
  %251 = vmatprep.subr.mxu0 0.0
  %252 = vmatpush2.xpose.msra.mxu0 0.0
  %253 = vmatprep.subr.mxu0 0.0
  %254 = vmatpush2.xpose.msra.mxu0 0.0
  %255 = vmatprep.subr.mxu0 0.0
  %256 = vmatpush2.xpose.msra.mxu0 0.0
  %257 = vmatprep.subr.mxu0 0.0
  %258 = vmatpush2.xpose.msra.mxu0 0.0
  %259 = vmatprep.subr.mxu0 0.0
  %260 = vmatpush2.xpose.msra.mxu0 0.0
  %261 = vmatprep.subr.mxu0 0.0
  %262 = vmatpush2.xpose.msra.mxu0 0.0
  %263 = vmatprep.subr.mxu0 0.0
  %264 = vmatpush2.xpose.msra.mxu0 0.0
  %265 = vmatprep.subr.mxu0 0.0
  %266 = vmatpush2.xpose.msra.mxu0 0.0
  %267 = vmatprep.subr.mxu0 0.0
  %268 = vmatpush2.xpose.msra.mxu0 0.0
  %269 = vmatprep.mubr.f32.mxu0 0.0
  %270 = vmatmul.mubr.f32.gmra.mxu0 %v196
  %v271 = vpop.f32.mrf.mxu0
  %v272 = vadd.f32 %v78, %v271
  %v273 = vpop.f32.mrf.mxu0
  %274 = vmatprep.mubr.f32.mxu0 0.0
  %275 = vmatmul.mubr.f32.gmra.mxu0 %v199
  %v276 = vpop.f32.mrf.mxu0
  %v277 = vadd.f32 %v79, %v276
  %v278 = vpop.f32.mrf.mxu0
  %279 = vdwg.mxu0
  %vm280 = vcmask 130048
  %v281 = vsel %vm280, %v272, -inf
  %282 = vmax.xlane.f32.xlu0 %v281
  %v283 = vpop.xlane.xlu0 %282
  %v284 = vsel %vm280, %v277, -inf
  %285 = vmax.xlane.f32.xlu0 %v284
  %v286 = vpop.xlane.xlu0 %285
  %v287 = vsub.f32 %v272, %v283
  %v288 = vsub.f32 %v277, %v286
  %v289 = vmul.f32 %v287, 1.442695
  %v290 = vpow.pop %v289
  %v291 = vmul.f32 %v288, 1.442695
  %v292 = vpow.pop %v291
  %v293 = vsel %vm280, %v290, 0.0
  %294 = vadd.xlane.f32.xlu0 %v293
  %v295 = vpop.xlane.xlu0 %294
  %v296 = vsel %vm280, %v292, 0.0
  %297 = vadd.xlane.f32.xlu0 %v296
  %v298 = vpop.xlane.xlu0 %297
  %v299 = vrcp.pop %v295
  %v300 = vrcp.pop %v298
  %v301 = vmul.f32 %v290, %v299
  %v302 = vmul.f32 %v292, %v300
  %303 = vrot.lane.b32.xlu0 %v178, 64
  %v304 = vpop.permute.xlu0 %303
  %305 = vrot.lane.b32.xlu0 %v183, 64
  %v306 = vpop.permute.xlu0 %305
  %v310 = vsel %vm280, %v301, 0
  %v313 = vsel %vm280, %v302, 0
  %315 = vmatprep.subr.mxu0 0.0
  %316 = vmatpush1.msra.mxu0 0.0
  %317 = vmatprep.subr.mxu0 0.0
  %318 = vmatpush1.msra.mxu0 0.0
  %319 = vmatprep.subr.mxu0 0.0
  %320 = vmatpush1.msra.mxu0 0.0
  %321 = vmatprep.subr.mxu0 0.0
  %322 = vmatpush1.msra.mxu0 0.0
  %323 = vmatprep.subr.mxu0 0.0
  %324 = vmatpush1.msra.mxu0 0.0
  %325 = vmatprep.subr.mxu0 0.0
  %326 = vmatpush1.msra.mxu0 0.0
  %327 = vmatprep.subr.mxu0 0.0
  %328 = vmatpush1.msra.mxu0 0.0
  %329 = vmatprep.subr.mxu0 0.0
  %330 = vmatpush1.msra.mxu0 0.0
  %331 = vmatprep.subr.mxu0 0.0
  %332 = vmatpush1.msra.mxu0 0.0
  %333 = vmatprep.subr.mxu0 0.0
  %334 = vmatpush1.msra.mxu0 0.0
  %335 = vmatprep.subr.mxu0 0.0
  %336 = vmatpush1.msra.mxu0 0.0
  %337 = vmatprep.subr.mxu0 0.0
  %338 = vmatpush1.msra.mxu0 0.0
  %339 = vmatprep.subr.mxu0 0.0
  %340 = vmatpush1.msra.mxu0 0.0
  %341 = vmatprep.subr.mxu0 0.0
  %342 = vmatpush1.msra.mxu0 0.0
  %343 = vmatprep.subr.mxu0 0.0
  %344 = vmatpush1.msra.mxu0 %v306
  %345 = vmatprep.subr.mxu0 0.0
  %346 = vmatpush1.msra.mxu0 %v304
  %347 = vmatprep.subr.mxu0 0.0
  %348 = vmatpush2.msra.mxu0 0.0
  %349 = vmatprep.subr.mxu0 0.0
  %350 = vmatpush2.msra.mxu0 0.0
  %351 = vmatprep.subr.mxu0 0.0
  %352 = vmatpush2.msra.mxu0 0.0
  %353 = vmatprep.subr.mxu0 0.0
  %354 = vmatpush2.msra.mxu0 0.0
  %355 = vmatprep.subr.mxu0 0.0
  %356 = vmatpush2.msra.mxu0 0.0
  %357 = vmatprep.subr.mxu0 0.0
  %358 = vmatpush2.msra.mxu0 0.0
  %359 = vmatprep.subr.mxu0 0.0
  %360 = vmatpush2.msra.mxu0 0.0
  %361 = vmatprep.subr.mxu0 0.0
  %362 = vmatpush2.msra.mxu0 0.0
  %363 = vmatprep.subr.mxu0 0.0
  %364 = vmatpush2.msra.mxu0 0.0
  %365 = vmatprep.subr.mxu0 0.0
  %366 = vmatpush2.msra.mxu0 0.0
  %367 = vmatprep.subr.mxu0 0.0
  %368 = vmatpush2.msra.mxu0 0.0
  %369 = vmatprep.subr.mxu0 0.0
  %370 = vmatpush2.msra.mxu0 0.0
  %371 = vmatprep.subr.mxu0 0.0
  %372 = vmatpush2.msra.mxu0 0.0
  %373 = vmatprep.subr.mxu0 0.0
  %374 = vmatpush2.msra.mxu0 0.0
  %375 = vmatprep.subr.mxu0 0.0
  %376 = vmatpush2.msra.mxu0 0.0
  %377 = vmatprep.subr.mxu0 0.0
  %378 = vmatpush2.msra.mxu0 0.0
  %379 = vmatprep.mubr.f32.mxu0 0.0
  %380 = vmatmul.mubr.f32.gmra.mxu0 %v310
  %v381 = vpop.f32.mrf.mxu0
  %v382 = vadd.f32 0.0, %v381
  %v383 = vpop.f32.mrf.mxu0
  %384 = vmatprep.mubr.f32.mxu0 0.0
  %385 = vmatmul.mubr.f32.gmra.mxu0 %v313
  %v386 = vpop.f32.mrf.mxu0
  %v387 = vadd.f32 0.0, %v386
  %v388 = vpop.f32.mrf.mxu0
  %389 = vdwg.mxu0
  %390 = vrot.lane.b32.xlu0 %v186, 120
  %v391 = vpop.permute.xlu0 %390
  %392 = vrot.lane.b32.xlu0 %v187, 120
  %v393 = vpop.permute.xlu0 %392
  %394 = vrot.lane.b32.xlu0 %v178, 88
  %v395 = vpop.permute.xlu0 %394
  %396 = vrot.lane.b32.xlu0 %v183, 88
  %v397 = vpop.permute.xlu0 %396
  %v398 = vsel %vm194, %v391, 0
  %v400 = vsel %vm194, %v393, 0
  %v402 = vsel %vm194, %v395, 0
  %v404 = vsel %vm194, %v397, 0
  %406 = vmatprep.subr.mxu0 0.0
  %407 = vmatpush1.xpose.msra.mxu0 0.0
  %408 = vmatprep.subr.mxu0 0.0
  %409 = vmatpush1.xpose.msra.mxu0 0.0
  %410 = vmatprep.subr.mxu0 0.0
  %411 = vmatpush1.xpose.msra.mxu0 0.0
  %412 = vmatprep.subr.mxu0 0.0
  %413 = vmatpush1.xpose.msra.mxu0 0.0
  %414 = vmatprep.subr.mxu0 0.0
  %415 = vmatpush1.xpose.msra.mxu0 0.0
  %416 = vmatprep.subr.mxu0 0.0
  %417 = vmatpush1.xpose.msra.mxu0 0.0
  %418 = vmatprep.subr.mxu0 0.0
  %419 = vmatpush1.xpose.msra.mxu0 0.0
  %420 = vmatprep.subr.mxu0 0.0
  %421 = vmatpush1.xpose.msra.mxu0 0.0
  %422 = vmatprep.subr.mxu0 0.0
  %423 = vmatpush1.xpose.msra.mxu0 0.0
  %424 = vmatprep.subr.mxu0 0.0
  %425 = vmatpush1.xpose.msra.mxu0 0.0
  %426 = vmatprep.subr.mxu0 0.0
  %427 = vmatpush1.xpose.msra.mxu0 0.0
  %428 = vmatprep.subr.mxu0 0.0
  %429 = vmatpush1.xpose.msra.mxu0 0.0
  %430 = vmatprep.subr.mxu0 0.0
  %431 = vmatpush1.xpose.msra.mxu0 0.0
  %432 = vmatprep.subr.mxu0 0.0
  %433 = vmatpush1.xpose.msra.mxu0 0.0
  %434 = vmatprep.subr.mxu0 0.0
  %435 = vmatpush1.xpose.msra.mxu0 %v404
  %436 = vmatprep.subr.mxu0 0.0
  %437 = vmatpush1.xpose.msra.mxu0 %v402
  %438 = vmatprep.subr.mxu0 0.0
  %439 = vmatpush2.xpose.msra.mxu0 0.0
  %440 = vmatprep.subr.mxu0 0.0
  %441 = vmatpush2.xpose.msra.mxu0 0.0
  %442 = vmatprep.subr.mxu0 0.0
  %443 = vmatpush2.xpose.msra.mxu0 0.0
  %444 = vmatprep.subr.mxu0 0.0
  %445 = vmatpush2.xpose.msra.mxu0 0.0
  %446 = vmatprep.subr.mxu0 0.0
  %447 = vmatpush2.xpose.msra.mxu0 0.0
  %448 = vmatprep.subr.mxu0 0.0
  %449 = vmatpush2.xpose.msra.mxu0 0.0
  %450 = vmatprep.subr.mxu0 0.0
  %451 = vmatpush2.xpose.msra.mxu0 0.0
  %452 = vmatprep.subr.mxu0 0.0
  %453 = vmatpush2.xpose.msra.mxu0 0.0
  %454 = vmatprep.subr.mxu0 0.0
  %455 = vmatpush2.xpose.msra.mxu0 0.0
  %456 = vmatprep.subr.mxu0 0.0
  %457 = vmatpush2.xpose.msra.mxu0 0.0
  %458 = vmatprep.subr.mxu0 0.0
  %459 = vmatpush2.xpose.msra.mxu0 0.0
  %460 = vmatprep.subr.mxu0 0.0
  %461 = vmatpush2.xpose.msra.mxu0 0.0
  %462 = vmatprep.subr.mxu0 0.0
  %463 = vmatpush2.xpose.msra.mxu0 0.0
  %464 = vmatprep.subr.mxu0 0.0
  %465 = vmatpush2.xpose.msra.mxu0 0.0
  %466 = vmatprep.subr.mxu0 0.0
  %467 = vmatpush2.xpose.msra.mxu0 0.0
  %468 = vmatprep.subr.mxu0 0.0
  %469 = vmatpush2.xpose.msra.mxu0 0.0
  %470 = vmatprep.mubr.f32.mxu0 0.0
  %471 = vmatmul.mubr.f32.gmra.mxu0 %v398
  %v472 = vpop.f32.mrf.mxu0
  %v473 = vadd.f32 %v78, %v472
  %v474 = vpop.f32.mrf.mxu0
  %475 = vmatprep.mubr.f32.mxu0 0.0
  %476 = vmatmul.mubr.f32.gmra.mxu0 %v400
  %v477 = vpop.f32.mrf.mxu0
  %v478 = vadd.f32 %v79, %v477
  %v479 = vpop.f32.mrf.mxu0
  %480 = vdwg.mxu0
  %v481 = vsel %vm280, %v473, -inf
  %482 = vmax.xlane.f32.xlu0 %v481
  %v483 = vpop.xlane.xlu0 %482
  %v484 = vsel %vm280, %v478, -inf
  %485 = vmax.xlane.f32.xlu0 %v484
  %v486 = vpop.xlane.xlu0 %485
  %v487 = vsub.f32 %v473, %v483
  %v488 = vsub.f32 %v478, %v486
  %v489 = vmul.f32 %v487, 1.442695
  %v490 = vpow.pop %v489
  %v491 = vmul.f32 %v488, 1.442695
  %v492 = vpow.pop %v491
  %v493 = vsel %vm280, %v490, 0.0
  %494 = vadd.xlane.f32.xlu0 %v493
  %v495 = vpop.xlane.xlu0 %494
  %v496 = vsel %vm280, %v492, 0.0
  %497 = vadd.xlane.f32.xlu0 %v496
  %v498 = vpop.xlane.xlu0 %497
  %v499 = vrcp.pop %v495
  %v500 = vrcp.pop %v498
  %v501 = vmul.f32 %v490, %v499
  %v502 = vmul.f32 %v492, %v500
  %503 = vrot.lane.b32.xlu0 %v178, 56
  %v504 = vpop.permute.xlu0 %503
  %505 = vrot.lane.b32.xlu0 %v183, 56
  %v506 = vpop.permute.xlu0 %505
  %v510 = vsel %vm280, %v501, 0
  %v513 = vsel %vm280, %v502, 0
  %515 = vmatprep.subr.mxu0 0.0
  %516 = vmatpush1.msra.mxu0 0.0
  %517 = vmatprep.subr.mxu0 0.0
  %518 = vmatpush1.msra.mxu0 0.0
  %519 = vmatprep.subr.mxu0 0.0
  %520 = vmatpush1.msra.mxu0 0.0
  %521 = vmatprep.subr.mxu0 0.0
  %522 = vmatpush1.msra.mxu0 0.0
  %523 = vmatprep.subr.mxu0 0.0
  %524 = vmatpush1.msra.mxu0 0.0
  %525 = vmatprep.subr.mxu0 0.0
  %526 = vmatpush1.msra.mxu0 0.0
  %527 = vmatprep.subr.mxu0 0.0
  %528 = vmatpush1.msra.mxu0 0.0
  %529 = vmatprep.subr.mxu0 0.0
  %530 = vmatpush1.msra.mxu0 0.0
  %531 = vmatprep.subr.mxu0 0.0
  %532 = vmatpush1.msra.mxu0 0.0
  %533 = vmatprep.subr.mxu0 0.0
  %534 = vmatpush1.msra.mxu0 0.0
  %535 = vmatprep.subr.mxu0 0.0
  %536 = vmatpush1.msra.mxu0 0.0
  %537 = vmatprep.subr.mxu0 0.0
  %538 = vmatpush1.msra.mxu0 0.0
  %539 = vmatprep.subr.mxu0 0.0
  %540 = vmatpush1.msra.mxu0 0.0
  %541 = vmatprep.subr.mxu0 0.0
  %542 = vmatpush1.msra.mxu0 0.0
  %543 = vmatprep.subr.mxu0 0.0
  %544 = vmatpush1.msra.mxu0 %v506
  %545 = vmatprep.subr.mxu0 0.0
  %546 = vmatpush1.msra.mxu0 %v504
  %547 = vmatprep.subr.mxu0 0.0
  %548 = vmatpush2.msra.mxu0 0.0
  %549 = vmatprep.subr.mxu0 0.0
  %550 = vmatpush2.msra.mxu0 0.0
  %551 = vmatprep.subr.mxu0 0.0
  %552 = vmatpush2.msra.mxu0 0.0
  %553 = vmatprep.subr.mxu0 0.0
  %554 = vmatpush2.msra.mxu0 0.0
  %555 = vmatprep.subr.mxu0 0.0
  %556 = vmatpush2.msra.mxu0 0.0
  %557 = vmatprep.subr.mxu0 0.0
  %558 = vmatpush2.msra.mxu0 0.0
  %559 = vmatprep.subr.mxu0 0.0
  %560 = vmatpush2.msra.mxu0 0.0
  %561 = vmatprep.subr.mxu0 0.0
  %562 = vmatpush2.msra.mxu0 0.0
  %563 = vmatprep.subr.mxu0 0.0
  %564 = vmatpush2.msra.mxu0 0.0
  %565 = vmatprep.subr.mxu0 0.0
  %566 = vmatpush2.msra.mxu0 0.0
  %567 = vmatprep.subr.mxu0 0.0
  %568 = vmatpush2.msra.mxu0 0.0
  %569 = vmatprep.subr.mxu0 0.0
  %570 = vmatpush2.msra.mxu0 0.0
  %571 = vmatprep.subr.mxu0 0.0
  %572 = vmatpush2.msra.mxu0 0.0
  %573 = vmatprep.subr.mxu0 0.0
  %574 = vmatpush2.msra.mxu0 0.0
  %575 = vmatprep.subr.mxu0 0.0
  %576 = vmatpush2.msra.mxu0 0.0
  %577 = vmatprep.subr.mxu0 0.0
  %578 = vmatpush2.msra.mxu0 0.0
  %579 = vmatprep.mubr.f32.mxu0 0.0
  %580 = vmatmul.mubr.f32.gmra.mxu0 %v510
  %v581 = vpop.f32.mrf.mxu0
  %v582 = vadd.f32 0.0, %v581
  %v583 = vpop.f32.mrf.mxu0
  %584 = vmatprep.mubr.f32.mxu0 0.0
  %585 = vmatmul.mubr.f32.gmra.mxu0 %v513
  %v586 = vpop.f32.mrf.mxu0
  %v587 = vadd.f32 0.0, %v586
  %v588 = vpop.f32.mrf.mxu0
  %589 = vdwg.mxu0
  %590 = vrot.lane.b32.xlu0 %v186, 112
  %v591 = vpop.permute.xlu0 %590
  %592 = vrot.lane.b32.xlu0 %v187, 112
  %v593 = vpop.permute.xlu0 %592
  %594 = vrot.lane.b32.xlu0 %v178, 80
  %v595 = vpop.permute.xlu0 %594
  %596 = vrot.lane.b32.xlu0 %v183, 80
  %v597 = vpop.permute.xlu0 %596
  %v598 = vsel %vm194, %v591, 0
  %v600 = vsel %vm194, %v593, 0
  %v602 = vsel %vm194, %v595, 0
  %v604 = vsel %vm194, %v597, 0
  %606 = vmatprep.subr.mxu0 0.0
  %607 = vmatpush1.xpose.msra.mxu0 0.0
  %608 = vmatprep.subr.mxu0 0.0
  %609 = vmatpush1.xpose.msra.mxu0 0.0
  %610 = vmatprep.subr.mxu0 0.0
  %611 = vmatpush1.xpose.msra.mxu0 0.0
  %612 = vmatprep.subr.mxu0 0.0
  %613 = vmatpush1.xpose.msra.mxu0 0.0
  %614 = vmatprep.subr.mxu0 0.0
  %615 = vmatpush1.xpose.msra.mxu0 0.0
  %616 = vmatprep.subr.mxu0 0.0
  %617 = vmatpush1.xpose.msra.mxu0 0.0
  %618 = vmatprep.subr.mxu0 0.0
  %619 = vmatpush1.xpose.msra.mxu0 0.0
  %620 = vmatprep.subr.mxu0 0.0
  %621 = vmatpush1.xpose.msra.mxu0 0.0
  %622 = vmatprep.subr.mxu0 0.0
  %623 = vmatpush1.xpose.msra.mxu0 0.0
  %624 = vmatprep.subr.mxu0 0.0
  %625 = vmatpush1.xpose.msra.mxu0 0.0
  %626 = vmatprep.subr.mxu0 0.0
  %627 = vmatpush1.xpose.msra.mxu0 0.0
  %628 = vmatprep.subr.mxu0 0.0
  %629 = vmatpush1.xpose.msra.mxu0 0.0
  %630 = vmatprep.subr.mxu0 0.0
  %631 = vmatpush1.xpose.msra.mxu0 0.0
  %632 = vmatprep.subr.mxu0 0.0
  %633 = vmatpush1.xpose.msra.mxu0 0.0
  %634 = vmatprep.subr.mxu0 0.0
  %635 = vmatpush1.xpose.msra.mxu0 %v604
  %636 = vmatprep.subr.mxu0 0.0
  %637 = vmatpush1.xpose.msra.mxu0 %v602
  %638 = vmatprep.subr.mxu0 0.0
  %639 = vmatpush2.xpose.msra.mxu0 0.0
  %640 = vmatprep.subr.mxu0 0.0
  %641 = vmatpush2.xpose.msra.mxu0 0.0
  %642 = vmatprep.subr.mxu0 0.0
  %643 = vmatpush2.xpose.msra.mxu0 0.0
  %644 = vmatprep.subr.mxu0 0.0
  %645 = vmatpush2.xpose.msra.mxu0 0.0
  %646 = vmatprep.subr.mxu0 0.0
  %647 = vmatpush2.xpose.msra.mxu0 0.0
  %648 = vmatprep.subr.mxu0 0.0
  %649 = vmatpush2.xpose.msra.mxu0 0.0
  %650 = vmatprep.subr.mxu0 0.0
  %651 = vmatpush2.xpose.msra.mxu0 0.0
  %652 = vmatprep.subr.mxu0 0.0
  %653 = vmatpush2.xpose.msra.mxu0 0.0
  %654 = vmatprep.subr.mxu0 0.0
  %655 = vmatpush2.xpose.msra.mxu0 0.0
  %656 = vmatprep.subr.mxu0 0.0
  %657 = vmatpush2.xpose.msra.mxu0 0.0
  %658 = vmatprep.subr.mxu0 0.0
  %659 = vmatpush2.xpose.msra.mxu0 0.0
  %660 = vmatprep.subr.mxu0 0.0
  %661 = vmatpush2.xpose.msra.mxu0 0.0
  %662 = vmatprep.subr.mxu0 0.0
  %663 = vmatpush2.xpose.msra.mxu0 0.0
  %664 = vmatprep.subr.mxu0 0.0
  %665 = vmatpush2.xpose.msra.mxu0 0.0
  %666 = vmatprep.subr.mxu0 0.0
  %667 = vmatpush2.xpose.msra.mxu0 0.0
  %668 = vmatprep.subr.mxu0 0.0
  %669 = vmatpush2.xpose.msra.mxu0 0.0
  %670 = vmatprep.mubr.f32.mxu0 0.0
  %671 = vmatmul.mubr.f32.gmra.mxu0 %v598
  %v672 = vpop.f32.mrf.mxu0
  %v673 = vadd.f32 %v78, %v672
  %v674 = vpop.f32.mrf.mxu0
  %675 = vmatprep.mubr.f32.mxu0 0.0
  %676 = vmatmul.mubr.f32.gmra.mxu0 %v600
  %v677 = vpop.f32.mrf.mxu0
  %v678 = vadd.f32 %v79, %v677
  %v679 = vpop.f32.mrf.mxu0
  %680 = vdwg.mxu0
  %v681 = vsel %vm280, %v673, -inf
  %682 = vmax.xlane.f32.xlu0 %v681
  %v683 = vpop.xlane.xlu0 %682
  %v684 = vsel %vm280, %v678, -inf
  %685 = vmax.xlane.f32.xlu0 %v684
  %v686 = vpop.xlane.xlu0 %685
  %v687 = vsub.f32 %v673, %v683
  %v688 = vsub.f32 %v678, %v686
  %v689 = vmul.f32 %v687, 1.442695
  %v690 = vpow.pop %v689
  %v691 = vmul.f32 %v688, 1.442695
  %v692 = vpow.pop %v691
  %v693 = vsel %vm280, %v690, 0.0
  %694 = vadd.xlane.f32.xlu0 %v693
  %v695 = vpop.xlane.xlu0 %694
  %v696 = vsel %vm280, %v692, 0.0
  %697 = vadd.xlane.f32.xlu0 %v696
  %v698 = vpop.xlane.xlu0 %697
  %v699 = vrcp.pop %v695
  %v700 = vrcp.pop %v698
  %v701 = vmul.f32 %v690, %v699
  %v702 = vmul.f32 %v692, %v700
  %703 = vrot.lane.b32.xlu0 %v178, 48
  %v704 = vpop.permute.xlu0 %703
  %705 = vrot.lane.b32.xlu0 %v183, 48
  %v706 = vpop.permute.xlu0 %705
  %v710 = vsel %vm280, %v701, 0
  %v713 = vsel %vm280, %v702, 0
  %715 = vmatprep.subr.mxu0 0.0
  %716 = vmatpush1.msra.mxu0 0.0
  %717 = vmatprep.subr.mxu0 0.0
  %718 = vmatpush1.msra.mxu0 0.0
  %719 = vmatprep.subr.mxu0 0.0
  %720 = vmatpush1.msra.mxu0 0.0
  %721 = vmatprep.subr.mxu0 0.0
  %722 = vmatpush1.msra.mxu0 0.0
  %723 = vmatprep.subr.mxu0 0.0
  %724 = vmatpush1.msra.mxu0 0.0
  %725 = vmatprep.subr.mxu0 0.0
  %726 = vmatpush1.msra.mxu0 0.0
  %727 = vmatprep.subr.mxu0 0.0
  %728 = vmatpush1.msra.mxu0 0.0
  %729 = vmatprep.subr.mxu0 0.0
  %730 = vmatpush1.msra.mxu0 0.0
  %731 = vmatprep.subr.mxu0 0.0
  %732 = vmatpush1.msra.mxu0 0.0
  %733 = vmatprep.subr.mxu0 0.0
  %734 = vmatpush1.msra.mxu0 0.0
  %735 = vmatprep.subr.mxu0 0.0
  %736 = vmatpush1.msra.mxu0 0.0
  %737 = vmatprep.subr.mxu0 0.0
  %738 = vmatpush1.msra.mxu0 0.0
  %739 = vmatprep.subr.mxu0 0.0
  %740 = vmatpush1.msra.mxu0 0.0
  %741 = vmatprep.subr.mxu0 0.0
  %742 = vmatpush1.msra.mxu0 0.0
  %743 = vmatprep.subr.mxu0 0.0
  %744 = vmatpush1.msra.mxu0 %v706
  %745 = vmatprep.subr.mxu0 0.0
  %746 = vmatpush1.msra.mxu0 %v704
  %747 = vmatprep.subr.mxu0 0.0
  %748 = vmatpush2.msra.mxu0 0.0
  %749 = vmatprep.subr.mxu0 0.0
  %750 = vmatpush2.msra.mxu0 0.0
  %751 = vmatprep.subr.mxu0 0.0
  %752 = vmatpush2.msra.mxu0 0.0
  %753 = vmatprep.subr.mxu0 0.0
  %754 = vmatpush2.msra.mxu0 0.0
  %755 = vmatprep.subr.mxu0 0.0
  %756 = vmatpush2.msra.mxu0 0.0
  %757 = vmatprep.subr.mxu0 0.0
  %758 = vmatpush2.msra.mxu0 0.0
  %759 = vmatprep.subr.mxu0 0.0
  %760 = vmatpush2.msra.mxu0 0.0
  %761 = vmatprep.subr.mxu0 0.0
  %762 = vmatpush2.msra.mxu0 0.0
  %763 = vmatprep.subr.mxu0 0.0
  %764 = vmatpush2.msra.mxu0 0.0
  %765 = vmatprep.subr.mxu0 0.0
  %766 = vmatpush2.msra.mxu0 0.0
  %767 = vmatprep.subr.mxu0 0.0
  %768 = vmatpush2.msra.mxu0 0.0
  %769 = vmatprep.subr.mxu0 0.0
  %770 = vmatpush2.msra.mxu0 0.0
  %771 = vmatprep.subr.mxu0 0.0
  %772 = vmatpush2.msra.mxu0 0.0
  %773 = vmatprep.subr.mxu0 0.0
  %774 = vmatpush2.msra.mxu0 0.0
  %775 = vmatprep.subr.mxu0 0.0
  %776 = vmatpush2.msra.mxu0 0.0
  %777 = vmatprep.subr.mxu0 0.0
  %778 = vmatpush2.msra.mxu0 0.0
  %779 = vmatprep.mubr.f32.mxu0 0.0
  %780 = vmatmul.mubr.f32.gmra.mxu0 %v710
  %v781 = vpop.f32.mrf.mxu0
  %v782 = vadd.f32 0.0, %v781
  %v783 = vpop.f32.mrf.mxu0
  %784 = vmatprep.mubr.f32.mxu0 0.0
  %785 = vmatmul.mubr.f32.gmra.mxu0 %v713
  %v786 = vpop.f32.mrf.mxu0
  %v787 = vadd.f32 0.0, %v786
  %v788 = vpop.f32.mrf.mxu0
  %789 = vdwg.mxu0
  %790 = vrot.lane.b32.xlu0 %v186, 104
  %v791 = vpop.permute.xlu0 %790
  %792 = vrot.lane.b32.xlu0 %v187, 104
  %v793 = vpop.permute.xlu0 %792
  %794 = vrot.lane.b32.xlu0 %v178, 72
  %v795 = vpop.permute.xlu0 %794
  %796 = vrot.lane.b32.xlu0 %v183, 72
  %v797 = vpop.permute.xlu0 %796
  %v798 = vsel %vm194, %v791, 0
  %v800 = vsel %vm194, %v793, 0
  %v802 = vsel %vm194, %v795, 0
  %v804 = vsel %vm194, %v797, 0
  %806 = vmatprep.subr.mxu0 0.0
  %807 = vmatpush1.xpose.msra.mxu0 0.0
  %808 = vmatprep.subr.mxu0 0.0
  %809 = vmatpush1.xpose.msra.mxu0 0.0
  %810 = vmatprep.subr.mxu0 0.0
  %811 = vmatpush1.xpose.msra.mxu0 0.0
  %812 = vmatprep.subr.mxu0 0.0
  %813 = vmatpush1.xpose.msra.mxu0 0.0
  %814 = vmatprep.subr.mxu0 0.0
  %815 = vmatpush1.xpose.msra.mxu0 0.0
  %816 = vmatprep.subr.mxu0 0.0
  %817 = vmatpush1.xpose.msra.mxu0 0.0
  %818 = vmatprep.subr.mxu0 0.0
  %819 = vmatpush1.xpose.msra.mxu0 0.0
  %820 = vmatprep.subr.mxu0 0.0
  %821 = vmatpush1.xpose.msra.mxu0 0.0
  %822 = vmatprep.subr.mxu0 0.0
  %823 = vmatpush1.xpose.msra.mxu0 0.0
  %824 = vmatprep.subr.mxu0 0.0
  %825 = vmatpush1.xpose.msra.mxu0 0.0
  %826 = vmatprep.subr.mxu0 0.0
  %827 = vmatpush1.xpose.msra.mxu0 0.0
  %828 = vmatprep.subr.mxu0 0.0
  %829 = vmatpush1.xpose.msra.mxu0 0.0
  %830 = vmatprep.subr.mxu0 0.0
  %831 = vmatpush1.xpose.msra.mxu0 0.0
  %832 = vmatprep.subr.mxu0 0.0
  %833 = vmatpush1.xpose.msra.mxu0 0.0
  %834 = vmatprep.subr.mxu0 0.0
  %835 = vmatpush1.xpose.msra.mxu0 %v804
  %836 = vmatprep.subr.mxu0 0.0
  %837 = vmatpush1.xpose.msra.mxu0 %v802
  %838 = vmatprep.subr.mxu0 0.0
  %839 = vmatpush2.xpose.msra.mxu0 0.0
  %840 = vmatprep.subr.mxu0 0.0
  %841 = vmatpush2.xpose.msra.mxu0 0.0
  %842 = vmatprep.subr.mxu0 0.0
  %843 = vmatpush2.xpose.msra.mxu0 0.0
  %844 = vmatprep.subr.mxu0 0.0
  %845 = vmatpush2.xpose.msra.mxu0 0.0
  %846 = vmatprep.subr.mxu0 0.0
  %847 = vmatpush2.xpose.msra.mxu0 0.0
  %848 = vmatprep.subr.mxu0 0.0
  %849 = vmatpush2.xpose.msra.mxu0 0.0
  %850 = vmatprep.subr.mxu0 0.0
  %851 = vmatpush2.xpose.msra.mxu0 0.0
  %852 = vmatprep.subr.mxu0 0.0
  %853 = vmatpush2.xpose.msra.mxu0 0.0
  %854 = vmatprep.subr.mxu0 0.0
  %855 = vmatpush2.xpose.msra.mxu0 0.0
  %856 = vmatprep.subr.mxu0 0.0
  %857 = vmatpush2.xpose.msra.mxu0 0.0
  %858 = vmatprep.subr.mxu0 0.0
  %859 = vmatpush2.xpose.msra.mxu0 0.0
  %860 = vmatprep.subr.mxu0 0.0
  %861 = vmatpush2.xpose.msra.mxu0 0.0
  %862 = vmatprep.subr.mxu0 0.0
  %863 = vmatpush2.xpose.msra.mxu0 0.0
  %864 = vmatprep.subr.mxu0 0.0
  %865 = vmatpush2.xpose.msra.mxu0 0.0
  %866 = vmatprep.subr.mxu0 0.0
  %867 = vmatpush2.xpose.msra.mxu0 0.0
  %868 = vmatprep.subr.mxu0 0.0
  %869 = vmatpush2.xpose.msra.mxu0 0.0
  %870 = vmatprep.mubr.f32.mxu0 0.0
  %871 = vmatmul.mubr.f32.gmra.mxu0 %v798
  %v872 = vpop.f32.mrf.mxu0
  %v873 = vadd.f32 %v78, %v872
  %v874 = vpop.f32.mrf.mxu0
  %875 = vmatprep.mubr.f32.mxu0 0.0
  %876 = vmatmul.mubr.f32.gmra.mxu0 %v800
  %v877 = vpop.f32.mrf.mxu0
  %v878 = vadd.f32 %v79, %v877
  %v879 = vpop.f32.mrf.mxu0
  %880 = vdwg.mxu0
  %v881 = vsel %vm280, %v873, -inf
  %882 = vmax.xlane.f32.xlu0 %v881
  %v883 = vpop.xlane.xlu0 %882
  %v884 = vsel %vm280, %v878, -inf
  %885 = vmax.xlane.f32.xlu0 %v884
  %v886 = vpop.xlane.xlu0 %885
  %v887 = vsub.f32 %v873, %v883
  %v888 = vsub.f32 %v878, %v886
  %v889 = vmul.f32 %v887, 1.442695
  %v890 = vpow.pop %v889
  %v891 = vmul.f32 %v888, 1.442695
  %v892 = vpow.pop %v891
  %v893 = vsel %vm280, %v890, 0.0
  %894 = vadd.xlane.f32.xlu0 %v893
  %v895 = vpop.xlane.xlu0 %894
  %v896 = vsel %vm280, %v892, 0.0
  %897 = vadd.xlane.f32.xlu0 %v896
  %v898 = vpop.xlane.xlu0 %897
  %v899 = vrcp.pop %v895
  %v900 = vrcp.pop %v898
  %v901 = vmul.f32 %v890, %v899
  %v902 = vmul.f32 %v892, %v900
  %903 = vrot.lane.b32.xlu0 %v178, 40
  %v904 = vpop.permute.xlu0 %903
  %905 = vrot.lane.b32.xlu0 %v183, 40
  %v906 = vpop.permute.xlu0 %905
  %v910 = vsel %vm280, %v901, 0
  %v913 = vsel %vm280, %v902, 0
  %915 = vmatprep.subr.mxu0 0.0
  %916 = vmatpush1.msra.mxu0 0.0
  %917 = vmatprep.subr.mxu0 0.0
  %918 = vmatpush1.msra.mxu0 0.0
  %919 = vmatprep.subr.mxu0 0.0
  %920 = vmatpush1.msra.mxu0 0.0
  %921 = vmatprep.subr.mxu0 0.0
  %922 = vmatpush1.msra.mxu0 0.0
  %923 = vmatprep.subr.mxu0 0.0
  %924 = vmatpush1.msra.mxu0 0.0
  %925 = vmatprep.subr.mxu0 0.0
  %926 = vmatpush1.msra.mxu0 0.0
  %927 = vmatprep.subr.mxu0 0.0
  %928 = vmatpush1.msra.mxu0 0.0
  %929 = vmatprep.subr.mxu0 0.0
  %930 = vmatpush1.msra.mxu0 0.0
  %931 = vmatprep.subr.mxu0 0.0
  %932 = vmatpush1.msra.mxu0 0.0
  %933 = vmatprep.subr.mxu0 0.0
  %934 = vmatpush1.msra.mxu0 0.0
  %935 = vmatprep.subr.mxu0 0.0
  %936 = vmatpush1.msra.mxu0 0.0
  %937 = vmatprep.subr.mxu0 0.0
  %938 = vmatpush1.msra.mxu0 0.0
  %939 = vmatprep.subr.mxu0 0.0
  %940 = vmatpush1.msra.mxu0 0.0
  %941 = vmatprep.subr.mxu0 0.0
  %942 = vmatpush1.msra.mxu0 0.0
  %943 = vmatprep.subr.mxu0 0.0
  %944 = vmatpush1.msra.mxu0 %v906
  %945 = vmatprep.subr.mxu0 0.0
  %946 = vmatpush1.msra.mxu0 %v904
  %947 = vmatprep.subr.mxu0 0.0
  %948 = vmatpush2.msra.mxu0 0.0
  %949 = vmatprep.subr.mxu0 0.0
  %950 = vmatpush2.msra.mxu0 0.0
  %951 = vmatprep.subr.mxu0 0.0
  %952 = vmatpush2.msra.mxu0 0.0
  %953 = vmatprep.subr.mxu0 0.0
  %954 = vmatpush2.msra.mxu0 0.0
  %955 = vmatprep.subr.mxu0 0.0
  %956 = vmatpush2.msra.mxu0 0.0
  %957 = vmatprep.subr.mxu0 0.0
  %958 = vmatpush2.msra.mxu0 0.0
  %959 = vmatprep.subr.mxu0 0.0
  %960 = vmatpush2.msra.mxu0 0.0
  %961 = vmatprep.subr.mxu0 0.0
  %962 = vmatpush2.msra.mxu0 0.0
  %963 = vmatprep.subr.mxu0 0.0
  %964 = vmatpush2.msra.mxu0 0.0
  %965 = vmatprep.subr.mxu0 0.0
  %966 = vmatpush2.msra.mxu0 0.0
  %967 = vmatprep.subr.mxu0 0.0
  %968 = vmatpush2.msra.mxu0 0.0
  %969 = vmatprep.subr.mxu0 0.0
  %970 = vmatpush2.msra.mxu0 0.0
  %971 = vmatprep.subr.mxu0 0.0
  %972 = vmatpush2.msra.mxu0 0.0
  %973 = vmatprep.subr.mxu0 0.0
  %974 = vmatpush2.msra.mxu0 0.0
  %975 = vmatprep.subr.mxu0 0.0
  %976 = vmatpush2.msra.mxu0 0.0
  %977 = vmatprep.subr.mxu0 0.0
  %978 = vmatpush2.msra.mxu0 0.0
  %979 = vmatprep.mubr.f32.mxu0 0.0
  %980 = vmatmul.mubr.f32.gmra.mxu0 %v910
  %v981 = vpop.f32.mrf.mxu0
  %v982 = vadd.f32 0.0, %v981
  %v983 = vpop.f32.mrf.mxu0
  %984 = vmatprep.mubr.f32.mxu0 0.0
  %985 = vmatmul.mubr.f32.gmra.mxu0 %v913
  %v986 = vpop.f32.mrf.mxu0
  %v987 = vadd.f32 0.0, %v986
  %v988 = vpop.f32.mrf.mxu0
  %989 = vdwg.mxu0
  %992 = vrot.lane.b32.xlu0 %v582, 8
  %v993 = vpop.permute.xlu0 %992
  %994 = vrot.lane.b32.xlu0 %v587, 8
  %v995 = vpop.permute.xlu0 %994
  %1000 = vrot.lane.b32.xlu0 %v782, 16
  %v1001 = vpop.permute.xlu0 %1000
  %1002 = vrot.lane.b32.xlu0 %v787, 16
  %v1003 = vpop.permute.xlu0 %1002
  %1008 = vrot.lane.b32.xlu0 %v982, 24
  %v1009 = vpop.permute.xlu0 %1008
  %1010 = vrot.lane.b32.xlu0 %v987, 24
  %v1011 = vpop.permute.xlu0 %1010
  %v1014 = vsel %vm194, %v382, %v993
  %v1015 = vsel %vm194, %v387, %v995
  %v1016 = vsel %vm280, %v1014, %v1001
  %v1017 = vsel %vm280, %v1015, %v1003
  %vm1018 = vcmask 195584
  %v1019 = vsel %vm1018, %v1016, %v1009
  %v1020 = vsel %vm1018, %v1017, %v1011
  %v1021 = vlaneseq
  %v1022 = vshrl.u32 %v1021, 7
  %v1023 = vsub.s32 1, %v1022
  %v1024 = vrot.slane %v100, %v1023
  %v1026 = vsel %vm38, %v1019, 0
  %v1029 = vsel %vm38, %v1020, 0
  %1031 = vmatprep.subr.mxu0 0.0
  %1032 = vmatpush1.msra.mxu0 0.0
  %1033 = vmatprep.subr.mxu0 0.0
  %1034 = vmatpush1.msra.mxu0 0.0
  %1035 = vmatprep.subr.mxu0 0.0
  %1036 = vmatpush1.msra.mxu0 0.0
  %1037 = vmatprep.subr.mxu0 0.0
  %1038 = vmatpush1.msra.mxu0 0.0
  %1039 = vmatprep.subr.mxu0 0.0
  %1040 = vmatpush1.msra.mxu0 0.0
  %1041 = vmatprep.subr.mxu0 0.0
  %1042 = vmatpush1.msra.mxu0 0.0
  %1043 = vmatprep.subr.mxu0 0.0
  %1044 = vmatpush1.msra.mxu0 0.0
  %1045 = vmatprep.subr.mxu0 0.0
  %1046 = vmatpush1.msra.mxu0 0.0
  %1047 = vmatprep.subr.mxu0 0.0
  %1048 = vmatpush1.msra.mxu0 0.0
  %1049 = vmatprep.subr.mxu0 0.0
  %1050 = vmatpush1.msra.mxu0 0.0
  %1051 = vmatprep.subr.mxu0 0.0
  %1052 = vmatpush1.msra.mxu0 0.0
  %1053 = vmatprep.subr.mxu0 0.0
  %1054 = vmatpush1.msra.mxu0 0.0
  %1055 = vmatprep.subr.mxu0 0.0
  %1056 = vmatpush1.msra.mxu0 %v87
  %1057 = vmatprep.subr.mxu0 0.0
  %1058 = vmatpush1.msra.mxu0 %v86
  %1059 = vmatprep.subr.mxu0 0.0
  %1060 = vmatpush1.msra.mxu0 %v85
  %1061 = vmatprep.subr.mxu0 0.0
  %1062 = vmatpush1.msra.mxu0 %v84
  %1063 = vmatprep.subr.mxu0 0.0
  %1064 = vmatpush2.msra.mxu0 0.0
  %1065 = vmatprep.subr.mxu0 0.0
  %1066 = vmatpush2.msra.mxu0 0.0
  %1067 = vmatprep.subr.mxu0 0.0
  %1068 = vmatpush2.msra.mxu0 0.0
  %1069 = vmatprep.subr.mxu0 0.0
  %1070 = vmatpush2.msra.mxu0 0.0
  %1071 = vmatprep.subr.mxu0 0.0
  %1072 = vmatpush2.msra.mxu0 0.0
  %1073 = vmatprep.subr.mxu0 0.0
  %1074 = vmatpush2.msra.mxu0 0.0
  %1075 = vmatprep.subr.mxu0 0.0
  %1076 = vmatpush2.msra.mxu0 0.0
  %1077 = vmatprep.subr.mxu0 0.0
  %1078 = vmatpush2.msra.mxu0 0.0
  %1079 = vmatprep.subr.mxu0 0.0
  %1080 = vmatpush2.msra.mxu0 0.0
  %1081 = vmatprep.subr.mxu0 0.0
  %1082 = vmatpush2.msra.mxu0 0.0
  %1083 = vmatprep.subr.mxu0 0.0
  %1084 = vmatpush2.msra.mxu0 0.0
  %1085 = vmatprep.subr.mxu0 0.0
  %1086 = vmatpush2.msra.mxu0 0.0
  %1087 = vmatprep.subr.mxu0 0.0
  %1088 = vmatpush2.msra.mxu0 0.0
  %1089 = vmatprep.subr.mxu0 0.0
  %1090 = vmatpush2.msra.mxu0 0.0
  %1091 = vmatprep.subr.mxu0 0.0
  %1092 = vmatpush2.msra.mxu0 0.0
  %1093 = vmatprep.subr.mxu0 0.0
  %1094 = vmatpush2.msra.mxu0 0.0
  %1095 = vmatprep.mubr.f32.mxu0 0.0
  %1096 = vmatmul.mubr.f32.gmra.mxu0 %v1026
  %v1097 = vpop.f32.mrf.mxu0
  %v1098 = vadd.f32 %v1024, %v1097
  %v1099 = vpop.f32.mrf.mxu0
  %1100 = vmatprep.mubr.f32.mxu0 0.0
  %1101 = vmatmul.mubr.f32.gmra.mxu0 %v1029
  %v1102 = vpop.f32.mrf.mxu0
  %v1103 = vadd.f32 %v1024, %v1102
  %v1104 = vpop.f32.mrf.mxu0
  %1105 = vdwg.mxu0
  %v1106 = vadd.f32 %v76, %v1098
  %v1107 = vadd.f32 %v77, %v1103
  %v1108 = vsel %vm38, %v1106, 0.0
  %1109 = vadd.xlane.f32.xlu0 %v1108
  %v1110 = vpop.xlane.xlu0 %1109
  %v1111 = vsel %vm38, %v1107, 0.0
  %1112 = vadd.xlane.f32.xlu0 %v1111
  %v1113 = vpop.xlane.xlu0 %1112
  %v1114 = vmul.f32 %v1110, %v45
  %v1115 = vmul.f32 %v1113, %v45
  %v1116 = vsub.f32 %v1106, %v1114
  %v1117 = vsub.f32 %v1107, %v1115
  %v1118 = vmul.f32 %v1116, %v1116
  %v1119 = vmul.f32 %v1117, %v1117
  %v1120 = vsel %vm38, %v1118, 0.0
  %1121 = vadd.xlane.f32.xlu0 %v1120
  %v1122 = vpop.xlane.xlu0 %1121
  %v1123 = vsel %vm38, %v1119, 0.0
  %1124 = vadd.xlane.f32.xlu0 %v1123
  %v1125 = vpop.xlane.xlu0 %1124
  %v1126 = vmul.f32 %v1122, %v45
  %v1127 = vmul.f32 %v1125, %v45
  %v1128 = vadd.f32 %v1126, 1e-05
  %v1129 = vadd.f32 %v1127, 1e-05
  %v1130 = vrsqrt.pop %v1128
  %v1131 = vrsqrt.pop %v1129
  %v1132 = vmul.f32 %v1116, %v1130
  %v1133 = vmul.f32 %v1117, %v1131
  %v1134 = vlaneseq
  %v1135 = vshrl.u32 %v1134, 7
  %v1136 = vsub.s32 2, %v1135
  %v1137 = vrot.slane %v100, %v1136
  %v1138 = vmul.f32 %v1132, %v1137
  %v1139 = vmul.f32 %v1133, %v1137
  %v1140 = vlaneseq
  %v1141 = vshrl.u32 %v1140, 7
  %v1142 = vsub.s32 3, %v1141
  %v1143 = vrot.slane %v100, %v1142
  %v1144 = vadd.f32 %v1138, %v1143
  %v1145 = vadd.f32 %v1139, %v1143
  %v1146 = vlaneseq
  %v1147 = vshrl.u32 %v1146, 7
  %v1148 = vsub.s32 4, %v1147
  %v1149 = vrot.slane %v100, %v1148
  %v1151 = vsel %vm38, %v1144, 0
  %v1154 = vsel %vm38, %v1145, 0
  %1156 = vmatprep.subr.mxu0 0.0
  %1157 = vmatpush1.msra.mxu0 0.0
  %1158 = vmatprep.subr.mxu0 0.0
  %1159 = vmatpush1.msra.mxu0 0.0
  %1160 = vmatprep.subr.mxu0 0.0
  %1161 = vmatpush1.msra.mxu0 0.0
  %1162 = vmatprep.subr.mxu0 0.0
  %1163 = vmatpush1.msra.mxu0 0.0
  %1164 = vmatprep.subr.mxu0 0.0
  %1165 = vmatpush1.msra.mxu0 0.0
  %1166 = vmatprep.subr.mxu0 0.0
  %1167 = vmatpush1.msra.mxu0 0.0
  %1168 = vmatprep.subr.mxu0 0.0
  %1169 = vmatpush1.msra.mxu0 0.0
  %1170 = vmatprep.subr.mxu0 0.0
  %1171 = vmatpush1.msra.mxu0 0.0
  %1172 = vmatprep.subr.mxu0 0.0
  %1173 = vmatpush1.msra.mxu0 0.0
  %1174 = vmatprep.subr.mxu0 0.0
  %1175 = vmatpush1.msra.mxu0 0.0
  %1176 = vmatprep.subr.mxu0 0.0
  %1177 = vmatpush1.msra.mxu0 0.0
  %1178 = vmatprep.subr.mxu0 0.0
  %1179 = vmatpush1.msra.mxu0 0.0
  %1180 = vmatprep.subr.mxu0 0.0
  %1181 = vmatpush1.msra.mxu0 %v91
  %1182 = vmatprep.subr.mxu0 0.0
  %1183 = vmatpush1.msra.mxu0 %v90
  %1184 = vmatprep.subr.mxu0 0.0
  %1185 = vmatpush1.msra.mxu0 %v89
  %1186 = vmatprep.subr.mxu0 0.0
  %1187 = vmatpush1.msra.mxu0 %v88
  %1188 = vmatprep.subr.mxu0 0.0
  %1189 = vmatpush2.msra.mxu0 0.0
  %1190 = vmatprep.subr.mxu0 0.0
  %1191 = vmatpush2.msra.mxu0 0.0
  %1192 = vmatprep.subr.mxu0 0.0
  %1193 = vmatpush2.msra.mxu0 0.0
  %1194 = vmatprep.subr.mxu0 0.0
  %1195 = vmatpush2.msra.mxu0 0.0
  %1196 = vmatprep.subr.mxu0 0.0
  %1197 = vmatpush2.msra.mxu0 0.0
  %1198 = vmatprep.subr.mxu0 0.0
  %1199 = vmatpush2.msra.mxu0 0.0
  %1200 = vmatprep.subr.mxu0 0.0
  %1201 = vmatpush2.msra.mxu0 0.0
  %1202 = vmatprep.subr.mxu0 0.0
  %1203 = vmatpush2.msra.mxu0 0.0
  %1204 = vmatprep.subr.mxu0 0.0
  %1205 = vmatpush2.msra.mxu0 0.0
  %1206 = vmatprep.subr.mxu0 0.0
  %1207 = vmatpush2.msra.mxu0 0.0
  %1208 = vmatprep.subr.mxu0 0.0
  %1209 = vmatpush2.msra.mxu0 0.0
  %1210 = vmatprep.subr.mxu0 0.0
  %1211 = vmatpush2.msra.mxu0 0.0
  %1212 = vmatprep.subr.mxu0 0.0
  %1213 = vmatpush2.msra.mxu0 0.0
  %1214 = vmatprep.subr.mxu0 0.0
  %1215 = vmatpush2.msra.mxu0 0.0
  %1216 = vmatprep.subr.mxu0 0.0
  %1217 = vmatpush2.msra.mxu0 0.0
  %1218 = vmatprep.subr.mxu0 0.0
  %1219 = vmatpush2.msra.mxu0 0.0
  %1220 = vmatprep.mubr.f32.mxu0 0.0
  %1221 = vmatmul.mubr.f32.gmra.mxu0 %v1151
  %v1222 = vpop.f32.mrf.mxu0
  %v1223 = vadd.f32 %v1149, %v1222
  %v1224 = vpop.f32.mrf.mxu0
  %1225 = vmatprep.mubr.f32.mxu0 0.0
  %1226 = vmatmul.mubr.f32.gmra.mxu0 %v1154
  %v1227 = vpop.f32.mrf.mxu0
  %v1228 = vadd.f32 %v1149, %v1227
  %v1229 = vpop.f32.mrf.mxu0
  %1230 = vdwg.mxu0
  %v1231 = vmul.f32 %v1223, 0.5
  %v1232 = vmul.f32 %v1228, 0.5
  %v1233 = vmul.f32 %v1223, %v1223
  %v1234 = vmul.f32 %v1228, %v1228
  %v1235 = vmul.f32 %v1223, %v1233
  %v1236 = vmul.f32 %v1228, %v1234
  %v1237 = vmul.f32 %v1235, 0.044715
  %v1238 = vmul.f32 %v1236, 0.044715
  %v1239 = vadd.f32 %v1223, %v1237
  %v1240 = vadd.f32 %v1228, %v1238
  %v1241 = vmul.f32 %v1239, 0.7978846
  %v1242 = vmul.f32 %v1240, 0.7978846
  %v1243 = vtanh.pop %v1241
  %v1244 = vtanh.pop %v1242
  %v1245 = vadd.f32 %v1243, 1.0
  %v1246 = vadd.f32 %v1244, 1.0
  %v1247 = vmul.f32 %v1231, %v1245
  %v1248 = vmul.f32 %v1232, %v1246
  %v1249 = vlaneseq
  %v1250 = vshrl.u32 %v1249, 7
  %v1251 = vsub.s32 5, %v1250
  %v1252 = vrot.slane %v100, %v1251
  %vm1253 = vcmask 523264
  %v1255 = vsel %vm1253, %v1247, 0
  %v1258 = vsel %vm1253, %v1248, 0
  %1260 = vmatprep.subr.mxu0 0.0
  %1261 = vmatpush1.msra.mxu0 0.0
  %1262 = vmatprep.subr.mxu0 0.0
  %1263 = vmatpush1.msra.mxu0 0.0
  %1264 = vmatprep.subr.mxu0 0.0
  %1265 = vmatpush1.msra.mxu0 0.0
  %1266 = vmatprep.subr.mxu0 0.0
  %1267 = vmatpush1.msra.mxu0 0.0
  %1268 = vmatprep.subr.mxu0 0.0
  %1269 = vmatpush1.msra.mxu0 0.0
  %1270 = vmatprep.subr.mxu0 0.0
  %1271 = vmatpush1.msra.mxu0 0.0
  %1272 = vmatprep.subr.mxu0 0.0
  %1273 = vmatpush1.msra.mxu0 0.0
  %1274 = vmatprep.subr.mxu0 0.0
  %1275 = vmatpush1.msra.mxu0 0.0
  %1276 = vmatprep.subr.mxu0 0.0
  %1277 = vmatpush1.msra.mxu0 %v99
  %1278 = vmatprep.subr.mxu0 0.0
  %1279 = vmatpush1.msra.mxu0 %v98
  %1280 = vmatprep.subr.mxu0 0.0
  %1281 = vmatpush1.msra.mxu0 %v97
  %1282 = vmatprep.subr.mxu0 0.0
  %1283 = vmatpush1.msra.mxu0 %v96
  %1284 = vmatprep.subr.mxu0 0.0
  %1285 = vmatpush1.msra.mxu0 %v95
  %1286 = vmatprep.subr.mxu0 0.0
  %1287 = vmatpush1.msra.mxu0 %v94
  %1288 = vmatprep.subr.mxu0 0.0
  %1289 = vmatpush1.msra.mxu0 %v93
  %1290 = vmatprep.subr.mxu0 0.0
  %1291 = vmatpush1.msra.mxu0 %v92
  %1292 = vmatprep.subr.mxu0 0.0
  %1293 = vmatpush2.msra.mxu0 0.0
  %1294 = vmatprep.subr.mxu0 0.0
  %1295 = vmatpush2.msra.mxu0 0.0
  %1296 = vmatprep.subr.mxu0 0.0
  %1297 = vmatpush2.msra.mxu0 0.0
  %1298 = vmatprep.subr.mxu0 0.0
  %1299 = vmatpush2.msra.mxu0 0.0
  %1300 = vmatprep.subr.mxu0 0.0
  %1301 = vmatpush2.msra.mxu0 0.0
  %1302 = vmatprep.subr.mxu0 0.0
  %1303 = vmatpush2.msra.mxu0 0.0
  %1304 = vmatprep.subr.mxu0 0.0
  %1305 = vmatpush2.msra.mxu0 0.0
  %1306 = vmatprep.subr.mxu0 0.0
  %1307 = vmatpush2.msra.mxu0 0.0
  %1308 = vmatprep.subr.mxu0 0.0
  %1309 = vmatpush2.msra.mxu0 0.0
  %1310 = vmatprep.subr.mxu0 0.0
  %1311 = vmatpush2.msra.mxu0 0.0
  %1312 = vmatprep.subr.mxu0 0.0
  %1313 = vmatpush2.msra.mxu0 0.0
  %1314 = vmatprep.subr.mxu0 0.0
  %1315 = vmatpush2.msra.mxu0 0.0
  %1316 = vmatprep.subr.mxu0 0.0
  %1317 = vmatpush2.msra.mxu0 0.0
  %1318 = vmatprep.subr.mxu0 0.0
  %1319 = vmatpush2.msra.mxu0 0.0
  %1320 = vmatprep.subr.mxu0 0.0
  %1321 = vmatpush2.msra.mxu0 0.0
  %1322 = vmatprep.subr.mxu0 0.0
  %1323 = vmatpush2.msra.mxu0 0.0
  %1324 = vmatprep.mubr.f32.mxu0 0.0
  %1325 = vmatmul.mubr.f32.gmra.mxu0 %v1255
  %v1326 = vpop.f32.mrf.mxu0
  %v1327 = vadd.f32 %v1252, %v1326
  %v1328 = vpop.f32.mrf.mxu0
  %1329 = vmatprep.mubr.f32.mxu0 0.0
  %1330 = vmatmul.mubr.f32.gmra.mxu0 %v1258
  %v1331 = vpop.f32.mrf.mxu0
  %v1332 = vadd.f32 %v1252, %v1331
  %v1333 = vpop.f32.mrf.mxu0
  %1334 = vdwg.mxu0
  %v1335 = vadd.f32 %v1144, %v1327
  %v1336 = vadd.f32 %v1145, %v1332
  %v1337 = vsel %vm38, %v1335, 0.0
  %1338 = vadd.xlane.f32.xlu0 %v1337
  %v1339 = vpop.xlane.xlu0 %1338
  %v1340 = vsel %vm38, %v1336, 0.0
  %1341 = vadd.xlane.f32.xlu0 %v1340
  %v1342 = vpop.xlane.xlu0 %1341
  %v1343 = vmul.f32 %v1339, %v45
  %v1344 = vmul.f32 %v1342, %v45
  %v1345 = vsub.f32 %v1335, %v1343
  %v1346 = vsub.f32 %v1336, %v1344
  %v1347 = vmul.f32 %v1345, %v1345
  %v1348 = vmul.f32 %v1346, %v1346
  %v1349 = vsel %vm38, %v1347, 0.0
  %1350 = vadd.xlane.f32.xlu0 %v1349
  %v1351 = vpop.xlane.xlu0 %1350
  %v1352 = vsel %vm38, %v1348, 0.0
  %1353 = vadd.xlane.f32.xlu0 %v1352
  %v1354 = vpop.xlane.xlu0 %1353
  %v1355 = vmul.f32 %v1351, %v45
  %v1356 = vmul.f32 %v1354, %v45
  %v1357 = vadd.f32 %v1355, 1e-05
  %v1358 = vadd.f32 %v1356, 1e-05
  %v1359 = vrsqrt.pop %v1357
  %v1360 = vrsqrt.pop %v1358
  %v1361 = vmul.f32 %v1345, %v1359
  %v1362 = vmul.f32 %v1346, %v1360
  %v1363 = vlaneseq
  %v1364 = vshrl.u32 %v1363, 7
  %v1365 = vsub.s32 6, %v1364
  %v1366 = vrot.slane %v100, %v1365
  %v1367 = vmul.f32 %v1361, %v1366
  %v1368 = vmul.f32 %v1362, %v1366
  %v1369 = vlaneseq
  %v1370 = vshrl.u32 %v1369, 7
  %v1371 = vsub.s32 7, %v1370
  %v1372 = vrot.slane %v100, %v1371
  %v1373 = vadd.f32 %v1367, %v1372
  %v1374 = vadd.f32 %v1368, %v1372
  %s1375 = scalar_lea.vmem %s3, 32
  %v1376 = vld [vmem:[%s1375] sm:$0xff]
  %v1377 = vld [vmem:[%s1375 + $0x8] sm:$0xff]
  %v1378 = vld [vmem:[%s1375 + $0x10] sm:$0xff]
  %v1379 = vld [vmem:[%s1375 + $0x18] sm:$0xff]
  %s1380 = scalar_lea.vmem %s4, 32
  %v1381 = vld [vmem:[%s1380] sm:$0xff]
  %v1382 = vld [vmem:[%s1380 + $0x8] sm:$0xff]
  %v1383 = vld [vmem:[%s1380 + $0x10] sm:$0xff]
  %v1384 = vld [vmem:[%s1380 + $0x18] sm:$0xff]
  %s1385 = scalar_lea.vmem %s5, 32
  %v1386 = vld [vmem:[%s1385] sm:$0xff]
  %v1387 = vld [vmem:[%s1385 + $0x8] sm:$0xff]
  %v1388 = vld [vmem:[%s1385 + $0x10] sm:$0xff]
  %v1389 = vld [vmem:[%s1385 + $0x18] sm:$0xff]
  %s1390 = scalar_lea.vmem %s6, 64
  %v1391 = vld [vmem:[%s1390] sm:$0xff]
  %v1392 = vld [vmem:[%s1390 + $0x8] sm:$0xff]
  %v1393 = vld [vmem:[%s1390 + $0x10] sm:$0xff]
  %v1394 = vld [vmem:[%s1390 + $0x18] sm:$0xff]
  %v1395 = vld [vmem:[%s1390 + $0x20] sm:$0xff]
  %v1396 = vld [vmem:[%s1390 + $0x28] sm:$0xff]
  %v1397 = vld [vmem:[%s1390 + $0x30] sm:$0xff]
  %v1398 = vld [vmem:[%s1390 + $0x38] sm:$0xff]
  %s1399 = scalar_lea.vmem %s7, 8
  %v1400 = vld [vmem:[%s1399] sm:$0xff]
  %v1401 = vlaneseq
  %v1402 = vshrl.u32 %v1401, 7
  %v1403 = vsub.s32 0, %v1402
  %v1404 = vrot.slane %v1400, %v1403
  %v1406 = vsel %vm38, %v1373, 0
  %v1409 = vsel %vm38, %v1374, 0
  %1411 = vmatprep.subr.mxu0 0.0
  %1412 = vmatpush1.msra.mxu0 0.0
  %1413 = vmatprep.subr.mxu0 0.0
  %1414 = vmatpush1.msra.mxu0 0.0
  %1415 = vmatprep.subr.mxu0 0.0
  %1416 = vmatpush1.msra.mxu0 0.0
  %1417 = vmatprep.subr.mxu0 0.0
  %1418 = vmatpush1.msra.mxu0 0.0
  %1419 = vmatprep.subr.mxu0 0.0
  %1420 = vmatpush1.msra.mxu0 0.0
  %1421 = vmatprep.subr.mxu0 0.0
  %1422 = vmatpush1.msra.mxu0 0.0
  %1423 = vmatprep.subr.mxu0 0.0
  %1424 = vmatpush1.msra.mxu0 0.0
  %1425 = vmatprep.subr.mxu0 0.0
  %1426 = vmatpush1.msra.mxu0 0.0
  %1427 = vmatprep.subr.mxu0 0.0
  %1428 = vmatpush1.msra.mxu0 0.0
  %1429 = vmatprep.subr.mxu0 0.0
  %1430 = vmatpush1.msra.mxu0 0.0
  %1431 = vmatprep.subr.mxu0 0.0
  %1432 = vmatpush1.msra.mxu0 0.0
  %1433 = vmatprep.subr.mxu0 0.0
  %1434 = vmatpush1.msra.mxu0 0.0
  %1435 = vmatprep.subr.mxu0 0.0
  %1436 = vmatpush1.msra.mxu0 %v1379
  %1437 = vmatprep.subr.mxu0 0.0
  %1438 = vmatpush1.msra.mxu0 %v1378
  %1439 = vmatprep.subr.mxu0 0.0
  %1440 = vmatpush1.msra.mxu0 %v1377
  %1441 = vmatprep.subr.mxu0 0.0
  %1442 = vmatpush1.msra.mxu0 %v1376
  %1443 = vmatprep.subr.mxu0 0.0
  %1444 = vmatpush2.msra.mxu0 0.0
  %1445 = vmatprep.subr.mxu0 0.0
  %1446 = vmatpush2.msra.mxu0 0.0
  %1447 = vmatprep.subr.mxu0 0.0
  %1448 = vmatpush2.msra.mxu0 0.0
  %1449 = vmatprep.subr.mxu0 0.0
  %1450 = vmatpush2.msra.mxu0 0.0
  %1451 = vmatprep.subr.mxu0 0.0
  %1452 = vmatpush2.msra.mxu0 0.0
  %1453 = vmatprep.subr.mxu0 0.0
  %1454 = vmatpush2.msra.mxu0 0.0
  %1455 = vmatprep.subr.mxu0 0.0
  %1456 = vmatpush2.msra.mxu0 0.0
  %1457 = vmatprep.subr.mxu0 0.0
  %1458 = vmatpush2.msra.mxu0 0.0
  %1459 = vmatprep.subr.mxu0 0.0
  %1460 = vmatpush2.msra.mxu0 0.0
  %1461 = vmatprep.subr.mxu0 0.0
  %1462 = vmatpush2.msra.mxu0 0.0
  %1463 = vmatprep.subr.mxu0 0.0
  %1464 = vmatpush2.msra.mxu0 0.0
  %1465 = vmatprep.subr.mxu0 0.0
  %1466 = vmatpush2.msra.mxu0 0.0
  %1467 = vmatprep.subr.mxu0 0.0
  %1468 = vmatpush2.msra.mxu0 0.0
  %1469 = vmatprep.subr.mxu0 0.0
  %1470 = vmatpush2.msra.mxu0 0.0
  %1471 = vmatprep.subr.mxu0 0.0
  %1472 = vmatpush2.msra.mxu0 0.0
  %1473 = vmatprep.subr.mxu0 0.0
  %1474 = vmatpush2.msra.mxu0 0.0
  %1475 = vmatprep.mubr.f32.mxu0 0.0
  %1476 = vmatmul.mubr.f32.gmra.mxu0 %v1406
  %v1477 = vpop.f32.mrf.mxu0
  %v1478 = vadd.f32 %v1404, %v1477
  %v1479 = vpop.f32.mrf.mxu0
  %1480 = vmatprep.mubr.f32.mxu0 0.0
  %1481 = vmatmul.mubr.f32.gmra.mxu0 %v1409
  %v1482 = vpop.f32.mrf.mxu0
  %v1483 = vadd.f32 %v1404, %v1482
  %v1484 = vpop.f32.mrf.mxu0
  %1485 = vdwg.mxu0
  %v1486 = vmul.f32 %v1478, 0.35355338
  %v1487 = vmul.f32 %v1483, 0.35355338
  %1490 = vrot.lane.b32.xlu0 %v1478, 96
  %v1491 = vpop.permute.xlu0 %1490
  %1492 = vrot.lane.b32.xlu0 %v1483, 96
  %v1493 = vpop.permute.xlu0 %1492
  %v1495 = vsel %vm194, %v1486, 0
  %v1498 = vsel %vm194, %v1487, 0
  %v1500 = vsel %vm194, %v1491, 0
  %v1502 = vsel %vm194, %v1493, 0
  %1504 = vmatprep.subr.mxu0 0.0
  %1505 = vmatpush1.xpose.msra.mxu0 0.0
  %1506 = vmatprep.subr.mxu0 0.0
  %1507 = vmatpush1.xpose.msra.mxu0 0.0
  %1508 = vmatprep.subr.mxu0 0.0
  %1509 = vmatpush1.xpose.msra.mxu0 0.0
  %1510 = vmatprep.subr.mxu0 0.0
  %1511 = vmatpush1.xpose.msra.mxu0 0.0
  %1512 = vmatprep.subr.mxu0 0.0
  %1513 = vmatpush1.xpose.msra.mxu0 0.0
  %1514 = vmatprep.subr.mxu0 0.0
  %1515 = vmatpush1.xpose.msra.mxu0 0.0
  %1516 = vmatprep.subr.mxu0 0.0
  %1517 = vmatpush1.xpose.msra.mxu0 0.0
  %1518 = vmatprep.subr.mxu0 0.0
  %1519 = vmatpush1.xpose.msra.mxu0 0.0
  %1520 = vmatprep.subr.mxu0 0.0
  %1521 = vmatpush1.xpose.msra.mxu0 0.0
  %1522 = vmatprep.subr.mxu0 0.0
  %1523 = vmatpush1.xpose.msra.mxu0 0.0
  %1524 = vmatprep.subr.mxu0 0.0
  %1525 = vmatpush1.xpose.msra.mxu0 0.0
  %1526 = vmatprep.subr.mxu0 0.0
  %1527 = vmatpush1.xpose.msra.mxu0 0.0
  %1528 = vmatprep.subr.mxu0 0.0
  %1529 = vmatpush1.xpose.msra.mxu0 0.0
  %1530 = vmatprep.subr.mxu0 0.0
  %1531 = vmatpush1.xpose.msra.mxu0 0.0
  %1532 = vmatprep.subr.mxu0 0.0
  %1533 = vmatpush1.xpose.msra.mxu0 %v1502
  %1534 = vmatprep.subr.mxu0 0.0
  %1535 = vmatpush1.xpose.msra.mxu0 %v1500
  %1536 = vmatprep.subr.mxu0 0.0
  %1537 = vmatpush2.xpose.msra.mxu0 0.0
  %1538 = vmatprep.subr.mxu0 0.0
  %1539 = vmatpush2.xpose.msra.mxu0 0.0
  %1540 = vmatprep.subr.mxu0 0.0
  %1541 = vmatpush2.xpose.msra.mxu0 0.0
  %1542 = vmatprep.subr.mxu0 0.0
  %1543 = vmatpush2.xpose.msra.mxu0 0.0
  %1544 = vmatprep.subr.mxu0 0.0
  %1545 = vmatpush2.xpose.msra.mxu0 0.0
  %1546 = vmatprep.subr.mxu0 0.0
  %1547 = vmatpush2.xpose.msra.mxu0 0.0
  %1548 = vmatprep.subr.mxu0 0.0
  %1549 = vmatpush2.xpose.msra.mxu0 0.0
  %1550 = vmatprep.subr.mxu0 0.0
  %1551 = vmatpush2.xpose.msra.mxu0 0.0
  %1552 = vmatprep.subr.mxu0 0.0
  %1553 = vmatpush2.xpose.msra.mxu0 0.0
  %1554 = vmatprep.subr.mxu0 0.0
  %1555 = vmatpush2.xpose.msra.mxu0 0.0
  %1556 = vmatprep.subr.mxu0 0.0
  %1557 = vmatpush2.xpose.msra.mxu0 0.0
  %1558 = vmatprep.subr.mxu0 0.0
  %1559 = vmatpush2.xpose.msra.mxu0 0.0
  %1560 = vmatprep.subr.mxu0 0.0
  %1561 = vmatpush2.xpose.msra.mxu0 0.0
  %1562 = vmatprep.subr.mxu0 0.0
  %1563 = vmatpush2.xpose.msra.mxu0 0.0
  %1564 = vmatprep.subr.mxu0 0.0
  %1565 = vmatpush2.xpose.msra.mxu0 0.0
  %1566 = vmatprep.subr.mxu0 0.0
  %1567 = vmatpush2.xpose.msra.mxu0 0.0
  %1568 = vmatprep.mubr.f32.mxu0 0.0
  %1569 = vmatmul.mubr.f32.gmra.mxu0 %v1495
  %v1570 = vpop.f32.mrf.mxu0
  %v1571 = vadd.f32 %v78, %v1570
  %v1572 = vpop.f32.mrf.mxu0
  %1573 = vmatprep.mubr.f32.mxu0 0.0
  %1574 = vmatmul.mubr.f32.gmra.mxu0 %v1498
  %v1575 = vpop.f32.mrf.mxu0
  %v1576 = vadd.f32 %v79, %v1575
  %v1577 = vpop.f32.mrf.mxu0
  %1578 = vdwg.mxu0
  %v1579 = vsel %vm280, %v1571, -inf
  %1580 = vmax.xlane.f32.xlu0 %v1579
  %v1581 = vpop.xlane.xlu0 %1580
  %v1582 = vsel %vm280, %v1576, -inf
  %1583 = vmax.xlane.f32.xlu0 %v1582
  %v1584 = vpop.xlane.xlu0 %1583
  %v1585 = vsub.f32 %v1571, %v1581
  %v1586 = vsub.f32 %v1576, %v1584
  %v1587 = vmul.f32 %v1585, 1.442695
  %v1588 = vpow.pop %v1587
  %v1589 = vmul.f32 %v1586, 1.442695
  %v1590 = vpow.pop %v1589
  %v1591 = vsel %vm280, %v1588, 0.0
  %1592 = vadd.xlane.f32.xlu0 %v1591
  %v1593 = vpop.xlane.xlu0 %1592
  %v1594 = vsel %vm280, %v1590, 0.0
  %1595 = vadd.xlane.f32.xlu0 %v1594
  %v1596 = vpop.xlane.xlu0 %1595
  %v1597 = vrcp.pop %v1593
  %v1598 = vrcp.pop %v1596
  %v1599 = vmul.f32 %v1588, %v1597
  %v1600 = vmul.f32 %v1590, %v1598
  %1601 = vrot.lane.b32.xlu0 %v1478, 64
  %v1602 = vpop.permute.xlu0 %1601
  %1603 = vrot.lane.b32.xlu0 %v1483, 64
  %v1604 = vpop.permute.xlu0 %1603
  %v1608 = vsel %vm280, %v1599, 0
  %v1611 = vsel %vm280, %v1600, 0
  %1613 = vmatprep.subr.mxu0 0.0
  %1614 = vmatpush1.msra.mxu0 0.0
  %1615 = vmatprep.subr.mxu0 0.0
  %1616 = vmatpush1.msra.mxu0 0.0
  %1617 = vmatprep.subr.mxu0 0.0
  %1618 = vmatpush1.msra.mxu0 0.0
  %1619 = vmatprep.subr.mxu0 0.0
  %1620 = vmatpush1.msra.mxu0 0.0
  %1621 = vmatprep.subr.mxu0 0.0
  %1622 = vmatpush1.msra.mxu0 0.0
  %1623 = vmatprep.subr.mxu0 0.0
  %1624 = vmatpush1.msra.mxu0 0.0
  %1625 = vmatprep.subr.mxu0 0.0
  %1626 = vmatpush1.msra.mxu0 0.0
  %1627 = vmatprep.subr.mxu0 0.0
  %1628 = vmatpush1.msra.mxu0 0.0
  %1629 = vmatprep.subr.mxu0 0.0
  %1630 = vmatpush1.msra.mxu0 0.0
  %1631 = vmatprep.subr.mxu0 0.0
  %1632 = vmatpush1.msra.mxu0 0.0
  %1633 = vmatprep.subr.mxu0 0.0
  %1634 = vmatpush1.msra.mxu0 0.0
  %1635 = vmatprep.subr.mxu0 0.0
  %1636 = vmatpush1.msra.mxu0 0.0
  %1637 = vmatprep.subr.mxu0 0.0
  %1638 = vmatpush1.msra.mxu0 0.0
  %1639 = vmatprep.subr.mxu0 0.0
  %1640 = vmatpush1.msra.mxu0 0.0
  %1641 = vmatprep.subr.mxu0 0.0
  %1642 = vmatpush1.msra.mxu0 %v1604
  %1643 = vmatprep.subr.mxu0 0.0
  %1644 = vmatpush1.msra.mxu0 %v1602
  %1645 = vmatprep.subr.mxu0 0.0
  %1646 = vmatpush2.msra.mxu0 0.0
  %1647 = vmatprep.subr.mxu0 0.0
  %1648 = vmatpush2.msra.mxu0 0.0
  %1649 = vmatprep.subr.mxu0 0.0
  %1650 = vmatpush2.msra.mxu0 0.0
  %1651 = vmatprep.subr.mxu0 0.0
  %1652 = vmatpush2.msra.mxu0 0.0
  %1653 = vmatprep.subr.mxu0 0.0
  %1654 = vmatpush2.msra.mxu0 0.0
  %1655 = vmatprep.subr.mxu0 0.0
  %1656 = vmatpush2.msra.mxu0 0.0
  %1657 = vmatprep.subr.mxu0 0.0
  %1658 = vmatpush2.msra.mxu0 0.0
  %1659 = vmatprep.subr.mxu0 0.0
  %1660 = vmatpush2.msra.mxu0 0.0
  %1661 = vmatprep.subr.mxu0 0.0
  %1662 = vmatpush2.msra.mxu0 0.0
  %1663 = vmatprep.subr.mxu0 0.0
  %1664 = vmatpush2.msra.mxu0 0.0
  %1665 = vmatprep.subr.mxu0 0.0
  %1666 = vmatpush2.msra.mxu0 0.0
  %1667 = vmatprep.subr.mxu0 0.0
  %1668 = vmatpush2.msra.mxu0 0.0
  %1669 = vmatprep.subr.mxu0 0.0
  %1670 = vmatpush2.msra.mxu0 0.0
  %1671 = vmatprep.subr.mxu0 0.0
  %1672 = vmatpush2.msra.mxu0 0.0
  %1673 = vmatprep.subr.mxu0 0.0
  %1674 = vmatpush2.msra.mxu0 0.0
  %1675 = vmatprep.subr.mxu0 0.0
  %1676 = vmatpush2.msra.mxu0 0.0
  %1677 = vmatprep.mubr.f32.mxu0 0.0
  %1678 = vmatmul.mubr.f32.gmra.mxu0 %v1608
  %v1679 = vpop.f32.mrf.mxu0
  %v1680 = vadd.f32 0.0, %v1679
  %v1681 = vpop.f32.mrf.mxu0
  %1682 = vmatprep.mubr.f32.mxu0 0.0
  %1683 = vmatmul.mubr.f32.gmra.mxu0 %v1611
  %v1684 = vpop.f32.mrf.mxu0
  %v1685 = vadd.f32 0.0, %v1684
  %v1686 = vpop.f32.mrf.mxu0
  %1687 = vdwg.mxu0
  %1688 = vrot.lane.b32.xlu0 %v1486, 120
  %v1689 = vpop.permute.xlu0 %1688
  %1690 = vrot.lane.b32.xlu0 %v1487, 120
  %v1691 = vpop.permute.xlu0 %1690
  %1692 = vrot.lane.b32.xlu0 %v1478, 88
  %v1693 = vpop.permute.xlu0 %1692
  %1694 = vrot.lane.b32.xlu0 %v1483, 88
  %v1695 = vpop.permute.xlu0 %1694
  %v1696 = vsel %vm194, %v1689, 0
  %v1698 = vsel %vm194, %v1691, 0
  %v1700 = vsel %vm194, %v1693, 0
  %v1702 = vsel %vm194, %v1695, 0
  %1704 = vmatprep.subr.mxu0 0.0
  %1705 = vmatpush1.xpose.msra.mxu0 0.0
  %1706 = vmatprep.subr.mxu0 0.0
  %1707 = vmatpush1.xpose.msra.mxu0 0.0
  %1708 = vmatprep.subr.mxu0 0.0
  %1709 = vmatpush1.xpose.msra.mxu0 0.0
  %1710 = vmatprep.subr.mxu0 0.0
  %1711 = vmatpush1.xpose.msra.mxu0 0.0
  %1712 = vmatprep.subr.mxu0 0.0
  %1713 = vmatpush1.xpose.msra.mxu0 0.0
  %1714 = vmatprep.subr.mxu0 0.0
  %1715 = vmatpush1.xpose.msra.mxu0 0.0
  %1716 = vmatprep.subr.mxu0 0.0
  %1717 = vmatpush1.xpose.msra.mxu0 0.0
  %1718 = vmatprep.subr.mxu0 0.0
  %1719 = vmatpush1.xpose.msra.mxu0 0.0
  %1720 = vmatprep.subr.mxu0 0.0
  %1721 = vmatpush1.xpose.msra.mxu0 0.0
  %1722 = vmatprep.subr.mxu0 0.0
  %1723 = vmatpush1.xpose.msra.mxu0 0.0
  %1724 = vmatprep.subr.mxu0 0.0
  %1725 = vmatpush1.xpose.msra.mxu0 0.0
  %1726 = vmatprep.subr.mxu0 0.0
  %1727 = vmatpush1.xpose.msra.mxu0 0.0
  %1728 = vmatprep.subr.mxu0 0.0
  %1729 = vmatpush1.xpose.msra.mxu0 0.0
  %1730 = vmatprep.subr.mxu0 0.0
  %1731 = vmatpush1.xpose.msra.mxu0 0.0
  %1732 = vmatprep.subr.mxu0 0.0
  %1733 = vmatpush1.xpose.msra.mxu0 %v1702
  %1734 = vmatprep.subr.mxu0 0.0
  %1735 = vmatpush1.xpose.msra.mxu0 %v1700
  %1736 = vmatprep.subr.mxu0 0.0
  %1737 = vmatpush2.xpose.msra.mxu0 0.0
  %1738 = vmatprep.subr.mxu0 0.0
  %1739 = vmatpush2.xpose.msra.mxu0 0.0
  %1740 = vmatprep.subr.mxu0 0.0
  %1741 = vmatpush2.xpose.msra.mxu0 0.0
  %1742 = vmatprep.subr.mxu0 0.0
  %1743 = vmatpush2.xpose.msra.mxu0 0.0
  %1744 = vmatprep.subr.mxu0 0.0
  %1745 = vmatpush2.xpose.msra.mxu0 0.0
  %1746 = vmatprep.subr.mxu0 0.0
  %1747 = vmatpush2.xpose.msra.mxu0 0.0
  %1748 = vmatprep.subr.mxu0 0.0
  %1749 = vmatpush2.xpose.msra.mxu0 0.0
  %1750 = vmatprep.subr.mxu0 0.0
  %1751 = vmatpush2.xpose.msra.mxu0 0.0
  %1752 = vmatprep.subr.mxu0 0.0
  %1753 = vmatpush2.xpose.msra.mxu0 0.0
  %1754 = vmatprep.subr.mxu0 0.0
  %1755 = vmatpush2.xpose.msra.mxu0 0.0
  %1756 = vmatprep.subr.mxu0 0.0
  %1757 = vmatpush2.xpose.msra.mxu0 0.0
  %1758 = vmatprep.subr.mxu0 0.0
  %1759 = vmatpush2.xpose.msra.mxu0 0.0
  %1760 = vmatprep.subr.mxu0 0.0
  %1761 = vmatpush2.xpose.msra.mxu0 0.0
  %1762 = vmatprep.subr.mxu0 0.0
  %1763 = vmatpush2.xpose.msra.mxu0 0.0
  %1764 = vmatprep.subr.mxu0 0.0
  %1765 = vmatpush2.xpose.msra.mxu0 0.0
  %1766 = vmatprep.subr.mxu0 0.0
  %1767 = vmatpush2.xpose.msra.mxu0 0.0
  %1768 = vmatprep.mubr.f32.mxu0 0.0
  %1769 = vmatmul.mubr.f32.gmra.mxu0 %v1696
  %v1770 = vpop.f32.mrf.mxu0
  %v1771 = vadd.f32 %v78, %v1770
  %v1772 = vpop.f32.mrf.mxu0
  %1773 = vmatprep.mubr.f32.mxu0 0.0
  %1774 = vmatmul.mubr.f32.gmra.mxu0 %v1698
  %v1775 = vpop.f32.mrf.mxu0
  %v1776 = vadd.f32 %v79, %v1775
  %v1777 = vpop.f32.mrf.mxu0
  %1778 = vdwg.mxu0
  %v1779 = vsel %vm280, %v1771, -inf
  %1780 = vmax.xlane.f32.xlu0 %v1779
  %v1781 = vpop.xlane.xlu0 %1780
  %v1782 = vsel %vm280, %v1776, -inf
  %1783 = vmax.xlane.f32.xlu0 %v1782
  %v1784 = vpop.xlane.xlu0 %1783
  %v1785 = vsub.f32 %v1771, %v1781
  %v1786 = vsub.f32 %v1776, %v1784
  %v1787 = vmul.f32 %v1785, 1.442695
  %v1788 = vpow.pop %v1787
  %v1789 = vmul.f32 %v1786, 1.442695
  %v1790 = vpow.pop %v1789
  %v1791 = vsel %vm280, %v1788, 0.0
  %1792 = vadd.xlane.f32.xlu0 %v1791
  %v1793 = vpop.xlane.xlu0 %1792
  %v1794 = vsel %vm280, %v1790, 0.0
  %1795 = vadd.xlane.f32.xlu0 %v1794
  %v1796 = vpop.xlane.xlu0 %1795
  %v1797 = vrcp.pop %v1793
  %v1798 = vrcp.pop %v1796
  %v1799 = vmul.f32 %v1788, %v1797
  %v1800 = vmul.f32 %v1790, %v1798
  %1801 = vrot.lane.b32.xlu0 %v1478, 56
  %v1802 = vpop.permute.xlu0 %1801
  %1803 = vrot.lane.b32.xlu0 %v1483, 56
  %v1804 = vpop.permute.xlu0 %1803
  %v1808 = vsel %vm280, %v1799, 0
  %v1811 = vsel %vm280, %v1800, 0
  %1813 = vmatprep.subr.mxu0 0.0
  %1814 = vmatpush1.msra.mxu0 0.0
  %1815 = vmatprep.subr.mxu0 0.0
  %1816 = vmatpush1.msra.mxu0 0.0
  %1817 = vmatprep.subr.mxu0 0.0
  %1818 = vmatpush1.msra.mxu0 0.0
  %1819 = vmatprep.subr.mxu0 0.0
  %1820 = vmatpush1.msra.mxu0 0.0
  %1821 = vmatprep.subr.mxu0 0.0
  %1822 = vmatpush1.msra.mxu0 0.0
  %1823 = vmatprep.subr.mxu0 0.0
  %1824 = vmatpush1.msra.mxu0 0.0
  %1825 = vmatprep.subr.mxu0 0.0
  %1826 = vmatpush1.msra.mxu0 0.0
  %1827 = vmatprep.subr.mxu0 0.0
  %1828 = vmatpush1.msra.mxu0 0.0
  %1829 = vmatprep.subr.mxu0 0.0
  %1830 = vmatpush1.msra.mxu0 0.0
  %1831 = vmatprep.subr.mxu0 0.0
  %1832 = vmatpush1.msra.mxu0 0.0
  %1833 = vmatprep.subr.mxu0 0.0
  %1834 = vmatpush1.msra.mxu0 0.0
  %1835 = vmatprep.subr.mxu0 0.0
  %1836 = vmatpush1.msra.mxu0 0.0
  %1837 = vmatprep.subr.mxu0 0.0
  %1838 = vmatpush1.msra.mxu0 0.0
  %1839 = vmatprep.subr.mxu0 0.0
  %1840 = vmatpush1.msra.mxu0 0.0
  %1841 = vmatprep.subr.mxu0 0.0
  %1842 = vmatpush1.msra.mxu0 %v1804
  %1843 = vmatprep.subr.mxu0 0.0
  %1844 = vmatpush1.msra.mxu0 %v1802
  %1845 = vmatprep.subr.mxu0 0.0
  %1846 = vmatpush2.msra.mxu0 0.0
  %1847 = vmatprep.subr.mxu0 0.0
  %1848 = vmatpush2.msra.mxu0 0.0
  %1849 = vmatprep.subr.mxu0 0.0
  %1850 = vmatpush2.msra.mxu0 0.0
  %1851 = vmatprep.subr.mxu0 0.0
  %1852 = vmatpush2.msra.mxu0 0.0
  %1853 = vmatprep.subr.mxu0 0.0
  %1854 = vmatpush2.msra.mxu0 0.0
  %1855 = vmatprep.subr.mxu0 0.0
  %1856 = vmatpush2.msra.mxu0 0.0
  %1857 = vmatprep.subr.mxu0 0.0
  %1858 = vmatpush2.msra.mxu0 0.0
  %1859 = vmatprep.subr.mxu0 0.0
  %1860 = vmatpush2.msra.mxu0 0.0
  %1861 = vmatprep.subr.mxu0 0.0
  %1862 = vmatpush2.msra.mxu0 0.0
  %1863 = vmatprep.subr.mxu0 0.0
  %1864 = vmatpush2.msra.mxu0 0.0
  %1865 = vmatprep.subr.mxu0 0.0
  %1866 = vmatpush2.msra.mxu0 0.0
  %1867 = vmatprep.subr.mxu0 0.0
  %1868 = vmatpush2.msra.mxu0 0.0
  %1869 = vmatprep.subr.mxu0 0.0
  %1870 = vmatpush2.msra.mxu0 0.0
  %1871 = vmatprep.subr.mxu0 0.0
  %1872 = vmatpush2.msra.mxu0 0.0
  %1873 = vmatprep.subr.mxu0 0.0
  %1874 = vmatpush2.msra.mxu0 0.0
  %1875 = vmatprep.subr.mxu0 0.0
  %1876 = vmatpush2.msra.mxu0 0.0
  %1877 = vmatprep.mubr.f32.mxu0 0.0
  %1878 = vmatmul.mubr.f32.gmra.mxu0 %v1808
  %v1879 = vpop.f32.mrf.mxu0
  %v1880 = vadd.f32 0.0, %v1879
  %v1881 = vpop.f32.mrf.mxu0
  %1882 = vmatprep.mubr.f32.mxu0 0.0
  %1883 = vmatmul.mubr.f32.gmra.mxu0 %v1811
  %v1884 = vpop.f32.mrf.mxu0
  %v1885 = vadd.f32 0.0, %v1884
  %v1886 = vpop.f32.mrf.mxu0
  %1887 = vdwg.mxu0
  %1888 = vrot.lane.b32.xlu0 %v1486, 112
  %v1889 = vpop.permute.xlu0 %1888
  %1890 = vrot.lane.b32.xlu0 %v1487, 112
  %v1891 = vpop.permute.xlu0 %1890
  %1892 = vrot.lane.b32.xlu0 %v1478, 80
  %v1893 = vpop.permute.xlu0 %1892
  %1894 = vrot.lane.b32.xlu0 %v1483, 80
  %v1895 = vpop.permute.xlu0 %1894
  %v1896 = vsel %vm194, %v1889, 0
  %v1898 = vsel %vm194, %v1891, 0
  %v1900 = vsel %vm194, %v1893, 0
  %v1902 = vsel %vm194, %v1895, 0
  %1904 = vmatprep.subr.mxu0 0.0
  %1905 = vmatpush1.xpose.msra.mxu0 0.0
  %1906 = vmatprep.subr.mxu0 0.0
  %1907 = vmatpush1.xpose.msra.mxu0 0.0
  %1908 = vmatprep.subr.mxu0 0.0
  %1909 = vmatpush1.xpose.msra.mxu0 0.0
  %1910 = vmatprep.subr.mxu0 0.0
  %1911 = vmatpush1.xpose.msra.mxu0 0.0
  %1912 = vmatprep.subr.mxu0 0.0
  %1913 = vmatpush1.xpose.msra.mxu0 0.0
  %1914 = vmatprep.subr.mxu0 0.0
  %1915 = vmatpush1.xpose.msra.mxu0 0.0
  %1916 = vmatprep.subr.mxu0 0.0
  %1917 = vmatpush1.xpose.msra.mxu0 0.0
  %1918 = vmatprep.subr.mxu0 0.0
  %1919 = vmatpush1.xpose.msra.mxu0 0.0
  %1920 = vmatprep.subr.mxu0 0.0
  %1921 = vmatpush1.xpose.msra.mxu0 0.0
  %1922 = vmatprep.subr.mxu0 0.0
  %1923 = vmatpush1.xpose.msra.mxu0 0.0
  %1924 = vmatprep.subr.mxu0 0.0
  %1925 = vmatpush1.xpose.msra.mxu0 0.0
  %1926 = vmatprep.subr.mxu0 0.0
  %1927 = vmatpush1.xpose.msra.mxu0 0.0
  %1928 = vmatprep.subr.mxu0 0.0
  %1929 = vmatpush1.xpose.msra.mxu0 0.0
  %1930 = vmatprep.subr.mxu0 0.0
  %1931 = vmatpush1.xpose.msra.mxu0 0.0
  %1932 = vmatprep.subr.mxu0 0.0
  %1933 = vmatpush1.xpose.msra.mxu0 %v1902
  %1934 = vmatprep.subr.mxu0 0.0
  %1935 = vmatpush1.xpose.msra.mxu0 %v1900
  %1936 = vmatprep.subr.mxu0 0.0
  %1937 = vmatpush2.xpose.msra.mxu0 0.0
  %1938 = vmatprep.subr.mxu0 0.0
  %1939 = vmatpush2.xpose.msra.mxu0 0.0
  %1940 = vmatprep.subr.mxu0 0.0
  %1941 = vmatpush2.xpose.msra.mxu0 0.0
  %1942 = vmatprep.subr.mxu0 0.0
  %1943 = vmatpush2.xpose.msra.mxu0 0.0
  %1944 = vmatprep.subr.mxu0 0.0
  %1945 = vmatpush2.xpose.msra.mxu0 0.0
  %1946 = vmatprep.subr.mxu0 0.0
  %1947 = vmatpush2.xpose.msra.mxu0 0.0
  %1948 = vmatprep.subr.mxu0 0.0
  %1949 = vmatpush2.xpose.msra.mxu0 0.0
  %1950 = vmatprep.subr.mxu0 0.0
  %1951 = vmatpush2.xpose.msra.mxu0 0.0
  %1952 = vmatprep.subr.mxu0 0.0
  %1953 = vmatpush2.xpose.msra.mxu0 0.0
  %1954 = vmatprep.subr.mxu0 0.0
  %1955 = vmatpush2.xpose.msra.mxu0 0.0
  %1956 = vmatprep.subr.mxu0 0.0
  %1957 = vmatpush2.xpose.msra.mxu0 0.0
  %1958 = vmatprep.subr.mxu0 0.0
  %1959 = vmatpush2.xpose.msra.mxu0 0.0
  %1960 = vmatprep.subr.mxu0 0.0
  %1961 = vmatpush2.xpose.msra.mxu0 0.0
  %1962 = vmatprep.subr.mxu0 0.0
  %1963 = vmatpush2.xpose.msra.mxu0 0.0
  %1964 = vmatprep.subr.mxu0 0.0
  %1965 = vmatpush2.xpose.msra.mxu0 0.0
  %1966 = vmatprep.subr.mxu0 0.0
  %1967 = vmatpush2.xpose.msra.mxu0 0.0
  %1968 = vmatprep.mubr.f32.mxu0 0.0
  %1969 = vmatmul.mubr.f32.gmra.mxu0 %v1896
  %v1970 = vpop.f32.mrf.mxu0
  %v1971 = vadd.f32 %v78, %v1970
  %v1972 = vpop.f32.mrf.mxu0
  %1973 = vmatprep.mubr.f32.mxu0 0.0
  %1974 = vmatmul.mubr.f32.gmra.mxu0 %v1898
  %v1975 = vpop.f32.mrf.mxu0
  %v1976 = vadd.f32 %v79, %v1975
  %v1977 = vpop.f32.mrf.mxu0
  %1978 = vdwg.mxu0
  %v1979 = vsel %vm280, %v1971, -inf
  %1980 = vmax.xlane.f32.xlu0 %v1979
  %v1981 = vpop.xlane.xlu0 %1980
  %v1982 = vsel %vm280, %v1976, -inf
  %1983 = vmax.xlane.f32.xlu0 %v1982
  %v1984 = vpop.xlane.xlu0 %1983
  %v1985 = vsub.f32 %v1971, %v1981
  %v1986 = vsub.f32 %v1976, %v1984
  %v1987 = vmul.f32 %v1985, 1.442695
  %v1988 = vpow.pop %v1987
  %v1989 = vmul.f32 %v1986, 1.442695
  %v1990 = vpow.pop %v1989
  %v1991 = vsel %vm280, %v1988, 0.0
  %1992 = vadd.xlane.f32.xlu0 %v1991
  %v1993 = vpop.xlane.xlu0 %1992
  %v1994 = vsel %vm280, %v1990, 0.0
  %1995 = vadd.xlane.f32.xlu0 %v1994
  %v1996 = vpop.xlane.xlu0 %1995
  %v1997 = vrcp.pop %v1993
  %v1998 = vrcp.pop %v1996
  %v1999 = vmul.f32 %v1988, %v1997
  %v2000 = vmul.f32 %v1990, %v1998
  %2001 = vrot.lane.b32.xlu0 %v1478, 48
  %v2002 = vpop.permute.xlu0 %2001
  %2003 = vrot.lane.b32.xlu0 %v1483, 48
  %v2004 = vpop.permute.xlu0 %2003
  %v2008 = vsel %vm280, %v1999, 0
  %v2011 = vsel %vm280, %v2000, 0
  %2013 = vmatprep.subr.mxu0 0.0
  %2014 = vmatpush1.msra.mxu0 0.0
  %2015 = vmatprep.subr.mxu0 0.0
  %2016 = vmatpush1.msra.mxu0 0.0
  %2017 = vmatprep.subr.mxu0 0.0
  %2018 = vmatpush1.msra.mxu0 0.0
  %2019 = vmatprep.subr.mxu0 0.0
  %2020 = vmatpush1.msra.mxu0 0.0
  %2021 = vmatprep.subr.mxu0 0.0
  %2022 = vmatpush1.msra.mxu0 0.0
  %2023 = vmatprep.subr.mxu0 0.0
  %2024 = vmatpush1.msra.mxu0 0.0
  %2025 = vmatprep.subr.mxu0 0.0
  %2026 = vmatpush1.msra.mxu0 0.0
  %2027 = vmatprep.subr.mxu0 0.0
  %2028 = vmatpush1.msra.mxu0 0.0
  %2029 = vmatprep.subr.mxu0 0.0
  %2030 = vmatpush1.msra.mxu0 0.0
  %2031 = vmatprep.subr.mxu0 0.0
  %2032 = vmatpush1.msra.mxu0 0.0
  %2033 = vmatprep.subr.mxu0 0.0
  %2034 = vmatpush1.msra.mxu0 0.0
  %2035 = vmatprep.subr.mxu0 0.0
  %2036 = vmatpush1.msra.mxu0 0.0
  %2037 = vmatprep.subr.mxu0 0.0
  %2038 = vmatpush1.msra.mxu0 0.0
  %2039 = vmatprep.subr.mxu0 0.0
  %2040 = vmatpush1.msra.mxu0 0.0
  %2041 = vmatprep.subr.mxu0 0.0
  %2042 = vmatpush1.msra.mxu0 %v2004
  %2043 = vmatprep.subr.mxu0 0.0
  %2044 = vmatpush1.msra.mxu0 %v2002
  %2045 = vmatprep.subr.mxu0 0.0
  %2046 = vmatpush2.msra.mxu0 0.0
  %2047 = vmatprep.subr.mxu0 0.0
  %2048 = vmatpush2.msra.mxu0 0.0
  %2049 = vmatprep.subr.mxu0 0.0
  %2050 = vmatpush2.msra.mxu0 0.0
  %2051 = vmatprep.subr.mxu0 0.0
  %2052 = vmatpush2.msra.mxu0 0.0
  %2053 = vmatprep.subr.mxu0 0.0
  %2054 = vmatpush2.msra.mxu0 0.0
  %2055 = vmatprep.subr.mxu0 0.0
  %2056 = vmatpush2.msra.mxu0 0.0
  %2057 = vmatprep.subr.mxu0 0.0
  %2058 = vmatpush2.msra.mxu0 0.0
  %2059 = vmatprep.subr.mxu0 0.0
  %2060 = vmatpush2.msra.mxu0 0.0
  %2061 = vmatprep.subr.mxu0 0.0
  %2062 = vmatpush2.msra.mxu0 0.0
  %2063 = vmatprep.subr.mxu0 0.0
  %2064 = vmatpush2.msra.mxu0 0.0
  %2065 = vmatprep.subr.mxu0 0.0
  %2066 = vmatpush2.msra.mxu0 0.0
  %2067 = vmatprep.subr.mxu0 0.0
  %2068 = vmatpush2.msra.mxu0 0.0
  %2069 = vmatprep.subr.mxu0 0.0
  %2070 = vmatpush2.msra.mxu0 0.0
  %2071 = vmatprep.subr.mxu0 0.0
  %2072 = vmatpush2.msra.mxu0 0.0
  %2073 = vmatprep.subr.mxu0 0.0
  %2074 = vmatpush2.msra.mxu0 0.0
  %2075 = vmatprep.subr.mxu0 0.0
  %2076 = vmatpush2.msra.mxu0 0.0
  %2077 = vmatprep.mubr.f32.mxu0 0.0
  %2078 = vmatmul.mubr.f32.gmra.mxu0 %v2008
  %v2079 = vpop.f32.mrf.mxu0
  %v2080 = vadd.f32 0.0, %v2079
  %v2081 = vpop.f32.mrf.mxu0
  %2082 = vmatprep.mubr.f32.mxu0 0.0
  %2083 = vmatmul.mubr.f32.gmra.mxu0 %v2011
  %v2084 = vpop.f32.mrf.mxu0
  %v2085 = vadd.f32 0.0, %v2084
  %v2086 = vpop.f32.mrf.mxu0
  %2087 = vdwg.mxu0
  %2088 = vrot.lane.b32.xlu0 %v1486, 104
  %v2089 = vpop.permute.xlu0 %2088
  %2090 = vrot.lane.b32.xlu0 %v1487, 104
  %v2091 = vpop.permute.xlu0 %2090
  %2092 = vrot.lane.b32.xlu0 %v1478, 72
  %v2093 = vpop.permute.xlu0 %2092
  %2094 = vrot.lane.b32.xlu0 %v1483, 72
  %v2095 = vpop.permute.xlu0 %2094
  %v2096 = vsel %vm194, %v2089, 0
  %v2098 = vsel %vm194, %v2091, 0
  %v2100 = vsel %vm194, %v2093, 0
  %v2102 = vsel %vm194, %v2095, 0
  %2104 = vmatprep.subr.mxu0 0.0
  %2105 = vmatpush1.xpose.msra.mxu0 0.0
  %2106 = vmatprep.subr.mxu0 0.0
  %2107 = vmatpush1.xpose.msra.mxu0 0.0
  %2108 = vmatprep.subr.mxu0 0.0
  %2109 = vmatpush1.xpose.msra.mxu0 0.0
  %2110 = vmatprep.subr.mxu0 0.0
  %2111 = vmatpush1.xpose.msra.mxu0 0.0
  %2112 = vmatprep.subr.mxu0 0.0
  %2113 = vmatpush1.xpose.msra.mxu0 0.0
  %2114 = vmatprep.subr.mxu0 0.0
  %2115 = vmatpush1.xpose.msra.mxu0 0.0
  %2116 = vmatprep.subr.mxu0 0.0
  %2117 = vmatpush1.xpose.msra.mxu0 0.0
  %2118 = vmatprep.subr.mxu0 0.0
  %2119 = vmatpush1.xpose.msra.mxu0 0.0
  %2120 = vmatprep.subr.mxu0 0.0
  %2121 = vmatpush1.xpose.msra.mxu0 0.0
  %2122 = vmatprep.subr.mxu0 0.0
  %2123 = vmatpush1.xpose.msra.mxu0 0.0
  %2124 = vmatprep.subr.mxu0 0.0
  %2125 = vmatpush1.xpose.msra.mxu0 0.0
  %2126 = vmatprep.subr.mxu0 0.0
  %2127 = vmatpush1.xpose.msra.mxu0 0.0
  %2128 = vmatprep.subr.mxu0 0.0
  %2129 = vmatpush1.xpose.msra.mxu0 0.0
  %2130 = vmatprep.subr.mxu0 0.0
  %2131 = vmatpush1.xpose.msra.mxu0 0.0
  %2132 = vmatprep.subr.mxu0 0.0
  %2133 = vmatpush1.xpose.msra.mxu0 %v2102
  %2134 = vmatprep.subr.mxu0 0.0
  %2135 = vmatpush1.xpose.msra.mxu0 %v2100
  %2136 = vmatprep.subr.mxu0 0.0
  %2137 = vmatpush2.xpose.msra.mxu0 0.0
  %2138 = vmatprep.subr.mxu0 0.0
  %2139 = vmatpush2.xpose.msra.mxu0 0.0
  %2140 = vmatprep.subr.mxu0 0.0
  %2141 = vmatpush2.xpose.msra.mxu0 0.0
  %2142 = vmatprep.subr.mxu0 0.0
  %2143 = vmatpush2.xpose.msra.mxu0 0.0
  %2144 = vmatprep.subr.mxu0 0.0
  %2145 = vmatpush2.xpose.msra.mxu0 0.0
  %2146 = vmatprep.subr.mxu0 0.0
  %2147 = vmatpush2.xpose.msra.mxu0 0.0
  %2148 = vmatprep.subr.mxu0 0.0
  %2149 = vmatpush2.xpose.msra.mxu0 0.0
  %2150 = vmatprep.subr.mxu0 0.0
  %2151 = vmatpush2.xpose.msra.mxu0 0.0
  %2152 = vmatprep.subr.mxu0 0.0
  %2153 = vmatpush2.xpose.msra.mxu0 0.0
  %2154 = vmatprep.subr.mxu0 0.0
  %2155 = vmatpush2.xpose.msra.mxu0 0.0
  %2156 = vmatprep.subr.mxu0 0.0
  %2157 = vmatpush2.xpose.msra.mxu0 0.0
  %2158 = vmatprep.subr.mxu0 0.0
  %2159 = vmatpush2.xpose.msra.mxu0 0.0
  %2160 = vmatprep.subr.mxu0 0.0
  %2161 = vmatpush2.xpose.msra.mxu0 0.0
  %2162 = vmatprep.subr.mxu0 0.0
  %2163 = vmatpush2.xpose.msra.mxu0 0.0
  %2164 = vmatprep.subr.mxu0 0.0
  %2165 = vmatpush2.xpose.msra.mxu0 0.0
  %2166 = vmatprep.subr.mxu0 0.0
  %2167 = vmatpush2.xpose.msra.mxu0 0.0
  %2168 = vmatprep.mubr.f32.mxu0 0.0
  %2169 = vmatmul.mubr.f32.gmra.mxu0 %v2096
  %v2170 = vpop.f32.mrf.mxu0
  %v2171 = vadd.f32 %v78, %v2170
  %v2172 = vpop.f32.mrf.mxu0
  %2173 = vmatprep.mubr.f32.mxu0 0.0
  %2174 = vmatmul.mubr.f32.gmra.mxu0 %v2098
  %v2175 = vpop.f32.mrf.mxu0
  %v2176 = vadd.f32 %v79, %v2175
  %v2177 = vpop.f32.mrf.mxu0
  %2178 = vdwg.mxu0
  %v2179 = vsel %vm280, %v2171, -inf
  %2180 = vmax.xlane.f32.xlu0 %v2179
  %v2181 = vpop.xlane.xlu0 %2180
  %v2182 = vsel %vm280, %v2176, -inf
  %2183 = vmax.xlane.f32.xlu0 %v2182
  %v2184 = vpop.xlane.xlu0 %2183
  %v2185 = vsub.f32 %v2171, %v2181
  %v2186 = vsub.f32 %v2176, %v2184
  %v2187 = vmul.f32 %v2185, 1.442695
  %v2188 = vpow.pop %v2187
  %v2189 = vmul.f32 %v2186, 1.442695
  %v2190 = vpow.pop %v2189
  %v2191 = vsel %vm280, %v2188, 0.0
  %2192 = vadd.xlane.f32.xlu0 %v2191
  %v2193 = vpop.xlane.xlu0 %2192
  %v2194 = vsel %vm280, %v2190, 0.0
  %2195 = vadd.xlane.f32.xlu0 %v2194
  %v2196 = vpop.xlane.xlu0 %2195
  %v2197 = vrcp.pop %v2193
  %v2198 = vrcp.pop %v2196
  %v2199 = vmul.f32 %v2188, %v2197
  %v2200 = vmul.f32 %v2190, %v2198
  %2201 = vrot.lane.b32.xlu0 %v1478, 40
  %v2202 = vpop.permute.xlu0 %2201
  %2203 = vrot.lane.b32.xlu0 %v1483, 40
  %v2204 = vpop.permute.xlu0 %2203
  %v2208 = vsel %vm280, %v2199, 0
  %v2211 = vsel %vm280, %v2200, 0
  %2213 = vmatprep.subr.mxu0 0.0
  %2214 = vmatpush1.msra.mxu0 0.0
  %2215 = vmatprep.subr.mxu0 0.0
  %2216 = vmatpush1.msra.mxu0 0.0
  %2217 = vmatprep.subr.mxu0 0.0
  %2218 = vmatpush1.msra.mxu0 0.0
  %2219 = vmatprep.subr.mxu0 0.0
  %2220 = vmatpush1.msra.mxu0 0.0
  %2221 = vmatprep.subr.mxu0 0.0
  %2222 = vmatpush1.msra.mxu0 0.0
  %2223 = vmatprep.subr.mxu0 0.0
  %2224 = vmatpush1.msra.mxu0 0.0
  %2225 = vmatprep.subr.mxu0 0.0
  %2226 = vmatpush1.msra.mxu0 0.0
  %2227 = vmatprep.subr.mxu0 0.0
  %2228 = vmatpush1.msra.mxu0 0.0
  %2229 = vmatprep.subr.mxu0 0.0
  %2230 = vmatpush1.msra.mxu0 0.0
  %2231 = vmatprep.subr.mxu0 0.0
  %2232 = vmatpush1.msra.mxu0 0.0
  %2233 = vmatprep.subr.mxu0 0.0
  %2234 = vmatpush1.msra.mxu0 0.0
  %2235 = vmatprep.subr.mxu0 0.0
  %2236 = vmatpush1.msra.mxu0 0.0
  %2237 = vmatprep.subr.mxu0 0.0
  %2238 = vmatpush1.msra.mxu0 0.0
  %2239 = vmatprep.subr.mxu0 0.0
  %2240 = vmatpush1.msra.mxu0 0.0
  %2241 = vmatprep.subr.mxu0 0.0
  %2242 = vmatpush1.msra.mxu0 %v2204
  %2243 = vmatprep.subr.mxu0 0.0
  %2244 = vmatpush1.msra.mxu0 %v2202
  %2245 = vmatprep.subr.mxu0 0.0
  %2246 = vmatpush2.msra.mxu0 0.0
  %2247 = vmatprep.subr.mxu0 0.0
  %2248 = vmatpush2.msra.mxu0 0.0
  %2249 = vmatprep.subr.mxu0 0.0
  %2250 = vmatpush2.msra.mxu0 0.0
  %2251 = vmatprep.subr.mxu0 0.0
  %2252 = vmatpush2.msra.mxu0 0.0
  %2253 = vmatprep.subr.mxu0 0.0
  %2254 = vmatpush2.msra.mxu0 0.0
  %2255 = vmatprep.subr.mxu0 0.0
  %2256 = vmatpush2.msra.mxu0 0.0
  %2257 = vmatprep.subr.mxu0 0.0
  %2258 = vmatpush2.msra.mxu0 0.0
  %2259 = vmatprep.subr.mxu0 0.0
  %2260 = vmatpush2.msra.mxu0 0.0
  %2261 = vmatprep.subr.mxu0 0.0
  %2262 = vmatpush2.msra.mxu0 0.0
  %2263 = vmatprep.subr.mxu0 0.0
  %2264 = vmatpush2.msra.mxu0 0.0
  %2265 = vmatprep.subr.mxu0 0.0
  %2266 = vmatpush2.msra.mxu0 0.0
  %2267 = vmatprep.subr.mxu0 0.0
  %2268 = vmatpush2.msra.mxu0 0.0
  %2269 = vmatprep.subr.mxu0 0.0
  %2270 = vmatpush2.msra.mxu0 0.0
  %2271 = vmatprep.subr.mxu0 0.0
  %2272 = vmatpush2.msra.mxu0 0.0
  %2273 = vmatprep.subr.mxu0 0.0
  %2274 = vmatpush2.msra.mxu0 0.0
  %2275 = vmatprep.subr.mxu0 0.0
  %2276 = vmatpush2.msra.mxu0 0.0
  %2277 = vmatprep.mubr.f32.mxu0 0.0
  %2278 = vmatmul.mubr.f32.gmra.mxu0 %v2208
  %v2279 = vpop.f32.mrf.mxu0
  %v2280 = vadd.f32 0.0, %v2279
  %v2281 = vpop.f32.mrf.mxu0
  %2282 = vmatprep.mubr.f32.mxu0 0.0
  %2283 = vmatmul.mubr.f32.gmra.mxu0 %v2211
  %v2284 = vpop.f32.mrf.mxu0
  %v2285 = vadd.f32 0.0, %v2284
  %v2286 = vpop.f32.mrf.mxu0
  %2287 = vdwg.mxu0
  %2290 = vrot.lane.b32.xlu0 %v1880, 8
  %v2291 = vpop.permute.xlu0 %2290
  %2292 = vrot.lane.b32.xlu0 %v1885, 8
  %v2293 = vpop.permute.xlu0 %2292
  %2298 = vrot.lane.b32.xlu0 %v2080, 16
  %v2299 = vpop.permute.xlu0 %2298
  %2300 = vrot.lane.b32.xlu0 %v2085, 16
  %v2301 = vpop.permute.xlu0 %2300
  %2306 = vrot.lane.b32.xlu0 %v2280, 24
  %v2307 = vpop.permute.xlu0 %2306
  %2308 = vrot.lane.b32.xlu0 %v2285, 24
  %v2309 = vpop.permute.xlu0 %2308
  %v2312 = vsel %vm194, %v1680, %v2291
  %v2313 = vsel %vm194, %v1685, %v2293
  %v2314 = vsel %vm280, %v2312, %v2299
  %v2315 = vsel %vm280, %v2313, %v2301
  %v2316 = vsel %vm1018, %v2314, %v2307
  %v2317 = vsel %vm1018, %v2315, %v2309
  %v2318 = vlaneseq
  %v2319 = vshrl.u32 %v2318, 7
  %v2320 = vsub.s32 1, %v2319
  %v2321 = vrot.slane %v1400, %v2320
  %v2323 = vsel %vm38, %v2316, 0
  %v2326 = vsel %vm38, %v2317, 0
  %2328 = vmatprep.subr.mxu0 0.0
  %2329 = vmatpush1.msra.mxu0 0.0
  %2330 = vmatprep.subr.mxu0 0.0
  %2331 = vmatpush1.msra.mxu0 0.0
  %2332 = vmatprep.subr.mxu0 0.0
  %2333 = vmatpush1.msra.mxu0 0.0
  %2334 = vmatprep.subr.mxu0 0.0
  %2335 = vmatpush1.msra.mxu0 0.0
  %2336 = vmatprep.subr.mxu0 0.0
  %2337 = vmatpush1.msra.mxu0 0.0
  %2338 = vmatprep.subr.mxu0 0.0
  %2339 = vmatpush1.msra.mxu0 0.0
  %2340 = vmatprep.subr.mxu0 0.0
  %2341 = vmatpush1.msra.mxu0 0.0
  %2342 = vmatprep.subr.mxu0 0.0
  %2343 = vmatpush1.msra.mxu0 0.0
  %2344 = vmatprep.subr.mxu0 0.0
  %2345 = vmatpush1.msra.mxu0 0.0
  %2346 = vmatprep.subr.mxu0 0.0
  %2347 = vmatpush1.msra.mxu0 0.0
  %2348 = vmatprep.subr.mxu0 0.0
  %2349 = vmatpush1.msra.mxu0 0.0
  %2350 = vmatprep.subr.mxu0 0.0
  %2351 = vmatpush1.msra.mxu0 0.0
  %2352 = vmatprep.subr.mxu0 0.0
  %2353 = vmatpush1.msra.mxu0 %v1384
  %2354 = vmatprep.subr.mxu0 0.0
  %2355 = vmatpush1.msra.mxu0 %v1383
  %2356 = vmatprep.subr.mxu0 0.0
  %2357 = vmatpush1.msra.mxu0 %v1382
  %2358 = vmatprep.subr.mxu0 0.0
  %2359 = vmatpush1.msra.mxu0 %v1381
  %2360 = vmatprep.subr.mxu0 0.0
  %2361 = vmatpush2.msra.mxu0 0.0
  %2362 = vmatprep.subr.mxu0 0.0
  %2363 = vmatpush2.msra.mxu0 0.0
  %2364 = vmatprep.subr.mxu0 0.0
  %2365 = vmatpush2.msra.mxu0 0.0
  %2366 = vmatprep.subr.mxu0 0.0
  %2367 = vmatpush2.msra.mxu0 0.0
  %2368 = vmatprep.subr.mxu0 0.0
  %2369 = vmatpush2.msra.mxu0 0.0
  %2370 = vmatprep.subr.mxu0 0.0
  %2371 = vmatpush2.msra.mxu0 0.0
  %2372 = vmatprep.subr.mxu0 0.0
  %2373 = vmatpush2.msra.mxu0 0.0
  %2374 = vmatprep.subr.mxu0 0.0
  %2375 = vmatpush2.msra.mxu0 0.0
  %2376 = vmatprep.subr.mxu0 0.0
  %2377 = vmatpush2.msra.mxu0 0.0
  %2378 = vmatprep.subr.mxu0 0.0
  %2379 = vmatpush2.msra.mxu0 0.0
  %2380 = vmatprep.subr.mxu0 0.0
  %2381 = vmatpush2.msra.mxu0 0.0
  %2382 = vmatprep.subr.mxu0 0.0
  %2383 = vmatpush2.msra.mxu0 0.0
  %2384 = vmatprep.subr.mxu0 0.0
  %2385 = vmatpush2.msra.mxu0 0.0
  %2386 = vmatprep.subr.mxu0 0.0
  %2387 = vmatpush2.msra.mxu0 0.0
  %2388 = vmatprep.subr.mxu0 0.0
  %2389 = vmatpush2.msra.mxu0 0.0
  %2390 = vmatprep.subr.mxu0 0.0
  %2391 = vmatpush2.msra.mxu0 0.0
  %2392 = vmatprep.mubr.f32.mxu0 0.0
  %2393 = vmatmul.mubr.f32.gmra.mxu0 %v2323
  %v2394 = vpop.f32.mrf.mxu0
  %v2395 = vadd.f32 %v2321, %v2394
  %v2396 = vpop.f32.mrf.mxu0
  %2397 = vmatprep.mubr.f32.mxu0 0.0
  %2398 = vmatmul.mubr.f32.gmra.mxu0 %v2326
  %v2399 = vpop.f32.mrf.mxu0
  %v2400 = vadd.f32 %v2321, %v2399
  %v2401 = vpop.f32.mrf.mxu0
  %2402 = vdwg.mxu0
  %v2403 = vadd.f32 %v1373, %v2395
  %v2404 = vadd.f32 %v1374, %v2400
  %v2405 = vsel %vm38, %v2403, 0.0
  %2406 = vadd.xlane.f32.xlu0 %v2405
  %v2407 = vpop.xlane.xlu0 %2406
  %v2408 = vsel %vm38, %v2404, 0.0
  %2409 = vadd.xlane.f32.xlu0 %v2408
  %v2410 = vpop.xlane.xlu0 %2409
  %v2411 = vmul.f32 %v2407, %v45
  %v2412 = vmul.f32 %v2410, %v45
  %v2413 = vsub.f32 %v2403, %v2411
  %v2414 = vsub.f32 %v2404, %v2412
  %v2415 = vmul.f32 %v2413, %v2413
  %v2416 = vmul.f32 %v2414, %v2414
  %v2417 = vsel %vm38, %v2415, 0.0
  %2418 = vadd.xlane.f32.xlu0 %v2417
  %v2419 = vpop.xlane.xlu0 %2418
  %v2420 = vsel %vm38, %v2416, 0.0
  %2421 = vadd.xlane.f32.xlu0 %v2420
  %v2422 = vpop.xlane.xlu0 %2421
  %v2423 = vmul.f32 %v2419, %v45
  %v2424 = vmul.f32 %v2422, %v45
  %v2425 = vadd.f32 %v2423, 1e-05
  %v2426 = vadd.f32 %v2424, 1e-05
  %v2427 = vrsqrt.pop %v2425
  %v2428 = vrsqrt.pop %v2426
  %v2429 = vmul.f32 %v2413, %v2427
  %v2430 = vmul.f32 %v2414, %v2428
  %v2431 = vlaneseq
  %v2432 = vshrl.u32 %v2431, 7
  %v2433 = vsub.s32 2, %v2432
  %v2434 = vrot.slane %v1400, %v2433
  %v2435 = vmul.f32 %v2429, %v2434
  %v2436 = vmul.f32 %v2430, %v2434
  %v2437 = vlaneseq
  %v2438 = vshrl.u32 %v2437, 7
  %v2439 = vsub.s32 3, %v2438
  %v2440 = vrot.slane %v1400, %v2439
  %v2441 = vadd.f32 %v2435, %v2440
  %v2442 = vadd.f32 %v2436, %v2440
  %v2443 = vlaneseq
  %v2444 = vshrl.u32 %v2443, 7
  %v2445 = vsub.s32 4, %v2444
  %v2446 = vrot.slane %v1400, %v2445
  %v2448 = vsel %vm38, %v2441, 0
  %v2451 = vsel %vm38, %v2442, 0
  %2453 = vmatprep.subr.mxu0 0.0
  %2454 = vmatpush1.msra.mxu0 0.0
  %2455 = vmatprep.subr.mxu0 0.0
  %2456 = vmatpush1.msra.mxu0 0.0
  %2457 = vmatprep.subr.mxu0 0.0
  %2458 = vmatpush1.msra.mxu0 0.0
  %2459 = vmatprep.subr.mxu0 0.0
  %2460 = vmatpush1.msra.mxu0 0.0
  %2461 = vmatprep.subr.mxu0 0.0
  %2462 = vmatpush1.msra.mxu0 0.0
  %2463 = vmatprep.subr.mxu0 0.0
  %2464 = vmatpush1.msra.mxu0 0.0
  %2465 = vmatprep.subr.mxu0 0.0
  %2466 = vmatpush1.msra.mxu0 0.0
  %2467 = vmatprep.subr.mxu0 0.0
  %2468 = vmatpush1.msra.mxu0 0.0
  %2469 = vmatprep.subr.mxu0 0.0
  %2470 = vmatpush1.msra.mxu0 0.0
  %2471 = vmatprep.subr.mxu0 0.0
  %2472 = vmatpush1.msra.mxu0 0.0
  %2473 = vmatprep.subr.mxu0 0.0
  %2474 = vmatpush1.msra.mxu0 0.0
  %2475 = vmatprep.subr.mxu0 0.0
  %2476 = vmatpush1.msra.mxu0 0.0
  %2477 = vmatprep.subr.mxu0 0.0
  %2478 = vmatpush1.msra.mxu0 %v1389
  %2479 = vmatprep.subr.mxu0 0.0
  %2480 = vmatpush1.msra.mxu0 %v1388
  %2481 = vmatprep.subr.mxu0 0.0
  %2482 = vmatpush1.msra.mxu0 %v1387
  %2483 = vmatprep.subr.mxu0 0.0
  %2484 = vmatpush1.msra.mxu0 %v1386
  %2485 = vmatprep.subr.mxu0 0.0
  %2486 = vmatpush2.msra.mxu0 0.0
  %2487 = vmatprep.subr.mxu0 0.0
  %2488 = vmatpush2.msra.mxu0 0.0
  %2489 = vmatprep.subr.mxu0 0.0
  %2490 = vmatpush2.msra.mxu0 0.0
  %2491 = vmatprep.subr.mxu0 0.0
  %2492 = vmatpush2.msra.mxu0 0.0
  %2493 = vmatprep.subr.mxu0 0.0
  %2494 = vmatpush2.msra.mxu0 0.0
  %2495 = vmatprep.subr.mxu0 0.0
  %2496 = vmatpush2.msra.mxu0 0.0
  %2497 = vmatprep.subr.mxu0 0.0
  %2498 = vmatpush2.msra.mxu0 0.0
  %2499 = vmatprep.subr.mxu0 0.0
  %2500 = vmatpush2.msra.mxu0 0.0
  %2501 = vmatprep.subr.mxu0 0.0
  %2502 = vmatpush2.msra.mxu0 0.0
  %2503 = vmatprep.subr.mxu0 0.0
  %2504 = vmatpush2.msra.mxu0 0.0
  %2505 = vmatprep.subr.mxu0 0.0
  %2506 = vmatpush2.msra.mxu0 0.0
  %2507 = vmatprep.subr.mxu0 0.0
  %2508 = vmatpush2.msra.mxu0 0.0
  %2509 = vmatprep.subr.mxu0 0.0
  %2510 = vmatpush2.msra.mxu0 0.0
  %2511 = vmatprep.subr.mxu0 0.0
  %2512 = vmatpush2.msra.mxu0 0.0
  %2513 = vmatprep.subr.mxu0 0.0
  %2514 = vmatpush2.msra.mxu0 0.0
  %2515 = vmatprep.subr.mxu0 0.0
  %2516 = vmatpush2.msra.mxu0 0.0
  %2517 = vmatprep.mubr.f32.mxu0 0.0
  %2518 = vmatmul.mubr.f32.gmra.mxu0 %v2448
  %v2519 = vpop.f32.mrf.mxu0
  %v2520 = vadd.f32 %v2446, %v2519
  %v2521 = vpop.f32.mrf.mxu0
  %2522 = vmatprep.mubr.f32.mxu0 0.0
  %2523 = vmatmul.mubr.f32.gmra.mxu0 %v2451
  %v2524 = vpop.f32.mrf.mxu0
  %v2525 = vadd.f32 %v2446, %v2524
  %v2526 = vpop.f32.mrf.mxu0
  %2527 = vdwg.mxu0
  %v2528 = vmul.f32 %v2520, 0.5
  %v2529 = vmul.f32 %v2525, 0.5
  %v2530 = vmul.f32 %v2520, %v2520
  %v2531 = vmul.f32 %v2525, %v2525
  %v2532 = vmul.f32 %v2520, %v2530
  %v2533 = vmul.f32 %v2525, %v2531
  %v2534 = vmul.f32 %v2532, 0.044715
  %v2535 = vmul.f32 %v2533, 0.044715
  %v2536 = vadd.f32 %v2520, %v2534
  %v2537 = vadd.f32 %v2525, %v2535
  %v2538 = vmul.f32 %v2536, 0.7978846
  %v2539 = vmul.f32 %v2537, 0.7978846
  %v2540 = vtanh.pop %v2538
  %v2541 = vtanh.pop %v2539
  %v2542 = vadd.f32 %v2540, 1.0
  %v2543 = vadd.f32 %v2541, 1.0
  %v2544 = vmul.f32 %v2528, %v2542
  %v2545 = vmul.f32 %v2529, %v2543
  %v2546 = vlaneseq
  %v2547 = vshrl.u32 %v2546, 7
  %v2548 = vsub.s32 5, %v2547
  %v2549 = vrot.slane %v1400, %v2548
  %v2551 = vsel %vm1253, %v2544, 0
  %v2554 = vsel %vm1253, %v2545, 0
  %2556 = vmatprep.subr.mxu0 0.0
  %2557 = vmatpush1.msra.mxu0 0.0
  %2558 = vmatprep.subr.mxu0 0.0
  %2559 = vmatpush1.msra.mxu0 0.0
  %2560 = vmatprep.subr.mxu0 0.0
  %2561 = vmatpush1.msra.mxu0 0.0
  %2562 = vmatprep.subr.mxu0 0.0
  %2563 = vmatpush1.msra.mxu0 0.0
  %2564 = vmatprep.subr.mxu0 0.0
  %2565 = vmatpush1.msra.mxu0 0.0
  %2566 = vmatprep.subr.mxu0 0.0
  %2567 = vmatpush1.msra.mxu0 0.0
  %2568 = vmatprep.subr.mxu0 0.0
  %2569 = vmatpush1.msra.mxu0 0.0
  %2570 = vmatprep.subr.mxu0 0.0
  %2571 = vmatpush1.msra.mxu0 0.0
  %2572 = vmatprep.subr.mxu0 0.0
  %2573 = vmatpush1.msra.mxu0 %v1398
  %2574 = vmatprep.subr.mxu0 0.0
  %2575 = vmatpush1.msra.mxu0 %v1397
  %2576 = vmatprep.subr.mxu0 0.0
  %2577 = vmatpush1.msra.mxu0 %v1396
  %2578 = vmatprep.subr.mxu0 0.0
  %2579 = vmatpush1.msra.mxu0 %v1395
  %2580 = vmatprep.subr.mxu0 0.0
  %2581 = vmatpush1.msra.mxu0 %v1394
  %2582 = vmatprep.subr.mxu0 0.0
  %2583 = vmatpush1.msra.mxu0 %v1393
  %2584 = vmatprep.subr.mxu0 0.0
  %2585 = vmatpush1.msra.mxu0 %v1392
  %2586 = vmatprep.subr.mxu0 0.0
  %2587 = vmatpush1.msra.mxu0 %v1391
  %2588 = vmatprep.subr.mxu0 0.0
  %2589 = vmatpush2.msra.mxu0 0.0
  %2590 = vmatprep.subr.mxu0 0.0
  %2591 = vmatpush2.msra.mxu0 0.0
  %2592 = vmatprep.subr.mxu0 0.0
  %2593 = vmatpush2.msra.mxu0 0.0
  %2594 = vmatprep.subr.mxu0 0.0
  %2595 = vmatpush2.msra.mxu0 0.0
  %2596 = vmatprep.subr.mxu0 0.0
  %2597 = vmatpush2.msra.mxu0 0.0
  %2598 = vmatprep.subr.mxu0 0.0
  %2599 = vmatpush2.msra.mxu0 0.0
  %2600 = vmatprep.subr.mxu0 0.0
  %2601 = vmatpush2.msra.mxu0 0.0
  %2602 = vmatprep.subr.mxu0 0.0
  %2603 = vmatpush2.msra.mxu0 0.0
  %2604 = vmatprep.subr.mxu0 0.0
  %2605 = vmatpush2.msra.mxu0 0.0
  %2606 = vmatprep.subr.mxu0 0.0
  %2607 = vmatpush2.msra.mxu0 0.0
  %2608 = vmatprep.subr.mxu0 0.0
  %2609 = vmatpush2.msra.mxu0 0.0
  %2610 = vmatprep.subr.mxu0 0.0
  %2611 = vmatpush2.msra.mxu0 0.0
  %2612 = vmatprep.subr.mxu0 0.0
  %2613 = vmatpush2.msra.mxu0 0.0
  %2614 = vmatprep.subr.mxu0 0.0
  %2615 = vmatpush2.msra.mxu0 0.0
  %2616 = vmatprep.subr.mxu0 0.0
  %2617 = vmatpush2.msra.mxu0 0.0
  %2618 = vmatprep.subr.mxu0 0.0
  %2619 = vmatpush2.msra.mxu0 0.0
  %2620 = vmatprep.mubr.f32.mxu0 0.0
  %2621 = vmatmul.mubr.f32.gmra.mxu0 %v2551
  %v2622 = vpop.f32.mrf.mxu0
  %v2623 = vadd.f32 %v2549, %v2622
  %v2624 = vpop.f32.mrf.mxu0
  %2625 = vmatprep.mubr.f32.mxu0 0.0
  %2626 = vmatmul.mubr.f32.gmra.mxu0 %v2554
  %v2627 = vpop.f32.mrf.mxu0
  %v2628 = vadd.f32 %v2549, %v2627
  %v2629 = vpop.f32.mrf.mxu0
  %2630 = vdwg.mxu0
  %v2631 = vadd.f32 %v2441, %v2623
  %v2632 = vadd.f32 %v2442, %v2628
  %v2633 = vsel %vm38, %v2631, 0.0
  %2634 = vadd.xlane.f32.xlu0 %v2633
  %v2635 = vpop.xlane.xlu0 %2634
  %v2636 = vsel %vm38, %v2632, 0.0
  %2637 = vadd.xlane.f32.xlu0 %v2636
  %v2638 = vpop.xlane.xlu0 %2637
  %v2639 = vmul.f32 %v2635, %v45
  %v2640 = vmul.f32 %v2638, %v45
  %v2641 = vsub.f32 %v2631, %v2639
  %v2642 = vsub.f32 %v2632, %v2640
  %v2643 = vmul.f32 %v2641, %v2641
  %v2644 = vmul.f32 %v2642, %v2642
  %v2645 = vsel %vm38, %v2643, 0.0
  %2646 = vadd.xlane.f32.xlu0 %v2645
  %v2647 = vpop.xlane.xlu0 %2646
  %v2648 = vsel %vm38, %v2644, 0.0
  %2649 = vadd.xlane.f32.xlu0 %v2648
  %v2650 = vpop.xlane.xlu0 %2649
  %v2651 = vmul.f32 %v2647, %v45
  %v2652 = vmul.f32 %v2650, %v45
  %v2653 = vadd.f32 %v2651, 1e-05
  %v2654 = vadd.f32 %v2652, 1e-05
  %v2655 = vrsqrt.pop %v2653
  %v2656 = vrsqrt.pop %v2654
  %v2657 = vmul.f32 %v2641, %v2655
  %v2658 = vmul.f32 %v2642, %v2656
  %v2659 = vlaneseq
  %v2660 = vshrl.u32 %v2659, 7
  %v2661 = vsub.s32 6, %v2660
  %v2662 = vrot.slane %v1400, %v2661
  %v2663 = vmul.f32 %v2657, %v2662
  %v2664 = vmul.f32 %v2658, %v2662
  %v2665 = vlaneseq
  %v2666 = vshrl.u32 %v2665, 7
  %v2667 = vsub.s32 7, %v2666
  %v2668 = vrot.slane %v1400, %v2667
  %v2669 = vadd.f32 %v2663, %v2668
  %v2670 = vadd.f32 %v2664, %v2668
  %v2671 = vld [vmem:[%s2] sm:$0xff]
  %v2672 = vld [vmem:[%s2 + $0x8] sm:$0x3]
  %v2674 = vsel %vm280, %v2671, 0
  %v2677 = vsel %vm280, %v2672, 0
  %2679 = vmatprep.subr.mxu0 0.0
  %2680 = vmatpush1.msra.mxu0 0.0
  %2681 = vmatprep.subr.mxu0 0.0
  %2682 = vmatpush1.msra.mxu0 0.0
  %2683 = vmatprep.subr.mxu0 0.0
  %2684 = vmatpush1.msra.mxu0 0.0
  %2685 = vmatprep.subr.mxu0 0.0
  %2686 = vmatpush1.msra.mxu0 0.0
  %2687 = vmatprep.subr.mxu0 0.0
  %2688 = vmatpush1.msra.mxu0 0.0
  %2689 = vmatprep.subr.mxu0 0.0
  %2690 = vmatpush1.msra.mxu0 0.0
  %2691 = vmatprep.subr.mxu0 0.0
  %2692 = vmatpush1.msra.mxu0 0.0
  %2693 = vmatprep.subr.mxu0 0.0
  %2694 = vmatpush1.msra.mxu0 0.0
  %2695 = vmatprep.subr.mxu0 0.0
  %2696 = vmatpush1.msra.mxu0 0.0
  %2697 = vmatprep.subr.mxu0 0.0
  %2698 = vmatpush1.msra.mxu0 0.0
  %2699 = vmatprep.subr.mxu0 0.0
  %2700 = vmatpush1.msra.mxu0 0.0
  %2701 = vmatprep.subr.mxu0 0.0
  %2702 = vmatpush1.msra.mxu0 0.0
  %2703 = vmatprep.subr.mxu0 0.0
  %2704 = vmatpush1.msra.mxu0 0.0
  %2705 = vmatprep.subr.mxu0 0.0
  %2706 = vmatpush1.msra.mxu0 0.0
  %2707 = vmatprep.subr.mxu0 0.0
  %2708 = vmatpush1.msra.mxu0 %v2670
  %2709 = vmatprep.subr.mxu0 0.0
  %2710 = vmatpush1.msra.mxu0 %v2669
  %2711 = vmatprep.subr.mxu0 0.0
  %2712 = vmatpush2.msra.mxu0 0.0
  %2713 = vmatprep.subr.mxu0 0.0
  %2714 = vmatpush2.msra.mxu0 0.0
  %2715 = vmatprep.subr.mxu0 0.0
  %2716 = vmatpush2.msra.mxu0 0.0
  %2717 = vmatprep.subr.mxu0 0.0
  %2718 = vmatpush2.msra.mxu0 0.0
  %2719 = vmatprep.subr.mxu0 0.0
  %2720 = vmatpush2.msra.mxu0 0.0
  %2721 = vmatprep.subr.mxu0 0.0
  %2722 = vmatpush2.msra.mxu0 0.0
  %2723 = vmatprep.subr.mxu0 0.0
  %2724 = vmatpush2.msra.mxu0 0.0
  %2725 = vmatprep.subr.mxu0 0.0
  %2726 = vmatpush2.msra.mxu0 0.0
  %2727 = vmatprep.subr.mxu0 0.0
  %2728 = vmatpush2.msra.mxu0 0.0
  %2729 = vmatprep.subr.mxu0 0.0
  %2730 = vmatpush2.msra.mxu0 0.0
  %2731 = vmatprep.subr.mxu0 0.0
  %2732 = vmatpush2.msra.mxu0 0.0
  %2733 = vmatprep.subr.mxu0 0.0
  %2734 = vmatpush2.msra.mxu0 0.0
  %2735 = vmatprep.subr.mxu0 0.0
  %2736 = vmatpush2.msra.mxu0 0.0
  %2737 = vmatprep.subr.mxu0 0.0
  %2738 = vmatpush2.msra.mxu0 0.0
  %2739 = vmatprep.subr.mxu0 0.0
  %2740 = vmatpush2.msra.mxu0 0.0
  %2741 = vmatprep.subr.mxu0 0.0
  %2742 = vmatpush2.msra.mxu0 0.0
  %2743 = vmatprep.mubr.f32.mxu0 0.0
  %2744 = vmatmul.mubr.f32.gmra.mxu0 %v2674
  %v2745 = vpop.f32.mrf.mxu0
  %v2746 = vadd.f32 0.0, %v2745
  %v2747 = vpop.f32.mrf.mxu0
  %2748 = vmatprep.mubr.f32.mxu0 0.0
  %2749 = vmatmul.mubr.f32.gmra.mxu0 %v2677
  %v2750 = vpop.f32.mrf.mxu0
  %v2751 = vadd.f32 0.0, %v2750
  %v2752 = vpop.f32.mrf.mxu0
  %2753 = vdwg.mxu0
  %v2754 = vld [vmem:[%s8] sm:$0xff]
  %v2755 = vld [vmem:[%s8 + $0x8] sm:$0xff]
  %v2756 = vld [vmem:[%s8 + $0x10] sm:$0xff]
  %v2757 = vld [vmem:[%s8 + $0x18] sm:$0xff]
  %v2758 = vld [vmem:[%s8 + $0x20] sm:$0xff]
  %v2759 = vld [vmem:[%s8 + $0x28] sm:$0xff]
  %v2760 = vld [vmem:[%s8 + $0x30] sm:$0xff]
  %v2761 = vld [vmem:[%s8 + $0x38] sm:$0xff]
  %v2762 = vld [vmem:[%s8 + $0x40] sm:$0xff]
  %v2763 = vld [vmem:[%s8 + $0x48] sm:$0xff]
  %v2764 = vld [vmem:[%s8 + $0x50] sm:$0xff]
  %v2765 = vld [vmem:[%s8 + $0x58] sm:$0xff]
  %v2766 = vlaneseq
  %v2767 = vshrl.u32 %v2766, 7
  %v2768 = vsub.s32 2, %v2767
  %v2769 = vrot.slane %v35, %v2768
  %v2771 = vsel %vm38, %v2751, 0
  %2773 = vmatprep.subr.mxu0 0.0
  %2774 = vmatpush1.msra.mxu0 0.0
  %2775 = vmatprep.subr.mxu0 0.0
  %2776 = vmatpush1.msra.mxu0 0.0
  %2777 = vmatprep.subr.mxu0 0.0
  %2778 = vmatpush1.msra.mxu0 0.0
  %2779 = vmatprep.subr.mxu0 0.0
  %2780 = vmatpush1.msra.mxu0 0.0
  %2781 = vmatprep.subr.mxu0 0.0
  %2782 = vmatpush1.msra.mxu0 0.0
  %2783 = vmatprep.subr.mxu0 0.0
  %2784 = vmatpush1.msra.mxu0 0.0
  %2785 = vmatprep.subr.mxu0 0.0
  %2786 = vmatpush1.msra.mxu0 0.0
  %2787 = vmatprep.subr.mxu0 0.0
  %2788 = vmatpush1.msra.mxu0 0.0
  %2789 = vmatprep.subr.mxu0 0.0
  %2790 = vmatpush1.msra.mxu0 0.0
  %2791 = vmatprep.subr.mxu0 0.0
  %2792 = vmatpush1.msra.mxu0 0.0
  %2793 = vmatprep.subr.mxu0 0.0
  %2794 = vmatpush1.msra.mxu0 0.0
  %2795 = vmatprep.subr.mxu0 0.0
  %2796 = vmatpush1.msra.mxu0 0.0
  %2797 = vmatprep.subr.mxu0 0.0
  %2798 = vmatpush1.msra.mxu0 %v2765
  %2799 = vmatprep.subr.mxu0 0.0
  %2800 = vmatpush1.msra.mxu0 %v2762
  %2801 = vmatprep.subr.mxu0 0.0
  %2802 = vmatpush1.msra.mxu0 %v2759
  %2803 = vmatprep.subr.mxu0 0.0
  %2804 = vmatpush1.msra.mxu0 %v2756
  %2805 = vmatprep.subr.mxu0 0.0
  %2806 = vmatpush2.msra.mxu0 0.0
  %2807 = vmatprep.subr.mxu0 0.0
  %2808 = vmatpush2.msra.mxu0 0.0
  %2809 = vmatprep.subr.mxu0 0.0
  %2810 = vmatpush2.msra.mxu0 0.0
  %2811 = vmatprep.subr.mxu0 0.0
  %2812 = vmatpush2.msra.mxu0 0.0
  %2813 = vmatprep.subr.mxu0 0.0
  %2814 = vmatpush2.msra.mxu0 0.0
  %2815 = vmatprep.subr.mxu0 0.0
  %2816 = vmatpush2.msra.mxu0 0.0
  %2817 = vmatprep.subr.mxu0 0.0
  %2818 = vmatpush2.msra.mxu0 0.0
  %2819 = vmatprep.subr.mxu0 0.0
  %2820 = vmatpush2.msra.mxu0 0.0
  %2821 = vmatprep.subr.mxu0 0.0
  %2822 = vmatpush2.msra.mxu0 0.0
  %2823 = vmatprep.subr.mxu0 0.0
  %2824 = vmatpush2.msra.mxu0 0.0
  %2825 = vmatprep.subr.mxu0 0.0
  %2826 = vmatpush2.msra.mxu0 0.0
  %2827 = vmatprep.subr.mxu0 0.0
  %2828 = vmatpush2.msra.mxu0 0.0
  %2829 = vmatprep.subr.mxu0 0.0
  %2830 = vmatpush2.msra.mxu0 0.0
  %2831 = vmatprep.subr.mxu0 0.0
  %2832 = vmatpush2.msra.mxu0 0.0
  %2833 = vmatprep.subr.mxu0 0.0
  %2834 = vmatpush2.msra.mxu0 0.0
  %2835 = vmatprep.subr.mxu0 0.0
  %2836 = vmatpush2.msra.mxu0 0.0
  %2837 = vmatprep.mubr.f32.mxu0 0.0
  %2838 = vmatmul.mubr.f32.gmra.mxu0 %v2771
  %v2839 = vpop.f32.mrf.mxu0
  %v2840 = vadd.f32 %v2769, %v2839
  %v2841 = vpop.f32.mrf.mxu0
  %2842 = vdwg.mxu0
  %v2843 = vtanh.pop %v2840
  %v2844 = vlaneseq
  %v2845 = vshrl.u32 %v2844, 7
  %v2846 = vsub.s32 3, %v2845
  %v2847 = vrot.slane %v35, %v2846
  %v2849 = vsel %vm38, %v2843, 0
  %2851 = vmatprep.subr.mxu0 0.0
  %2852 = vmatpush1.msra.mxu0 0.0
  %2853 = vmatprep.subr.mxu0 0.0
  %2854 = vmatpush1.msra.mxu0 0.0
  %2855 = vmatprep.subr.mxu0 0.0
  %2856 = vmatpush1.msra.mxu0 0.0
  %2857 = vmatprep.subr.mxu0 0.0
  %2858 = vmatpush1.msra.mxu0 0.0
  %2859 = vmatprep.subr.mxu0 0.0
  %2860 = vmatpush1.msra.mxu0 0.0
  %2861 = vmatprep.subr.mxu0 0.0
  %2862 = vmatpush1.msra.mxu0 0.0
  %2863 = vmatprep.subr.mxu0 0.0
  %2864 = vmatpush1.msra.mxu0 0.0
  %2865 = vmatprep.subr.mxu0 0.0
  %2866 = vmatpush1.msra.mxu0 0.0
  %2867 = vmatprep.subr.mxu0 0.0
  %2868 = vmatpush1.msra.mxu0 0.0
  %2869 = vmatprep.subr.mxu0 0.0
  %2870 = vmatpush1.msra.mxu0 0.0
  %2871 = vmatprep.subr.mxu0 0.0
  %2872 = vmatpush1.msra.mxu0 0.0
  %2873 = vmatprep.subr.mxu0 0.0
  %2874 = vmatpush1.msra.mxu0 0.0
  %2875 = vmatprep.subr.mxu0 0.0
  %2876 = vmatpush1.msra.mxu0 %v2763
  %2877 = vmatprep.subr.mxu0 0.0
  %2878 = vmatpush1.msra.mxu0 %v2760
  %2879 = vmatprep.subr.mxu0 0.0
  %2880 = vmatpush1.msra.mxu0 %v2757
  %2881 = vmatprep.subr.mxu0 0.0
  %2882 = vmatpush1.msra.mxu0 %v2754
  %2883 = vmatprep.subr.mxu0 0.0
  %2884 = vmatpush2.msra.mxu0 0.0
  %2885 = vmatprep.subr.mxu0 0.0
  %2886 = vmatpush2.msra.mxu0 0.0
  %2887 = vmatprep.subr.mxu0 0.0
  %2888 = vmatpush2.msra.mxu0 0.0
  %2889 = vmatprep.subr.mxu0 0.0
  %2890 = vmatpush2.msra.mxu0 0.0
  %2891 = vmatprep.subr.mxu0 0.0
  %2892 = vmatpush2.msra.mxu0 0.0
  %2893 = vmatprep.subr.mxu0 0.0
  %2894 = vmatpush2.msra.mxu0 0.0
  %2895 = vmatprep.subr.mxu0 0.0
  %2896 = vmatpush2.msra.mxu0 0.0
  %2897 = vmatprep.subr.mxu0 0.0
  %2898 = vmatpush2.msra.mxu0 0.0
  %2899 = vmatprep.subr.mxu0 0.0
  %2900 = vmatpush2.msra.mxu0 0.0
  %2901 = vmatprep.subr.mxu0 0.0
  %2902 = vmatpush2.msra.mxu0 0.0
  %2903 = vmatprep.subr.mxu0 0.0
  %2904 = vmatpush2.msra.mxu0 0.0
  %2905 = vmatprep.subr.mxu0 0.0
  %2906 = vmatpush2.msra.mxu0 0.0
  %2907 = vmatprep.subr.mxu0 0.0
  %2908 = vmatpush2.msra.mxu0 0.0
  %2909 = vmatprep.subr.mxu0 0.0
  %2910 = vmatpush2.msra.mxu0 0.0
  %2911 = vmatprep.subr.mxu0 0.0
  %2912 = vmatpush2.msra.mxu0 0.0
  %2913 = vmatprep.subr.mxu0 0.0
  %2914 = vmatpush2.msra.mxu0 0.0
  %2915 = vmatprep.mubr.f32.mxu0 0.0
  %2916 = vmatmul.mubr.f32.gmra.mxu0 %v2849
  %v2917 = vpop.f32.mrf.mxu0
  %v2918 = vadd.f32 %v2847, %v2917
  %v2919 = vpop.f32.mrf.mxu0
  %2920 = vdwg.mxu0
  %v2921 = vlaneseq
  %v2922 = vshrl.u32 %v2921, 7
  %v2923 = vsub.s32 4, %v2922
  %v2924 = vrot.slane %v35, %v2923
  %2929 = vrot.lane.b32.xlu0 %v2756, 96
  %v2930 = vpop.permute.xlu0 %2929
  %2931 = vrot.lane.b32.xlu0 %v2759, 96
  %v2932 = vpop.permute.xlu0 %2931
  %2933 = vrot.lane.b32.xlu0 %v2762, 96
  %v2934 = vpop.permute.xlu0 %2933
  %2935 = vrot.lane.b32.xlu0 %v2765, 96
  %v2936 = vpop.permute.xlu0 %2935
  %v2942 = vsel %vm38, %v2746, 0
  %2944 = vmatprep.subr.mxu0 0.0
  %2945 = vmatpush1.msra.mxu0 0.0
  %2946 = vmatprep.subr.mxu0 0.0
  %2947 = vmatpush1.msra.mxu0 0.0
  %2948 = vmatprep.subr.mxu0 0.0
  %2949 = vmatpush1.msra.mxu0 0.0
  %2950 = vmatprep.subr.mxu0 0.0
  %2951 = vmatpush1.msra.mxu0 0.0
  %2952 = vmatprep.subr.mxu0 0.0
  %2953 = vmatpush1.msra.mxu0 0.0
  %2954 = vmatprep.subr.mxu0 0.0
  %2955 = vmatpush1.msra.mxu0 0.0
  %2956 = vmatprep.subr.mxu0 0.0
  %2957 = vmatpush1.msra.mxu0 0.0
  %2958 = vmatprep.subr.mxu0 0.0
  %2959 = vmatpush1.msra.mxu0 0.0
  %2960 = vmatprep.subr.mxu0 0.0
  %2961 = vmatpush1.msra.mxu0 0.0
  %2962 = vmatprep.subr.mxu0 0.0
  %2963 = vmatpush1.msra.mxu0 0.0
  %2964 = vmatprep.subr.mxu0 0.0
  %2965 = vmatpush1.msra.mxu0 0.0
  %2966 = vmatprep.subr.mxu0 0.0
  %2967 = vmatpush1.msra.mxu0 0.0
  %2968 = vmatprep.subr.mxu0 0.0
  %2969 = vmatpush1.msra.mxu0 %v2936
  %2970 = vmatprep.subr.mxu0 0.0
  %2971 = vmatpush1.msra.mxu0 %v2934
  %2972 = vmatprep.subr.mxu0 0.0
  %2973 = vmatpush1.msra.mxu0 %v2932
  %2974 = vmatprep.subr.mxu0 0.0
  %2975 = vmatpush1.msra.mxu0 %v2930
  %2976 = vmatprep.subr.mxu0 0.0
  %2977 = vmatpush2.msra.mxu0 0.0
  %2978 = vmatprep.subr.mxu0 0.0
  %2979 = vmatpush2.msra.mxu0 0.0
  %2980 = vmatprep.subr.mxu0 0.0
  %2981 = vmatpush2.msra.mxu0 0.0
  %2982 = vmatprep.subr.mxu0 0.0
  %2983 = vmatpush2.msra.mxu0 0.0
  %2984 = vmatprep.subr.mxu0 0.0
  %2985 = vmatpush2.msra.mxu0 0.0
  %2986 = vmatprep.subr.mxu0 0.0
  %2987 = vmatpush2.msra.mxu0 0.0
  %2988 = vmatprep.subr.mxu0 0.0
  %2989 = vmatpush2.msra.mxu0 0.0
  %2990 = vmatprep.subr.mxu0 0.0
  %2991 = vmatpush2.msra.mxu0 0.0
  %2992 = vmatprep.subr.mxu0 0.0
  %2993 = vmatpush2.msra.mxu0 0.0
  %2994 = vmatprep.subr.mxu0 0.0
  %2995 = vmatpush2.msra.mxu0 0.0
  %2996 = vmatprep.subr.mxu0 0.0
  %2997 = vmatpush2.msra.mxu0 0.0
  %2998 = vmatprep.subr.mxu0 0.0
  %2999 = vmatpush2.msra.mxu0 0.0
  %3000 = vmatprep.subr.mxu0 0.0
  %3001 = vmatpush2.msra.mxu0 0.0
  %3002 = vmatprep.subr.mxu0 0.0
  %3003 = vmatpush2.msra.mxu0 0.0
  %3004 = vmatprep.subr.mxu0 0.0
  %3005 = vmatpush2.msra.mxu0 0.0
  %3006 = vmatprep.subr.mxu0 0.0
  %3007 = vmatpush2.msra.mxu0 0.0
  %3008 = vmatprep.mubr.f32.mxu0 0.0
  %3009 = vmatmul.mubr.f32.gmra.mxu0 %v2942
  %v3010 = vpop.f32.mrf.mxu0
  %v3011 = vadd.f32 %v2924, %v3010
  %v3012 = vpop.f32.mrf.mxu0
  %3013 = vdwg.mxu0
  %v3014 = vmul.f32 %v3011, 0.5
  %v3015 = vmul.f32 %v3011, %v3011
  %v3016 = vmul.f32 %v3011, %v3015
  %v3017 = vmul.f32 %v3016, 0.044715
  %v3018 = vadd.f32 %v3011, %v3017
  %v3019 = vmul.f32 %v3018, 0.7978846
  %v3020 = vtanh.pop %v3019
  %v3021 = vadd.f32 %v3020, 1.0
  %v3022 = vmul.f32 %v3014, %v3021
  %v3023 = vsel %vm38, %v3022, 0.0
  %3024 = vadd.xlane.f32.xlu0 %v3023
  %v3025 = vpop.xlane.xlu0 %3024
  %v3026 = vmul.f32 %v3025, %v45
  %v3027 = vsub.f32 %v3022, %v3026
  %v3028 = vmul.f32 %v3027, %v3027
  %v3029 = vsel %vm38, %v3028, 0.0
  %3030 = vadd.xlane.f32.xlu0 %v3029
  %v3031 = vpop.xlane.xlu0 %3030
  %v3032 = vmul.f32 %v3031, %v45
  %v3033 = vadd.f32 %v3032, 1e-05
  %v3034 = vrsqrt.pop %v3033
  %v3035 = vmul.f32 %v3027, %v3034
  %v3036 = vlaneseq
  %v3037 = vshrl.u32 %v3036, 7
  %v3038 = vsub.s32 5, %v3037
  %v3039 = vrot.slane %v35, %v3038
  %v3040 = vmul.f32 %v3035, %v3039
  %v3041 = vlaneseq
  %v3042 = vshrl.u32 %v3041, 7
  %v3043 = vsub.s32 6, %v3042
  %v3044 = vrot.slane %v35, %v3043
  %v3045 = vadd.f32 %v3040, %v3044
  %v3046 = vlaneseq
  %v3047 = vshrl.u32 %v3046, 7
  %v3048 = vsub.s32 7, %v3047
  %v3049 = vrot.slane %v35, %v3048
  %v3051 = vsel %vm38, %v3045, 0
  %3053 = vmatprep.subr.mxu0 0.0
  %3054 = vmatpush1.msra.mxu0 0.0
  %3055 = vmatprep.subr.mxu0 0.0
  %3056 = vmatpush1.msra.mxu0 0.0
  %3057 = vmatprep.subr.mxu0 0.0
  %3058 = vmatpush1.msra.mxu0 0.0
  %3059 = vmatprep.subr.mxu0 0.0
  %3060 = vmatpush1.msra.mxu0 0.0
  %3061 = vmatprep.subr.mxu0 0.0
  %3062 = vmatpush1.msra.mxu0 0.0
  %3063 = vmatprep.subr.mxu0 0.0
  %3064 = vmatpush1.msra.mxu0 0.0
  %3065 = vmatprep.subr.mxu0 0.0
  %3066 = vmatpush1.msra.mxu0 0.0
  %3067 = vmatprep.subr.mxu0 0.0
  %3068 = vmatpush1.msra.mxu0 0.0
  %3069 = vmatprep.subr.mxu0 0.0
  %3070 = vmatpush1.msra.mxu0 0.0
  %3071 = vmatprep.subr.mxu0 0.0
  %3072 = vmatpush1.msra.mxu0 0.0
  %3073 = vmatprep.subr.mxu0 0.0
  %3074 = vmatpush1.msra.mxu0 0.0
  %3075 = vmatprep.subr.mxu0 0.0
  %3076 = vmatpush1.msra.mxu0 0.0
  %3077 = vmatprep.subr.mxu0 0.0
  %3078 = vmatpush1.msra.mxu0 %v2764
  %3079 = vmatprep.subr.mxu0 0.0
  %3080 = vmatpush1.msra.mxu0 %v2761
  %3081 = vmatprep.subr.mxu0 0.0
  %3082 = vmatpush1.msra.mxu0 %v2758
  %3083 = vmatprep.subr.mxu0 0.0
  %3084 = vmatpush1.msra.mxu0 %v2755
  %3085 = vmatprep.subr.mxu0 0.0
  %3086 = vmatpush2.msra.mxu0 0.0
  %3087 = vmatprep.subr.mxu0 0.0
  %3088 = vmatpush2.msra.mxu0 0.0
  %3089 = vmatprep.subr.mxu0 0.0
  %3090 = vmatpush2.msra.mxu0 0.0
  %3091 = vmatprep.subr.mxu0 0.0
  %3092 = vmatpush2.msra.mxu0 0.0
  %3093 = vmatprep.subr.mxu0 0.0
  %3094 = vmatpush2.msra.mxu0 0.0
  %3095 = vmatprep.subr.mxu0 0.0
  %3096 = vmatpush2.msra.mxu0 0.0
  %3097 = vmatprep.subr.mxu0 0.0
  %3098 = vmatpush2.msra.mxu0 0.0
  %3099 = vmatprep.subr.mxu0 0.0
  %3100 = vmatpush2.msra.mxu0 0.0
  %3101 = vmatprep.subr.mxu0 0.0
  %3102 = vmatpush2.msra.mxu0 0.0
  %3103 = vmatprep.subr.mxu0 0.0
  %3104 = vmatpush2.msra.mxu0 0.0
  %3105 = vmatprep.subr.mxu0 0.0
  %3106 = vmatpush2.msra.mxu0 0.0
  %3107 = vmatprep.subr.mxu0 0.0
  %3108 = vmatpush2.msra.mxu0 0.0
  %3109 = vmatprep.subr.mxu0 0.0
  %3110 = vmatpush2.msra.mxu0 0.0
  %3111 = vmatprep.subr.mxu0 0.0
  %3112 = vmatpush2.msra.mxu0 0.0
  %3113 = vmatprep.subr.mxu0 0.0
  %3114 = vmatpush2.msra.mxu0 0.0
  %3115 = vmatprep.subr.mxu0 0.0
  %3116 = vmatpush2.msra.mxu0 0.0
  %3117 = vmatprep.mubr.f32.mxu0 0.0
  %3118 = vmatmul.mubr.f32.gmra.mxu0 %v3051
  %v3119 = vpop.f32.mrf.mxu0
  %v3120 = vadd.f32 %v3049, %v3119
  %v3121 = vpop.f32.mrf.mxu0
  %3122 = vdwg.mxu0
  %3123 = vst [vmem:[%s10] sm:$0xff] %v3120
  %3124 = vst [vmem:[%s10 + $0x8] sm:$0x3] %v2918
  // Predicated region
  $region42: #{bert_pallas.1} parent=0 // pred_check
    _
  $region43: #{bert_pallas.1} parent=0 // pred_check_branch
    %3126 = sbr.rel (0) target = $region45
  $region44: #{bert_pallas.1} parent=0 // pred_region
    _
  $region45: #{bert_pallas.1} parent=0 // pred_fallthru
    _
  // Predicated region
  $region46: #{bert_pallas.1} parent=0 // pred_check
    _
  $region47: #{bert_pallas.1} parent=0 // pred_check_branch
    %3128 = sbr.rel (0) target = $region49
  $region48: #{bert_pallas.1} parent=0 // pred_region
    _
  $region49: #{bert_pallas.1} parent=0 // pred_fallthru
    _

</llo_original>
